<compile_context>
chip_gen: v7x
topology: tpu7x:2x2x1
jax: 0.10.0
libtpu: 0.0.40
codegen_flags: <defaults>
</compile_context>

<pallas_src>
import jax
import jax.numpy as jnp
from jax.experimental import pallas as pl
from jax.experimental.pallas import tpu as pltpu


# ----------------------------------------------------------------------------
# Kernel
# ----------------------------------------------------------------------------
def _moe_kernel(x_ref, gw_ref, gb_ref, w1_ref, b1_ref, exp_ref, w2_ref, b2_ref,
                out_ref):
    x = x_ref[...]                                                   # [B, H] f32

    # ---- gate: softmax(x @ Wg + bg) — tiny, kept in f32 ----------------------
    logits = jnp.dot(x, gw_ref[...],
                     preferred_element_type=jnp.float32) + gb_ref[...]   # [B, E]
    m = jnp.max(logits, axis=-1, keepdims=True)
    p = jnp.exp(logits - m)
    gate = p * pl.reciprocal(jnp.sum(p, axis=-1, keepdims=True), approx=True)

    # ---- fused expert layer 1: relu(x @ W1cat + b1cat) -----------------------
    h = jnp.dot(x.astype(jnp.bfloat16), w1_ref[...],
                preferred_element_type=jnp.float32) + b1_ref[...]    # [B, E*HID]
    h = jnp.maximum(h, 0.0)

    # ---- fold the gate into h per expert chunk via a tiny MXU matmul ---------
    # expander is a static 0/1 matrix [E, E*HID]; scale[b, e*HID:(e+1)*HID] = gate[b, e]
    scale = jnp.dot(gate, exp_ref[...],
                    preferred_element_type=jnp.float32)              # [B, E*HID]
    h = h * scale

    # ---- fused expert layer 2 + gate-weighted biases --------------------------
    y = jnp.dot(h.astype(jnp.bfloat16), w2_ref[...],
                preferred_element_type=jnp.float32)                  # [B, Dc]
    y = y + jnp.dot(gate, b2_ref[...],
                    preferred_element_type=jnp.float32)              # + gate @ b2
    out_ref[...] = y.astype(out_ref.dtype)


# ----------------------------------------------------------------------------
# One-time weight preparation (outside jit — run once at model init)
# ----------------------------------------------------------------------------
def prepare_moe_weights(gate_w, gate_b, w1, b1, w2, b2):
    """Fuse per-expert weights and pre-cast MXU operands to bf16 once."""
    E, H, HID = w1.shape
    D = w2.shape[-1]
    w1cat = jnp.transpose(w1, (1, 0, 2)).reshape(H, E * HID).astype(jnp.bfloat16)
    b1cat = b1.reshape(1, E * HID).astype(jnp.float32)
    w2stk = w2.reshape(E * HID, D).astype(jnp.bfloat16)
    # Static 0/1 expander: row e has ones on columns [e*HID, (e+1)*HID).
    expander = jnp.repeat(jnp.eye(E, dtype=jnp.float32), HID, axis=1)  # [E, E*HID]
    return (gate_w.astype(jnp.float32), gate_b.astype(jnp.float32),
            w1cat, b1cat, expander, w2stk, b2.astype(jnp.float32))


def _tensorcores_per_chip():
    """2 only on chips with two TensorCores (v7x); v5e/v6e have one."""
    try:
        kind = jax.devices()[0].device_kind.lower()
    except Exception:
        return 1
    return 2 if "v7" in kind else 1


# ----------------------------------------------------------------------------
# Jitted wrapper (takes the pre-fused weights)
# ----------------------------------------------------------------------------
@jax.jit
def moe_decoder(x, gate_w, gate_b, w1cat, b1cat, expander, w2stk, b2):
    B, H = x.shape
    E = gate_w.shape[-1]
    EH = w1cat.shape[-1]
    D = w2stk.shape[-1]

    # Generation-aware output-dim split: only split when 2 TensorCores exist
    # (v7x) and D keeps lane-dense 128-multiples per half; otherwise a single
    # grid step (serial loop on v5e/v6e buys nothing and adds overhead).
    # TODO(synk): on v7x, verify in xprof that the "parallel" axis is actually
    # sharded across both cores; otherwise switch to CORE_PARALLEL / core_map.
    d_split = 2 if (_tensorcores_per_chip() == 2 and D % 256 == 0) else 1
    Dc = D // d_split

    return pl.pallas_call(
        _moe_kernel,
        out_shape=jax.ShapeDtypeStruct((B, D), jnp.float32),
        grid_spec=pltpu.PrefetchScalarGridSpec(
            num_scalar_prefetch=0,
            grid=(d_split,),
            in_specs=[
                pl.BlockSpec((B, H), lambda j: (0, 0)),         # x
                pl.BlockSpec((H, E), lambda j: (0, 0)),         # gate_w
                pl.BlockSpec((1, E), lambda j: (0, 0)),         # gate_b
                pl.BlockSpec((H, EH), lambda j: (0, 0)),        # W1cat (bf16)
                pl.BlockSpec((1, EH), lambda j: (0, 0)),        # b1cat
                pl.BlockSpec((E, EH), lambda j: (0, 0)),        # expander
                pl.BlockSpec((EH, Dc), lambda j: (0, j)),       # W2stack (bf16)
                pl.BlockSpec((E, Dc), lambda j: (0, j)),        # b2
            ],
            out_specs=pl.BlockSpec((B, Dc), lambda j: (0, j)),
        ),
        compiler_params=pltpu.CompilerParams(
            dimension_semantics=("parallel",)),
    )(x, gate_w, gate_b, w1cat, b1cat, expander, w2stk, b2)


# ----------------------------------------------------------------------------
# Pure-JAX f32 reference (matches the PyTorch forward)
# ----------------------------------------------------------------------------
def moe_decoder_ref(x, gate_w, gate_b, w1, b1, w2, b2):
    gate = jax.nn.softmax(x @ gate_w + gate_b[0], axis=-1)           # [B, E]
    h = jax.nn.relu(jnp.einsum('bh,ehk->ebk', x, w1) + b1[:, None, :])
    y = jnp.einsum('ebk,ekd->ebd', h, w2) + b2[:, None, :]           # [E, B, D]
    return jnp.einsum('be,ebd->bd', gate, y)


if __name__ == "__main__":
    B, H, E, HID, D = 8, 32, 3, 512, 512   # batch, hidden_dim, experts, 512, output_dim

    key = jax.random.PRNGKey(0)
    ks = jax.random.split(key, 8)
    scale = 0.05
    x      = jax.random.normal(ks[0], (B, H),      jnp.float32)
    gate_w = jax.random.normal(ks[1], (H, E),      jnp.float32) * scale
    gate_b = jax.random.normal(ks[2], (1, E),      jnp.float32) * scale
    w1     = jax.random.normal(ks[3], (E, H, HID), jnp.float32) * scale
    b1     = jax.random.normal(ks[4], (E, HID),    jnp.float32) * scale
    w2     = jax.random.normal(ks[5], (E, HID, D), jnp.float32) * scale
    b2     = jax.random.normal(ks[6], (E, D),      jnp.float32) * scale

    # One-time weight fusion / bf16 cast (outside the jitted hot path).
    fused = prepare_moe_weights(gate_w, gate_b, w1, b1, w2, b2)
    fused = jax.block_until_ready(fused)

    out = moe_decoder(x, *fused)
    out = jax.block_until_ready(out)

    ref = moe_decoder_ref(x, gate_w, gate_b, w1, b1, w2, b2)
    assert out.shape == (B, D), out.shape
    # bf16 MXU operands + approx reciprocal => loosened tolerance vs f32 ref.
    assert jnp.allclose(out, ref, atol=2e-2, rtol=2e-2), float(
        jnp.max(jnp.abs(out - ref)))

    print("KERNEL_OK")
</pallas_src>

<mosaic_0001>
module attributes {stable_mosaic.version = 11 : i64} {
  func.func @_moe_kernel(%arg0: i32, %arg1: memref<8x32xf32, #tpu.memory_space<vmem>>, %arg2: memref<32x3xf32, #tpu.memory_space<vmem>>, %arg3: memref<1x3xf32, #tpu.memory_space<vmem>>, %arg4: memref<32x1536xbf16, #tpu.memory_space<vmem>>, %arg5: memref<1x1536xf32, #tpu.memory_space<vmem>>, %arg6: memref<3x1536xf32, #tpu.memory_space<vmem>>, %arg7: memref<1536x512xbf16, #tpu.memory_space<vmem>>, %arg8: memref<3x512xf32, #tpu.memory_space<vmem>>, %arg9: memref<8x512xf32, #tpu.memory_space<vmem>>) attributes {dimension_semantics = [#tpu.dimension_semantics<parallel>], iteration_bounds = array<i64: 1>, scalar_prefetch = 0 : i64, scratch_operands = 0 : i64, tpu.core_type = #tpu.core_type<tc>, window_params = [{pipeline_mode = #tpu.pipeline_mode<synchronous>, transform_indices = @transform_0, window_bounds = array<i64: 8, 32>}, {pipeline_mode = #tpu.pipeline_mode<synchronous>, transform_indices = @transform_1, window_bounds = array<i64: 32, 3>}, {pipeline_mode = #tpu.pipeline_mode<synchronous>, transform_indices = @transform_2, window_bounds = array<i64: 1, 3>}, {pipeline_mode = #tpu.pipeline_mode<synchronous>, transform_indices = @transform_3, window_bounds = array<i64: 32, 1536>}, {pipeline_mode = #tpu.pipeline_mode<synchronous>, transform_indices = @transform_4, window_bounds = array<i64: 1, 1536>}, {pipeline_mode = #tpu.pipeline_mode<synchronous>, transform_indices = @transform_5, window_bounds = array<i64: 3, 1536>}, {transform_indices = @transform_6, window_bounds = array<i64: 1536, 512>}, {transform_indices = @transform_7, window_bounds = array<i64: 3, 512>}, {transform_indices = @transform_8, window_bounds = array<i64: 8, 512>}]} {
    %c0 = arith.constant 0 : index
    %c0_0 = arith.constant 0 : index
    %0 = vector.load %arg1[%c0, %c0_0] : memref<8x32xf32, #tpu.memory_space<vmem>>, vector<8x32xf32>
    %c0_1 = arith.constant 0 : index
    %c0_2 = arith.constant 0 : index
    %1 = vector.load %arg2[%c0_1, %c0_2] : memref<32x3xf32, #tpu.memory_space<vmem>>, vector<32x3xf32>
    %cst = arith.constant dense<0.000000e+00> : vector<8x3xf32>
    %2 = tpu.matmul %0, %1, %cst {dimension_numbers = #tpu.dot_dimension_numbers<[1], [0], [0], [1], [0, 0, 1, 1], [], []>} : vector<8x32xf32>, vector<32x3xf32>, vector<8x3xf32> -> vector<8x3xf32>
    %c0_3 = arith.constant 0 : index
    %c0_4 = arith.constant 0 : index
    %3 = vector.load %arg3[%c0_3, %c0_4] : memref<1x3xf32, #tpu.memory_space<vmem>>, vector<1x3xf32>
    %4 = vector.broadcast %3 : vector<1x3xf32> to vector<8x3xf32>
    %5 = arith.addf %2, %4 : vector<8x3xf32>
    %cst_5 = arith.constant dense<0xFF800000> : vector<8xf32>
    %6 = vector.multi_reduction <maximumf>, %5, %cst_5 [1] : vector<8x3xf32> to vector<8xf32>
    %7 = vector.shape_cast %6 : vector<8xf32> to vector<8x1xf32>
    %8 = vector.broadcast %7 : vector<8x1xf32> to vector<8x3xf32>
    %9 = arith.subf %5, %8 : vector<8x3xf32>
    %10 = math.exp %9 : vector<8x3xf32>
    %cst_6 = arith.constant dense<0.000000e+00> : vector<8xf32>
    %11 = vector.multi_reduction <add>, %10, %cst_6 [1] : vector<8x3xf32> to vector<8xf32>
    %12 = vector.shape_cast %11 : vector<8xf32> to vector<8x1xf32>
    %13 = tpu.reciprocal %12 {approx = true} : vector<8x1xf32> -> vector<8x1xf32>
    %14 = vector.broadcast %13 : vector<8x1xf32> to vector<8x3xf32>
    %15 = arith.mulf %10, %14 : vector<8x3xf32>
    %16 = arith.truncf %0 : vector<8x32xf32> to vector<8x32xbf16>
    %c0_7 = arith.constant 0 : index
    %c0_8 = arith.constant 0 : index
    %17 = vector.load %arg4[%c0_7, %c0_8] : memref<32x1536xbf16, #tpu.memory_space<vmem>>, vector<32x1536xbf16>
    %cst_9 = arith.constant dense<0.000000e+00> : vector<8x1536xf32>
    %18 = tpu.matmul %16, %17, %cst_9 {dimension_numbers = #tpu.dot_dimension_numbers<[1], [0], [0], [1], [0, 0, 1, 1], [], []>} : vector<8x32xbf16>, vector<32x1536xbf16>, vector<8x1536xf32> -> vector<8x1536xf32>
    %c0_10 = arith.constant 0 : index
    %c0_11 = arith.constant 0 : index
    %19 = vector.load %arg5[%c0_10, %c0_11] : memref<1x1536xf32, #tpu.memory_space<vmem>>, vector<1x1536xf32>
    %20 = vector.broadcast %19 : vector<1x1536xf32> to vector<8x1536xf32>
    %21 = arith.addf %18, %20 : vector<8x1536xf32>
    %cst_12 = arith.constant 0.000000e+00 : f32
    %22 = vector.broadcast %cst_12 : f32 to vector<8x1536xf32>
    %23 = arith.maximumf %21, %22 : vector<8x1536xf32>
    %c0_13 = arith.constant 0 : index
    %c0_14 = arith.constant 0 : index
    %24 = vector.load %arg6[%c0_13, %c0_14] : memref<3x1536xf32, #tpu.memory_space<vmem>>, vector<3x1536xf32>
    %cst_15 = arith.constant dense<0.000000e+00> : vector<8x1536xf32>
    %25 = tpu.matmul %15, %24, %cst_15 {dimension_numbers = #tpu.dot_dimension_numbers<[1], [0], [0], [1], [0, 0, 1, 1], [], []>} : vector<8x3xf32>, vector<3x1536xf32>, vector<8x1536xf32> -> vector<8x1536xf32>
    %26 = arith.mulf %23, %25 : vector<8x1536xf32>
    %27 = arith.truncf %26 : vector<8x1536xf32> to vector<8x1536xbf16>
    %c0_16 = arith.constant 0 : index
    %c0_17 = arith.constant 0 : index
    %28 = vector.load %arg7[%c0_16, %c0_17] : memref<1536x512xbf16, #tpu.memory_space<vmem>>, vector<1536x512xbf16>
    %cst_18 = arith.constant dense<0.000000e+00> : vector<8x512xf32>
    %29 = tpu.matmul %27, %28, %cst_18 {dimension_numbers = #tpu.dot_dimension_numbers<[1], [0], [0], [1], [0, 0, 1, 1], [], []>} : vector<8x1536xbf16>, vector<1536x512xbf16>, vector<8x512xf32> -> vector<8x512xf32>
    %c0_19 = arith.constant 0 : index
    %c0_20 = arith.constant 0 : index
    %30 = vector.load %arg8[%c0_19, %c0_20] : memref<3x512xf32, #tpu.memory_space<vmem>>, vector<3x512xf32>
    %cst_21 = arith.constant dense<0.000000e+00> : vector<8x512xf32>
    %31 = tpu.matmul %15, %30, %cst_21 {dimension_numbers = #tpu.dot_dimension_numbers<[1], [0], [0], [1], [0, 0, 1, 1], [], []>} : vector<8x3xf32>, vector<3x512xf32>, vector<8x512xf32> -> vector<8x512xf32>
    %32 = arith.addf %29, %31 : vector<8x512xf32>
    %c0_22 = arith.constant 0 : index
    %c0_23 = arith.constant 0 : index
    %33 = vector.load %arg9[%c0_22, %c0_23] : memref<8x512xf32, #tpu.memory_space<vmem>>, vector<8x512xf32>
    tpu.vector_store %arg9[%c0_22, %c0_23], %32 {strides = array<i32>} : memref<8x512xf32, #tpu.memory_space<vmem>>, vector<8x512xf32>,
    return
  }
  func.func @transform_0(%arg0: i32) -> (i32, i32) {
    %c0_i32 = arith.constant 0 : i32
    %c0_i32_0 = arith.constant 0 : i32
    %c0_i32_1 = arith.constant 0 : i32
    return %c0_i32, %c0_i32_0 : i32, i32
  }
  func.func @transform_1(%arg0: i32) -> (i32, i32) {
    %c0_i32 = arith.constant 0 : i32
    %c0_i32_0 = arith.constant 0 : i32
    %c0_i32_1 = arith.constant 0 : i32
    return %c0_i32, %c0_i32_0 : i32, i32
  }
  func.func @transform_2(%arg0: i32) -> (i32, i32) {
    %c0_i32 = arith.constant 0 : i32
    %c0_i32_0 = arith.constant 0 : i32
    %c0_i32_1 = arith.constant 0 : i32
    return %c0_i32, %c0_i32_0 : i32, i32
  }
  func.func @transform_3(%arg0: i32) -> (i32, i32) {
    %c0_i32 = arith.constant 0 : i32
    %c0_i32_0 = arith.constant 0 : i32
    %c0_i32_1 = arith.constant 0 : i32
    return %c0_i32, %c0_i32_0 : i32, i32
  }
  func.func @transform_4(%arg0: i32) -> (i32, i32) {
    %c0_i32 = arith.constant 0 : i32
    %c0_i32_0 = arith.constant 0 : i32
    %c0_i32_1 = arith.constant 0 : i32
    return %c0_i32, %c0_i32_0 : i32, i32
  }
  func.func @transform_5(%arg0: i32) -> (i32, i32) {
    %c0_i32 = arith.constant 0 : i32
    %c0_i32_0 = arith.constant 0 : i32
    %c0_i32_1 = arith.constant 0 : i32
    return %c0_i32, %c0_i32_0 : i32, i32
  }
  func.func @transform_6(%arg0: i32) -> (i32, i32) {
    %c0_i32 = arith.constant 0 : i32
    %c0_i32_0 = arith.constant 0 : i32
    return %c0_i32, %arg0 : i32, i32
  }
  func.func @transform_7(%arg0: i32) -> (i32, i32) {
    %c0_i32 = arith.constant 0 : i32
    %c0_i32_0 = arith.constant 0 : i32
    return %c0_i32, %arg0 : i32, i32
  }
  func.func @transform_8(%arg0: i32) -> (i32, i32) {
    %c0_i32 = arith.constant 0 : i32
    %c0_i32_0 = arith.constant 0 : i32
    return %c0_i32, %arg0 : i32, i32
  }
}

</mosaic_0001>

<llo_original>
// kernel: moe_decoder.1
$region0: #{moe_decoder.1}
  #allocation0 [shape = 'u32[]', space=smem, size = 0x4, offset = 0x4, fixed_abs, tag = 'smem constant byte address 0x4 - core index']
  #allocation1 [shape = 'u32[144,128]{1,0:T(1,128)}', space=vmem, size = 0x12000, scoped, tag = 'internal scratch']
  %s0 = inlined_call_operand.hbm [shape: f32[8,32], index: 0, kind: input, shape index: {}]
  %s1 = inlined_call_operand.vmem [shape: f32[32,3], index: 1, kind: input, shape index: {}]
  %s2 = inlined_call_operand.hbm [shape: f32[1,3], index: 2, kind: input, shape index: {}]
  %s3 = inlined_call_operand.hbm [shape: bf16[32,1536], index: 3, kind: input, shape index: {}]
  %s4 = inlined_call_operand.hbm [shape: f32[1,1536], index: 4, kind: input, shape index: {}]
  %s5 = inlined_call_operand.hbm [shape: f32[3,1536], index: 5, kind: input, shape index: {}]
  %s6 = inlined_call_operand.hbm [shape: bf16[1536,512], index: 6, kind: input, shape index: {}]
  %s7 = inlined_call_operand.hbm [shape: f32[3,512], index: 7, kind: input, shape index: {}]
  %s8 = inlined_call_operand.hbm [shape: f32[8,512], index: 8, kind: output, shape index: {}]
  %s9 = sld [smem:[#allocation0]]
  $region70: #{moe_decoder.1} parent=0
    _
  %s11 = ssub.s32 1, %s9
  %s12 = scalar_select 0, %s11, %s9
  $region1: #{moe_decoder.1} parent=0
    #allocation2 [shape = 'u8[4096]{0}', space=vmem, size = 0x1000, scoped, tag = 'input window, operand 0, single buffered']
    #allocation3 [shape = 's32[1]{0}', space=sflag, size = 0x4, scoped, tag = 'scoped memory for moe_decoder.1']
    #allocation4 [shape = 's32[1]{0}', space=sflag, size = 0x4, scoped, tag = 'scoped memory for moe_decoder.1']
    #allocation5 [shape = 'u8[512]{0}', space=vmem, size = 0x400, scoped, tag = 'input window, operand 2, single buffered']
    #allocation6 [shape = 's32[1]{0}', space=sflag, size = 0x4, scoped, tag = 'scoped memory for moe_decoder.1']
    #allocation7 [shape = 'u8[98304]{0}', space=vmem, size = 0x18000, scoped, tag = 'input window, operand 3, single buffered']
    #allocation8 [shape = 'u8[6144]{0}', space=vmem, size = 0x1800, scoped, tag = 'input window, operand 4, single buffered']
    #allocation9 [shape = 's32[1]{0}', space=sflag, size = 0x4, scoped, tag = 'scoped memory for moe_decoder.1']
    #allocation10 [shape = 'u8[24576]{0}', space=vmem, size = 0x6000, scoped, tag = 'input window, operand 5, single buffered']
    #allocation11 [shape = 'u8[1572864]{0}', space=vmem, size = 0x180000, scoped, tag = 'input window, operand 6, single buffered']
    #allocation12 [shape = 's32[1]{0}', space=sflag, size = 0x4, scoped, tag = 'scoped memory for moe_decoder.1']
    #allocation13 [shape = 'u8[8192]{0}', space=vmem, size = 0x2000, scoped, tag = 'input window, operand 7, single buffered']
    #allocation14 [shape = 'u8[16384]{0}', space=vmem, size = 0x4000, scoped, tag = 'output window, operand 0, single buffered']
    %13 = vsyncpa [#allocation3], 0
    %14 = vsyncpa [#allocation6], 0
    %15 = vsyncpa [#allocation9], 0
    %16 = vsyncpa [#allocation12], 0
    %17 = vsyncpa [#allocation4], 0
    // Predicated region
    $region2: #{moe_decoder.1} parent=1 // pred_check
      _
    $region3: #{moe_decoder.1} parent=1 // pred_check_branch
      %19 = sbr.rel (0) target = $region5
    $region4: #{moe_decoder.1} parent=1 // pred_region
      %s21 = ssub.s32 128, 128
      %22 = vsyncadd [#allocation3], %s21
      %s24 = sshll.u32 [#allocation2], 4
      %s25 = int_to_ptr.vmem [resolvable:$true] %s24
      %27 = dma.hbm_to_vmem [thread:$0]  %s0, 128, %s25, [#allocation3]
    $region5: #{moe_decoder.1} parent=1 // pred_fallthru
      _
    // Predicated region
    $region6: #{moe_decoder.1} parent=1 // pred_check
      _
    $region7: #{moe_decoder.1} parent=1 // pred_check_branch
      %29 = sbr.rel (0) target = $region9
    $region8: #{moe_decoder.1} parent=1 // pred_region
      _
    $region9: #{moe_decoder.1} parent=1 // pred_fallthru
      _
    // Predicated region
    $region10: #{moe_decoder.1} parent=1 // pred_check
      _
    $region11: #{moe_decoder.1} parent=1 // pred_check_branch
      %31 = sbr.rel (0) target = $region13
    $region12: #{moe_decoder.1} parent=1 // pred_region
      %s33 = ssub.s32 16, 16
      %34 = vsyncadd [#allocation6], %s33
      %s36 = sshll.u32 [#allocation5], 4
      %s37 = int_to_ptr.vmem [resolvable:$true] %s36
      %39 = dma.hbm_to_vmem [thread:$0]  %s2, 16, %s37, [#allocation6]
    $region13: #{moe_decoder.1} parent=1 // pred_fallthru
      _
    // Predicated region
    $region14: #{moe_decoder.1} parent=1 // pred_check
      _
    $region15: #{moe_decoder.1} parent=1 // pred_check_branch
      %41 = sbr.rel (0) target = $region17
    $region16: #{moe_decoder.1} parent=1 // pred_region
      %s43 = ssub.s32 3072, 3072
      %44 = vsyncadd [#allocation6], %s43
      %s45 = sshll.u32 [#allocation7], 4
      %s46 = int_to_ptr.vmem [resolvable:$true] %s45
      %51 = dma.hbm_to_vmem [thread:$0]  %s3, 3072, %s46, [#allocation6], 768, 768, 48
    $region17: #{moe_decoder.1} parent=1 // pred_fallthru
      _
    // Predicated region
    $region18: #{moe_decoder.1} parent=1 // pred_check
      _
    $region19: #{moe_decoder.1} parent=1 // pred_check_branch
      %53 = sbr.rel (0) target = $region21
    $region20: #{moe_decoder.1} parent=1 // pred_region
      %s55 = ssub.s32 192, 192
      %56 = vsyncadd [#allocation9], %s55
      %s58 = sshll.u32 [#allocation8], 4
      %s59 = int_to_ptr.vmem [resolvable:$true] %s58
      %61 = dma.hbm_to_vmem [thread:$0]  %s4, 192, %s59, [#allocation9]
    $region21: #{moe_decoder.1} parent=1 // pred_fallthru
      _
    // Predicated region
    $region22: #{moe_decoder.1} parent=1 // pred_check
      _
    $region23: #{moe_decoder.1} parent=1 // pred_check_branch
      %63 = sbr.rel (0) target = $region25
    $region24: #{moe_decoder.1} parent=1 // pred_region
      %s65 = ssub.s32 768, 768
      %66 = vsyncadd [#allocation9], %s65
      %s68 = sshll.u32 [#allocation10], 4
      %s69 = int_to_ptr.vmem [resolvable:$true] %s68
      %71 = dma.hbm_to_vmem [thread:$0]  %s5, 768, %s69, [#allocation9]
    $region25: #{moe_decoder.1} parent=1 // pred_fallthru
      _
    // Predicated region
    $region26: #{moe_decoder.1} parent=1 // pred_check
      _
    $region27: #{moe_decoder.1} parent=1 // pred_check_branch
      %73 = sbr.rel (0) target = $region29
    $region28: #{moe_decoder.1} parent=1 // pred_region
      %s75 = ssub.s32 49152, 49152
      %76 = vsyncadd [#allocation12], %s75
      %s77 = sshll.u32 [#allocation11], 4
      %s78 = int_to_ptr.vmem [resolvable:$true] %s77
      %83 = dma.hbm_to_vmem [thread:$0]  %s6, 49152, %s78, [#allocation12], 256, 256, 16
    $region29: #{moe_decoder.1} parent=1 // pred_fallthru
      _
    // Predicated region
    $region30: #{moe_decoder.1} parent=1 // pred_check
      _
    $region31: #{moe_decoder.1} parent=1 // pred_check_branch
      %85 = sbr.rel (0) target = $region33
    $region32: #{moe_decoder.1} parent=1 // pred_region
      %s87 = ssub.s32 256, 256
      %88 = vsyncadd [#allocation12], %s87
      %s90 = sshll.u32 [#allocation13], 4
      %s91 = int_to_ptr.vmem [resolvable:$true] %s90
      %93 = dma.hbm_to_vmem [thread:$0]  %s7, 256, %s91, [#allocation12]
    $region33: #{moe_decoder.1} parent=1 // pred_fallthru
      _
    // Predicated region
    $region34: #{moe_decoder.1} parent=1 // pred_check
      _
    $region35: #{moe_decoder.1} parent=1 // pred_check_branch
      %95 = sbr.rel (0) target = $region37
    $region36: #{moe_decoder.1} parent=1 // pred_region
      %96 = dma.done [#allocation3], 128
    $region37: #{moe_decoder.1} parent=1 // pred_fallthru
      _
    // Predicated region
    $region38: #{moe_decoder.1} parent=1 // pred_check
      _
    $region39: #{moe_decoder.1} parent=1 // pred_check_branch
      %98 = sbr.rel (0) target = $region41
    $region40: #{moe_decoder.1} parent=1 // pred_region
      %99 = dma.done [#allocation6], 16
    $region41: #{moe_decoder.1} parent=1 // pred_fallthru
      _
    // Predicated region
    $region42: #{moe_decoder.1} parent=1 // pred_check
      _
    $region43: #{moe_decoder.1} parent=1 // pred_check_branch
      %101 = sbr.rel (0) target = $region45
    $region44: #{moe_decoder.1} parent=1 // pred_region
      %102 = dma.done [#allocation6], 3072
    $region45: #{moe_decoder.1} parent=1 // pred_fallthru
      _
    // Predicated region
    $region46: #{moe_decoder.1} parent=1 // pred_check
      _
    $region47: #{moe_decoder.1} parent=1 // pred_check_branch
      %104 = sbr.rel (0) target = $region49
    $region48: #{moe_decoder.1} parent=1 // pred_region
      %105 = dma.done [#allocation9], 192
    $region49: #{moe_decoder.1} parent=1 // pred_fallthru
      _
    // Predicated region
    $region50: #{moe_decoder.1} parent=1 // pred_check
      _
    $region51: #{moe_decoder.1} parent=1 // pred_check_branch
      %107 = sbr.rel (0) target = $region53
    $region52: #{moe_decoder.1} parent=1 // pred_region
      %108 = dma.done [#allocation9], 768
    $region53: #{moe_decoder.1} parent=1 // pred_fallthru
      _
    // Predicated region
    $region54: #{moe_decoder.1} parent=1 // pred_check
      _
    $region55: #{moe_decoder.1} parent=1 // pred_check_branch
      %110 = sbr.rel (0) target = $region57
    $region56: #{moe_decoder.1} parent=1 // pred_region
      %111 = dma.done [#allocation12], 49152
    $region57: #{moe_decoder.1} parent=1 // pred_fallthru
      _
    // Predicated region
    $region58: #{moe_decoder.1} parent=1 // pred_check
      _
    $region59: #{moe_decoder.1} parent=1 // pred_check_branch
      %113 = sbr.rel (0) target = $region61
    $region60: #{moe_decoder.1} parent=1 // pred_region
      %114 = dma.done [#allocation12], 256
    $region61: #{moe_decoder.1} parent=1 // pred_fallthru
      _
    %v116 = vld [vmem:[#allocation2] sm:$0xff]
    %v117 = vld [vmem:[%s1] sm:$0xff]
    %v118 = vld [vmem:[%s1 + $0x8] sm:$0xff]
    %v119 = vld [vmem:[%s1 + $0x10] sm:$0xff]
    %v120 = vld [vmem:[%s1 + $0x18] sm:$0xff]
    %v121 = vld [vmem:[#allocation5] sm:$0x1]
    %v123 = vlaneseq
    %v124 = vshrl.u32 %v123, 7
    %v125 = vsub.s32 0, %v124
    %v126 = vrot.slane %v121, %v125
    %vm128 = vcmask 261120
    %v130 = vsel %vm128, %v116, 0
    %132 = vmatprep.subr.mxu0 0.0
    %133 = vmatpush1.msra.mxu0 %v117
    %134 = vmatprep.subr.mxu0 0.0
    %135 = vmatpush1.msra.mxu0 %v118
    %136 = vmatprep.subr.mxu0 0.0
    %137 = vmatpush1.msra.mxu0 %v119
    %138 = vmatprep.subr.mxu0 0.0
    %139 = vmatpush1.msra.mxu0 %v120
    %140 = vmatprep.subr.mxu0 0.0
    %141 = vmatpush1.msra.mxu0 0.0
    %142 = vmatprep.subr.mxu0 0.0
    %143 = vmatpush1.msra.mxu0 0.0
    %144 = vmatprep.subr.mxu0 0.0
    %145 = vmatpush1.msra.mxu0 0.0
    %146 = vmatprep.subr.mxu0 0.0
    %147 = vmatpush1.msra.mxu0 0.0
    %148 = vmatprep.subr.mxu0 0.0
    %149 = vmatpush1.msra.mxu0 0.0
    %150 = vmatprep.subr.mxu0 0.0
    %151 = vmatpush1.msra.mxu0 0.0
    %152 = vmatprep.subr.mxu0 0.0
    %153 = vmatpush1.msra.mxu0 0.0
    %154 = vmatprep.subr.mxu0 0.0
    %155 = vmatpush1.msra.mxu0 0.0
    %156 = vmatprep.subr.mxu0 0.0
    %157 = vmatpush1.msra.mxu0 0.0
    %158 = vmatprep.subr.mxu0 0.0
    %159 = vmatpush1.msra.mxu0 0.0
    %160 = vmatprep.subr.mxu0 0.0
    %161 = vmatpush1.msra.mxu0 0.0
    %162 = vmatprep.subr.mxu0 0.0
    %163 = vmatpush1.msra.mxu0 0.0
    %164 = vmatprep.subr.mxu0 0.0
    %165 = vmatpush1.msra.mxu0 0.0
    %166 = vmatprep.subr.mxu0 0.0
    %167 = vmatpush1.msra.mxu0 0.0
    %168 = vmatprep.subr.mxu0 0.0
    %169 = vmatpush1.msra.mxu0 0.0
    %170 = vmatprep.subr.mxu0 0.0
    %171 = vmatpush1.msra.mxu0 0.0
    %172 = vmatprep.subr.mxu0 0.0
    %173 = vmatpush1.msra.mxu0 0.0
    %174 = vmatprep.subr.mxu0 0.0
    %175 = vmatpush1.msra.mxu0 0.0
    %176 = vmatprep.subr.mxu0 0.0
    %177 = vmatpush1.msra.mxu0 0.0
    %178 = vmatprep.subr.mxu0 0.0
    %179 = vmatpush1.msra.mxu0 0.0
    %180 = vmatprep.subr.mxu0 0.0
    %181 = vmatpush1.msra.mxu0 0.0
    %182 = vmatprep.subr.mxu0 0.0
    %183 = vmatpush1.msra.mxu0 0.0
    %184 = vmatprep.subr.mxu0 0.0
    %185 = vmatpush1.msra.mxu0 0.0
    %186 = vmatprep.subr.mxu0 0.0
    %187 = vmatpush1.msra.mxu0 0.0
    %188 = vmatprep.subr.mxu0 0.0
    %189 = vmatpush1.msra.mxu0 0.0
    %190 = vmatprep.subr.mxu0 0.0
    %191 = vmatpush1.msra.mxu0 0.0
    %192 = vmatprep.subr.mxu0 0.0
    %193 = vmatpush1.msra.mxu0 0.0
    %194 = vmatprep.subr.mxu0 0.0
    %195 = vmatpush1.msra.mxu0 0.0
    %196 = vmatprep.mubr.f32.mxu0 0.0
    %197 = vmatmul.mubr.f32.gmra.mrb[0].mxu0 %v130
    %v198 = vpop.f32.mrb[0].mxu0
    %v199 = vadd.f32 %v126, %v198
    %v200 = vpop.f32.mrb[0].mxu0
    %201 = vdwg.mxu0
    %vm202 = vcmask 23552
    %v203 = vsel %vm202, %v199, -inf
    %204 = vmax.xlane.f32.xlu0 %v203
    %v205 = vpop.xlane.xlu0 %204
    %v206 = vsub.f32 %v199, %v205
    %v207 = vmul.f32 %v206, 1.442695
    %v208 = vpow.pop %v207
    %v209 = vsel %vm202, %v208, 0.0
    %210 = vadd.xlane.f32.xlu0 %v209
    %v211 = vpop.xlane.xlu0 %210
    %v212 = vrcp.pop %v211
    %v213 = vmul.f32 %v208, %v212
    %v214 = vpack.c.bf16 %v116, %v116
    %v215 = vld [vmem:[#allocation7] sm:$0xff]
    %v216 = vld [vmem:[#allocation7 + $0x8] sm:$0xff]
    %v217 = vld [vmem:[#allocation7 + $0x10] sm:$0xff]
    %v218 = vld [vmem:[#allocation7 + $0x18] sm:$0xff]
    %v219 = vld [vmem:[#allocation7 + $0x20] sm:$0xff]
    %v220 = vld [vmem:[#allocation7 + $0x28] sm:$0xff]
    %v221 = vld [vmem:[#allocation7 + $0x30] sm:$0xff]
    %v222 = vld [vmem:[#allocation7 + $0x38] sm:$0xff]
    %v223 = vld [vmem:[#allocation7 + $0x40] sm:$0xff]
    %v224 = vld [vmem:[#allocation7 + $0x48] sm:$0xff]
    %v225 = vld [vmem:[#allocation7 + $0x50] sm:$0xff]
    %v226 = vld [vmem:[#allocation7 + $0x58] sm:$0xff]
    %v227 = vld [vmem:[#allocation7 + $0x60] sm:$0xff]
    %v228 = vld [vmem:[#allocation7 + $0x68] sm:$0xff]
    %v229 = vld [vmem:[#allocation7 + $0x70] sm:$0xff]
    %v230 = vld [vmem:[#allocation7 + $0x78] sm:$0xff]
    %v231 = vld [vmem:[#allocation7 + $0x80] sm:$0xff]
    %v232 = vld [vmem:[#allocation7 + $0x88] sm:$0xff]
    %v233 = vld [vmem:[#allocation7 + $0x90] sm:$0xff]
    %v234 = vld [vmem:[#allocation7 + $0x98] sm:$0xff]
    %v235 = vld [vmem:[#allocation7 + $0xa0] sm:$0xff]
    %v236 = vld [vmem:[#allocation7 + $0xa8] sm:$0xff]
    %v237 = vld [vmem:[#allocation7 + $0xb0] sm:$0xff]
    %v238 = vld [vmem:[#allocation7 + $0xb8] sm:$0xff]
    %v239 = vld [vmem:[#allocation8] sm:$0xff]
    %v240 = vld [vmem:[#allocation8 + $0x8] sm:$0xf]
    %v243 = vlaneseq
    %v244 = vshrl.u32 %v243, 7
    %v245 = vsub.s32 0, %v244
    %v246 = vrot.slane %v239, %v245
    %v247 = vlaneseq
    %v248 = vshrl.u32 %v247, 7
    %v249 = vsub.s32 1, %v248
    %v250 = vrot.slane %v239, %v249
    %v251 = vlaneseq
    %v252 = vshrl.u32 %v251, 7
    %v253 = vsub.s32 2, %v252
    %v254 = vrot.slane %v239, %v253
    %v255 = vlaneseq
    %v256 = vshrl.u32 %v255, 7
    %v257 = vsub.s32 3, %v256
    %v258 = vrot.slane %v239, %v257
    %v259 = vlaneseq
    %v260 = vshrl.u32 %v259, 7
    %v261 = vsub.s32 4, %v260
    %v262 = vrot.slane %v239, %v261
    %v263 = vlaneseq
    %v264 = vshrl.u32 %v263, 7
    %v265 = vsub.s32 5, %v264
    %v266 = vrot.slane %v239, %v265
    %v267 = vlaneseq
    %v268 = vshrl.u32 %v267, 7
    %v269 = vsub.s32 6, %v268
    %v270 = vrot.slane %v239, %v269
    %v271 = vlaneseq
    %v272 = vshrl.u32 %v271, 7
    %v273 = vsub.s32 7, %v272
    %v274 = vrot.slane %v239, %v273
    %v275 = vlaneseq
    %v276 = vshrl.u32 %v275, 7
    %v277 = vsub.s32 0, %v276
    %v278 = vrot.slane %v240, %v277
    %v279 = vlaneseq
    %v280 = vshrl.u32 %v279, 7
    %v281 = vsub.s32 1, %v280
    %v282 = vrot.slane %v240, %v281
    %v283 = vlaneseq
    %v284 = vshrl.u32 %v283, 7
    %v285 = vsub.s32 2, %v284
    %v286 = vrot.slane %v240, %v285
    %v287 = vlaneseq
    %v288 = vshrl.u32 %v287, 7
    %v289 = vsub.s32 3, %v288
    %v290 = vrot.slane %v240, %v289
    %v327 = vunpack.c.l.b16 %v215
    %v328 = vunpack.c.h.b16 %v215
    %v329 = vunpack.c.l.b16 %v216
    %v330 = vunpack.c.h.b16 %v216
    %v331 = vunpack.c.l.b16 %v217
    %v332 = vunpack.c.h.b16 %v217
    %v333 = vunpack.c.l.b16 %v218
    %v334 = vunpack.c.h.b16 %v218
    %v335 = vunpack.c.l.b16 %v219
    %v336 = vunpack.c.h.b16 %v219
    %v337 = vunpack.c.l.b16 %v220
    %v338 = vunpack.c.h.b16 %v220
    %v339 = vunpack.c.l.b16 %v221
    %v340 = vunpack.c.h.b16 %v221
    %v341 = vunpack.c.l.b16 %v222
    %v342 = vunpack.c.h.b16 %v222
    %v343 = vunpack.c.l.b16 %v223
    %v344 = vunpack.c.h.b16 %v223
    %v345 = vunpack.c.l.b16 %v224
    %v346 = vunpack.c.h.b16 %v224
    %v347 = vunpack.c.l.b16 %v225
    %v348 = vunpack.c.h.b16 %v225
    %v349 = vunpack.c.l.b16 %v226
    %v350 = vunpack.c.h.b16 %v226
    %v351 = vunpack.c.l.b16 %v227
    %v352 = vunpack.c.h.b16 %v227
    %v353 = vunpack.c.l.b16 %v228
    %v354 = vunpack.c.h.b16 %v228
    %v355 = vunpack.c.l.b16 %v229
    %v356 = vunpack.c.h.b16 %v229
    %v357 = vunpack.c.l.b16 %v230
    %v358 = vunpack.c.h.b16 %v230
    %v359 = vunpack.c.l.b16 %v231
    %v360 = vunpack.c.h.b16 %v231
    %v361 = vunpack.c.l.b16 %v232
    %v362 = vunpack.c.h.b16 %v232
    %v363 = vunpack.c.l.b16 %v233
    %v364 = vunpack.c.h.b16 %v233
    %v365 = vunpack.c.l.b16 %v234
    %v366 = vunpack.c.h.b16 %v234
    %v367 = vunpack.c.l.b16 %v235
    %v368 = vunpack.c.h.b16 %v235
    %v369 = vunpack.c.l.b16 %v236
    %v370 = vunpack.c.h.b16 %v236
    %v371 = vunpack.c.l.b16 %v237
    %v372 = vunpack.c.h.b16 %v237
    %v373 = vunpack.c.l.b16 %v238
    %v374 = vunpack.c.h.b16 %v238
    %v375 = vpack.c.b16 %v339, %v327
    %v376 = vpack.c.b16 %v340, %v328
    %v377 = vpack.c.b16 %v341, %v329
    %v378 = vpack.c.b16 %v342, %v330
    %v379 = vpack.c.b16 %v343, %v331
    %v380 = vpack.c.b16 %v344, %v332
    %v381 = vpack.c.b16 %v345, %v333
    %v382 = vpack.c.b16 %v346, %v334
    %v383 = vpack.c.b16 %v347, %v335
    %v384 = vpack.c.b16 %v348, %v336
    %v385 = vpack.c.b16 %v349, %v337
    %v386 = vpack.c.b16 %v350, %v338
    %v387 = vpack.c.b16 %v363, %v351
    %v388 = vpack.c.b16 %v364, %v352
    %v389 = vpack.c.b16 %v365, %v353
    %v390 = vpack.c.b16 %v366, %v354
    %v391 = vpack.c.b16 %v367, %v355
    %v392 = vpack.c.b16 %v368, %v356
    %v393 = vpack.c.b16 %v369, %v357
    %v394 = vpack.c.b16 %v370, %v358
    %v395 = vpack.c.b16 %v371, %v359
    %v396 = vpack.c.b16 %v372, %v360
    %v397 = vpack.c.b16 %v373, %v361
    %v398 = vpack.c.b16 %v374, %v362
    %v424 = vsel %vm128, %v214, 0
    %426 = vmatprep.subr.bf16.mxu0 %v376
    %427 = vmatpush1.bf16.msra.mxu0 %v375
    %428 = vmatprep.subr.bf16.mxu0 %v388
    %429 = vmatpush1.bf16.msra.mxu0 %v387
    %430 = vmatprep.subr.bf16.mxu0 0
    %431 = vmatpush1.bf16.msra.mxu0 0
    %432 = vmatprep.subr.bf16.mxu0 0
    %433 = vmatpush1.bf16.msra.mxu0 0
    %434 = vmatprep.subr.bf16.mxu0 0
    %435 = vmatpush1.bf16.msra.mxu0 0
    %436 = vmatprep.subr.bf16.mxu0 0
    %437 = vmatpush1.bf16.msra.mxu0 0
    %438 = vmatprep.subr.bf16.mxu0 0
    %439 = vmatpush1.bf16.msra.mxu0 0
    %440 = vmatprep.subr.bf16.mxu0 0
    %441 = vmatpush1.bf16.msra.mxu0 0
    %442 = vmatprep.subr.bf16.mxu0 0
    %443 = vmatpush1.bf16.msra.mxu0 0
    %444 = vmatprep.subr.bf16.mxu0 0
    %445 = vmatpush1.bf16.msra.mxu0 0
    %446 = vmatprep.subr.bf16.mxu0 0
    %447 = vmatpush1.bf16.msra.mxu0 0
    %448 = vmatprep.subr.bf16.mxu0 0
    %449 = vmatpush1.bf16.msra.mxu0 0
    %450 = vmatprep.subr.bf16.mxu0 0
    %451 = vmatpush1.bf16.msra.mxu0 0
    %452 = vmatprep.subr.bf16.mxu0 0
    %453 = vmatpush1.bf16.msra.mxu0 0
    %454 = vmatprep.subr.bf16.mxu0 0
    %455 = vmatpush1.bf16.msra.mxu0 0
    %456 = vmatprep.subr.bf16.mxu0 0
    %457 = vmatpush1.bf16.msra.mxu0 0
    %458 = vmatprep.mubr.bf16.mxu0 0
    %459 = vmatmul.mubr.bf16.gmra.mrb[0].mxu0 %v424
    %v460 = vpop.f32.mrb[0].mxu0
    %v461 = vadd.f32 %v246, %v460
    %v462 = vpop.f32.mrb[0].mxu0
    %v463 = vadd.f32 %v250, %v462
    %v464 = vpop.f32.mrb[0].mxu0
    %v465 = vpop.f32.mrb[0].mxu0
    %466 = vdwg.mxu0
    %467 = vmatprep.subr.bf16.mxu0 %v378
    %468 = vmatpush1.bf16.msra.mxu0 %v377
    %469 = vmatprep.subr.bf16.mxu0 %v390
    %470 = vmatpush1.bf16.msra.mxu0 %v389
    %471 = vmatprep.subr.bf16.mxu0 0
    %472 = vmatpush1.bf16.msra.mxu0 0
    %473 = vmatprep.subr.bf16.mxu0 0
    %474 = vmatpush1.bf16.msra.mxu0 0
    %475 = vmatprep.subr.bf16.mxu0 0
    %476 = vmatpush1.bf16.msra.mxu0 0
    %477 = vmatprep.subr.bf16.mxu0 0
    %478 = vmatpush1.bf16.msra.mxu0 0
    %479 = vmatprep.subr.bf16.mxu0 0
    %480 = vmatpush1.bf16.msra.mxu0 0
    %481 = vmatprep.subr.bf16.mxu0 0
    %482 = vmatpush1.bf16.msra.mxu0 0
    %483 = vmatprep.subr.bf16.mxu0 0
    %484 = vmatpush1.bf16.msra.mxu0 0
    %485 = vmatprep.subr.bf16.mxu0 0
    %486 = vmatpush1.bf16.msra.mxu0 0
    %487 = vmatprep.subr.bf16.mxu0 0
    %488 = vmatpush1.bf16.msra.mxu0 0
    %489 = vmatprep.subr.bf16.mxu0 0
    %490 = vmatpush1.bf16.msra.mxu0 0
    %491 = vmatprep.subr.bf16.mxu0 0
    %492 = vmatpush1.bf16.msra.mxu0 0
    %493 = vmatprep.subr.bf16.mxu0 0
    %494 = vmatpush1.bf16.msra.mxu0 0
    %495 = vmatprep.subr.bf16.mxu0 0
    %496 = vmatpush1.bf16.msra.mxu0 0
    %497 = vmatprep.subr.bf16.mxu0 0
    %498 = vmatpush1.bf16.msra.mxu0 0
    %499 = vmatprep.mubr.bf16.mxu0 0
    %500 = vmatmul.mubr.bf16.gmra.mrb[0].mxu0 %v424
    %v501 = vpop.f32.mrb[0].mxu0
    %v502 = vadd.f32 %v254, %v501
    %v503 = vpop.f32.mrb[0].mxu0
    %v504 = vadd.f32 %v258, %v503
    %v505 = vpop.f32.mrb[0].mxu0
    %v506 = vpop.f32.mrb[0].mxu0
    %507 = vdwg.mxu0
    %508 = vmatprep.subr.bf16.mxu0 %v380
    %509 = vmatpush1.bf16.msra.mxu0 %v379
    %510 = vmatprep.subr.bf16.mxu0 %v392
    %511 = vmatpush1.bf16.msra.mxu0 %v391
    %512 = vmatprep.subr.bf16.mxu0 0
    %513 = vmatpush1.bf16.msra.mxu0 0
    %514 = vmatprep.subr.bf16.mxu0 0
    %515 = vmatpush1.bf16.msra.mxu0 0
    %516 = vmatprep.subr.bf16.mxu0 0
    %517 = vmatpush1.bf16.msra.mxu0 0
    %518 = vmatprep.subr.bf16.mxu0 0
    %519 = vmatpush1.bf16.msra.mxu0 0
    %520 = vmatprep.subr.bf16.mxu0 0
    %521 = vmatpush1.bf16.msra.mxu0 0
    %522 = vmatprep.subr.bf16.mxu0 0
    %523 = vmatpush1.bf16.msra.mxu0 0
    %524 = vmatprep.subr.bf16.mxu0 0
    %525 = vmatpush1.bf16.msra.mxu0 0
    %526 = vmatprep.subr.bf16.mxu0 0
    %527 = vmatpush1.bf16.msra.mxu0 0
    %528 = vmatprep.subr.bf16.mxu0 0
    %529 = vmatpush1.bf16.msra.mxu0 0
    %530 = vmatprep.subr.bf16.mxu0 0
    %531 = vmatpush1.bf16.msra.mxu0 0
    %532 = vmatprep.subr.bf16.mxu0 0
    %533 = vmatpush1.bf16.msra.mxu0 0
    %534 = vmatprep.subr.bf16.mxu0 0
    %535 = vmatpush1.bf16.msra.mxu0 0
    %536 = vmatprep.subr.bf16.mxu0 0
    %537 = vmatpush1.bf16.msra.mxu0 0
    %538 = vmatprep.subr.bf16.mxu0 0
    %539 = vmatpush1.bf16.msra.mxu0 0
    %540 = vmatprep.mubr.bf16.mxu0 0
    %541 = vmatmul.mubr.bf16.gmra.mrb[0].mxu0 %v424
    %v542 = vpop.f32.mrb[0].mxu0
    %v543 = vadd.f32 %v262, %v542
    %v544 = vpop.f32.mrb[0].mxu0
    %v545 = vadd.f32 %v266, %v544
    %v546 = vpop.f32.mrb[0].mxu0
    %v547 = vpop.f32.mrb[0].mxu0
    %548 = vdwg.mxu0
    %549 = vmatprep.subr.bf16.mxu0 %v382
    %550 = vmatpush1.bf16.msra.mxu0 %v381
    %551 = vmatprep.subr.bf16.mxu0 %v394
    %552 = vmatpush1.bf16.msra.mxu0 %v393
    %553 = vmatprep.subr.bf16.mxu0 0
    %554 = vmatpush1.bf16.msra.mxu0 0
    %555 = vmatprep.subr.bf16.mxu0 0
    %556 = vmatpush1.bf16.msra.mxu0 0
    %557 = vmatprep.subr.bf16.mxu0 0
    %558 = vmatpush1.bf16.msra.mxu0 0
    %559 = vmatprep.subr.bf16.mxu0 0
    %560 = vmatpush1.bf16.msra.mxu0 0
    %561 = vmatprep.subr.bf16.mxu0 0
    %562 = vmatpush1.bf16.msra.mxu0 0
    %563 = vmatprep.subr.bf16.mxu0 0
    %564 = vmatpush1.bf16.msra.mxu0 0
    %565 = vmatprep.subr.bf16.mxu0 0
    %566 = vmatpush1.bf16.msra.mxu0 0
    %567 = vmatprep.subr.bf16.mxu0 0
    %568 = vmatpush1.bf16.msra.mxu0 0
    %569 = vmatprep.subr.bf16.mxu0 0
    %570 = vmatpush1.bf16.msra.mxu0 0
    %571 = vmatprep.subr.bf16.mxu0 0
    %572 = vmatpush1.bf16.msra.mxu0 0
    %573 = vmatprep.subr.bf16.mxu0 0
    %574 = vmatpush1.bf16.msra.mxu0 0
    %575 = vmatprep.subr.bf16.mxu0 0
    %576 = vmatpush1.bf16.msra.mxu0 0
    %577 = vmatprep.subr.bf16.mxu0 0
    %578 = vmatpush1.bf16.msra.mxu0 0
    %579 = vmatprep.subr.bf16.mxu0 0
    %580 = vmatpush1.bf16.msra.mxu0 0
    %581 = vmatprep.mubr.bf16.mxu0 0
    %582 = vmatmul.mubr.bf16.gmra.mrb[0].mxu0 %v424
    %v583 = vpop.f32.mrb[0].mxu0
    %v584 = vadd.f32 %v270, %v583
    %v585 = vpop.f32.mrb[0].mxu0
    %v586 = vadd.f32 %v274, %v585
    %v587 = vpop.f32.mrb[0].mxu0
    %v588 = vpop.f32.mrb[0].mxu0
    %589 = vdwg.mxu0
    %590 = vmatprep.subr.bf16.mxu0 %v384
    %591 = vmatpush1.bf16.msra.mxu0 %v383
    %592 = vmatprep.subr.bf16.mxu0 %v396
    %593 = vmatpush1.bf16.msra.mxu0 %v395
    %594 = vmatprep.subr.bf16.mxu0 0
    %595 = vmatpush1.bf16.msra.mxu0 0
    %596 = vmatprep.subr.bf16.mxu0 0
    %597 = vmatpush1.bf16.msra.mxu0 0
    %598 = vmatprep.subr.bf16.mxu0 0
    %599 = vmatpush1.bf16.msra.mxu0 0
    %600 = vmatprep.subr.bf16.mxu0 0
    %601 = vmatpush1.bf16.msra.mxu0 0
    %602 = vmatprep.subr.bf16.mxu0 0
    %603 = vmatpush1.bf16.msra.mxu0 0
    %604 = vmatprep.subr.bf16.mxu0 0
    %605 = vmatpush1.bf16.msra.mxu0 0
    %606 = vmatprep.subr.bf16.mxu0 0
    %607 = vmatpush1.bf16.msra.mxu0 0
    %608 = vmatprep.subr.bf16.mxu0 0
    %609 = vmatpush1.bf16.msra.mxu0 0
    %610 = vmatprep.subr.bf16.mxu0 0
    %611 = vmatpush1.bf16.msra.mxu0 0
    %612 = vmatprep.subr.bf16.mxu0 0
    %613 = vmatpush1.bf16.msra.mxu0 0
    %614 = vmatprep.subr.bf16.mxu0 0
    %615 = vmatpush1.bf16.msra.mxu0 0
    %616 = vmatprep.subr.bf16.mxu0 0
    %617 = vmatpush1.bf16.msra.mxu0 0
    %618 = vmatprep.subr.bf16.mxu0 0
    %619 = vmatpush1.bf16.msra.mxu0 0
    %620 = vmatprep.subr.bf16.mxu0 0
    %621 = vmatpush1.bf16.msra.mxu0 0
    %622 = vmatprep.mubr.bf16.mxu0 0
    %623 = vmatmul.mubr.bf16.gmra.mrb[0].mxu0 %v424
    %v624 = vpop.f32.mrb[0].mxu0
    %v625 = vadd.f32 %v278, %v624
    %v626 = vpop.f32.mrb[0].mxu0
    %v627 = vadd.f32 %v282, %v626
    %v628 = vpop.f32.mrb[0].mxu0
    %v629 = vpop.f32.mrb[0].mxu0
    %630 = vdwg.mxu0
    %631 = vmatprep.subr.bf16.mxu0 %v386
    %632 = vmatpush1.bf16.msra.mxu0 %v385
    %633 = vmatprep.subr.bf16.mxu0 %v398
    %634 = vmatpush1.bf16.msra.mxu0 %v397
    %635 = vmatprep.subr.bf16.mxu0 0
    %636 = vmatpush1.bf16.msra.mxu0 0
    %637 = vmatprep.subr.bf16.mxu0 0
    %638 = vmatpush1.bf16.msra.mxu0 0
    %639 = vmatprep.subr.bf16.mxu0 0
    %640 = vmatpush1.bf16.msra.mxu0 0
    %641 = vmatprep.subr.bf16.mxu0 0
    %642 = vmatpush1.bf16.msra.mxu0 0
    %643 = vmatprep.subr.bf16.mxu0 0
    %644 = vmatpush1.bf16.msra.mxu0 0
    %645 = vmatprep.subr.bf16.mxu0 0
    %646 = vmatpush1.bf16.msra.mxu0 0
    %647 = vmatprep.subr.bf16.mxu0 0
    %648 = vmatpush1.bf16.msra.mxu0 0
    %649 = vmatprep.subr.bf16.mxu0 0
    %650 = vmatpush1.bf16.msra.mxu0 0
    %651 = vmatprep.subr.bf16.mxu0 0
    %652 = vmatpush1.bf16.msra.mxu0 0
    %653 = vmatprep.subr.bf16.mxu0 0
    %654 = vmatpush1.bf16.msra.mxu0 0
    %655 = vmatprep.subr.bf16.mxu0 0
    %656 = vmatpush1.bf16.msra.mxu0 0
    %657 = vmatprep.subr.bf16.mxu0 0
    %658 = vmatpush1.bf16.msra.mxu0 0
    %659 = vmatprep.subr.bf16.mxu0 0
    %660 = vmatpush1.bf16.msra.mxu0 0
    %661 = vmatprep.subr.bf16.mxu0 0
    %662 = vmatpush1.bf16.msra.mxu0 0
    %663 = vmatprep.mubr.bf16.mxu0 0
    %664 = vmatmul.mubr.bf16.gmra.mrb[0].mxu0 %v424
    %v665 = vpop.f32.mrb[0].mxu0
    %v666 = vadd.f32 %v286, %v665
    %v667 = vpop.f32.mrb[0].mxu0
    %v668 = vadd.f32 %v290, %v667
    %v669 = vpop.f32.mrb[0].mxu0
    %v670 = vpop.f32.mrb[0].mxu0
    %671 = vdwg.mxu0
    %v672 = vmax.f32 %v461, 0.0
    %v673 = vmax.f32 %v463, 0.0
    %v674 = vmax.f32 %v502, 0.0
    %v675 = vmax.f32 %v504, 0.0
    %v676 = vmax.f32 %v543, 0.0
    %v677 = vmax.f32 %v545, 0.0
    %v678 = vmax.f32 %v584, 0.0
    %v679 = vmax.f32 %v586, 0.0
    %v680 = vmax.f32 %v625, 0.0
    %v681 = vmax.f32 %v627, 0.0
    %v682 = vmax.f32 %v666, 0.0
    %v683 = vmax.f32 %v668, 0.0
    %v684 = vld [vmem:[#allocation10] sm:$0x77]
    %v685 = vld [vmem:[#allocation10 + $0x8] sm:$0x77]
    %v686 = vld [vmem:[#allocation10 + $0x10] sm:$0x77]
    %v687 = vld [vmem:[#allocation10 + $0x18] sm:$0x77]
    %v688 = vld [vmem:[#allocation10 + $0x20] sm:$0x77]
    %v689 = vld [vmem:[#allocation10 + $0x28] sm:$0x77]
    %v696 = vcombine.high %v684, %v684
    %v697 = vcombine.high %v685, %v685
    %v698 = vcombine.high %v686, %v686
    %v699 = vcombine.high %v687, %v687
    %v700 = vcombine.high %v688, %v688
    %v701 = vcombine.high %v689, %v689
    %v703 = vsel %vm202, %v213, 0
    %vm705 = vcmask 1042432
    %v706 = vsel %vm705, %v684, 0
    %v708 = vsel %vm705, %v696, 0
    %v710 = vsel %vm705, %v685, 0
    %v712 = vsel %vm705, %v697, 0
    %v714 = vsel %vm705, %v686, 0
    %v716 = vsel %vm705, %v698, 0
    %v718 = vsel %vm705, %v687, 0
    %v720 = vsel %vm705, %v699, 0
    %v722 = vsel %vm705, %v688, 0
    %v724 = vsel %vm705, %v700, 0
    %v726 = vsel %vm705, %v689, 0
    %v728 = vsel %vm705, %v701, 0
    %730 = vmatprep.subr.mxu0 %v708
    %731 = vmatpush1.msra.mxu0 %v706
    %732 = vmatprep.subr.mxu0 0.0
    %733 = vmatpush1.msra.mxu0 0.0
    %734 = vmatprep.subr.mxu0 0.0
    %735 = vmatpush1.msra.mxu0 0.0
    %736 = vmatprep.subr.mxu0 0.0
    %737 = vmatpush1.msra.mxu0 0.0
    %738 = vmatprep.subr.mxu0 0.0
    %739 = vmatpush1.msra.mxu0 0.0
    %740 = vmatprep.subr.mxu0 0.0
    %741 = vmatpush1.msra.mxu0 0.0
    %742 = vmatprep.subr.mxu0 0.0
    %743 = vmatpush1.msra.mxu0 0.0
    %744 = vmatprep.subr.mxu0 0.0
    %745 = vmatpush1.msra.mxu0 0.0
    %746 = vmatprep.subr.mxu0 0.0
    %747 = vmatpush1.msra.mxu0 0.0
    %748 = vmatprep.subr.mxu0 0.0
    %749 = vmatpush1.msra.mxu0 0.0
    %750 = vmatprep.subr.mxu0 0.0
    %751 = vmatpush1.msra.mxu0 0.0
    %752 = vmatprep.subr.mxu0 0.0
    %753 = vmatpush1.msra.mxu0 0.0
    %754 = vmatprep.subr.mxu0 0.0
    %755 = vmatpush1.msra.mxu0 0.0
    %756 = vmatprep.subr.mxu0 0.0
    %757 = vmatpush1.msra.mxu0 0.0
    %758 = vmatprep.subr.mxu0 0.0
    %759 = vmatpush1.msra.mxu0 0.0
    %760 = vmatprep.subr.mxu0 0.0
    %761 = vmatpush1.msra.mxu0 0.0
    %762 = vmatprep.subr.mxu0 0.0
    %763 = vmatpush1.msra.mxu0 0.0
    %764 = vmatprep.subr.mxu0 0.0
    %765 = vmatpush1.msra.mxu0 0.0
    %766 = vmatprep.subr.mxu0 0.0
    %767 = vmatpush1.msra.mxu0 0.0
    %768 = vmatprep.subr.mxu0 0.0
    %769 = vmatpush1.msra.mxu0 0.0
    %770 = vmatprep.subr.mxu0 0.0
    %771 = vmatpush1.msra.mxu0 0.0
    %772 = vmatprep.subr.mxu0 0.0
    %773 = vmatpush1.msra.mxu0 0.0
    %774 = vmatprep.subr.mxu0 0.0
    %775 = vmatpush1.msra.mxu0 0.0
    %776 = vmatprep.subr.mxu0 0.0
    %777 = vmatpush1.msra.mxu0 0.0
    %778 = vmatprep.subr.mxu0 0.0
    %779 = vmatpush1.msra.mxu0 0.0
    %780 = vmatprep.subr.mxu0 0.0
    %781 = vmatpush1.msra.mxu0 0.0
    %782 = vmatprep.subr.mxu0 0.0
    %783 = vmatpush1.msra.mxu0 0.0
    %784 = vmatprep.subr.mxu0 0.0
    %785 = vmatpush1.msra.mxu0 0.0
    %786 = vmatprep.subr.mxu0 0.0
    %787 = vmatpush1.msra.mxu0 0.0
    %788 = vmatprep.subr.mxu0 0.0
    %789 = vmatpush1.msra.mxu0 0.0
    %790 = vmatprep.subr.mxu0 0.0
    %791 = vmatpush1.msra.mxu0 0.0
    %792 = vmatprep.subr.mxu0 0.0
    %793 = vmatpush1.msra.mxu0 0.0
    %794 = vmatprep.mubr.f32.mxu0 0.0
    %795 = vmatmul.mubr.f32.gmra.mrb[0].mxu0 %v703
    %v796 = vpop.f32.mrb[0].mxu0
    %v797 = vadd.f32 0.0, %v796
    %v798 = vpop.f32.mrb[0].mxu0
    %v799 = vadd.f32 0.0, %v798
    %800 = vdwg.mxu0
    %801 = vmatprep.subr.mxu0 %v712
    %802 = vmatpush1.msra.mxu0 %v710
    %803 = vmatprep.subr.mxu0 0.0
    %804 = vmatpush1.msra.mxu0 0.0
    %805 = vmatprep.subr.mxu0 0.0
    %806 = vmatpush1.msra.mxu0 0.0
    %807 = vmatprep.subr.mxu0 0.0
    %808 = vmatpush1.msra.mxu0 0.0
    %809 = vmatprep.subr.mxu0 0.0
    %810 = vmatpush1.msra.mxu0 0.0
    %811 = vmatprep.subr.mxu0 0.0
    %812 = vmatpush1.msra.mxu0 0.0
    %813 = vmatprep.subr.mxu0 0.0
    %814 = vmatpush1.msra.mxu0 0.0
    %815 = vmatprep.subr.mxu0 0.0
    %816 = vmatpush1.msra.mxu0 0.0
    %817 = vmatprep.subr.mxu0 0.0
    %818 = vmatpush1.msra.mxu0 0.0
    %819 = vmatprep.subr.mxu0 0.0
    %820 = vmatpush1.msra.mxu0 0.0
    %821 = vmatprep.subr.mxu0 0.0
    %822 = vmatpush1.msra.mxu0 0.0
    %823 = vmatprep.subr.mxu0 0.0
    %824 = vmatpush1.msra.mxu0 0.0
    %825 = vmatprep.subr.mxu0 0.0
    %826 = vmatpush1.msra.mxu0 0.0
    %827 = vmatprep.subr.mxu0 0.0
    %828 = vmatpush1.msra.mxu0 0.0
    %829 = vmatprep.subr.mxu0 0.0
    %830 = vmatpush1.msra.mxu0 0.0
    %831 = vmatprep.subr.mxu0 0.0
    %832 = vmatpush1.msra.mxu0 0.0
    %833 = vmatprep.subr.mxu0 0.0
    %834 = vmatpush1.msra.mxu0 0.0
    %835 = vmatprep.subr.mxu0 0.0
    %836 = vmatpush1.msra.mxu0 0.0
    %837 = vmatprep.subr.mxu0 0.0
    %838 = vmatpush1.msra.mxu0 0.0
    %839 = vmatprep.subr.mxu0 0.0
    %840 = vmatpush1.msra.mxu0 0.0
    %841 = vmatprep.subr.mxu0 0.0
    %842 = vmatpush1.msra.mxu0 0.0
    %843 = vmatprep.subr.mxu0 0.0
    %844 = vmatpush1.msra.mxu0 0.0
    %845 = vmatprep.subr.mxu0 0.0
    %846 = vmatpush1.msra.mxu0 0.0
    %847 = vmatprep.subr.mxu0 0.0
    %848 = vmatpush1.msra.mxu0 0.0
    %849 = vmatprep.subr.mxu0 0.0
    %850 = vmatpush1.msra.mxu0 0.0
    %851 = vmatprep.subr.mxu0 0.0
    %852 = vmatpush1.msra.mxu0 0.0
    %853 = vmatprep.subr.mxu0 0.0
    %854 = vmatpush1.msra.mxu0 0.0
    %855 = vmatprep.subr.mxu0 0.0
    %856 = vmatpush1.msra.mxu0 0.0
    %857 = vmatprep.subr.mxu0 0.0
    %858 = vmatpush1.msra.mxu0 0.0
    %859 = vmatprep.subr.mxu0 0.0
    %860 = vmatpush1.msra.mxu0 0.0
    %861 = vmatprep.subr.mxu0 0.0
    %862 = vmatpush1.msra.mxu0 0.0
    %863 = vmatprep.subr.mxu0 0.0
    %864 = vmatpush1.msra.mxu0 0.0
    %865 = vmatprep.mubr.f32.mxu0 0.0
    %866 = vmatmul.mubr.f32.gmra.mrb[0].mxu0 %v703
    %v867 = vpop.f32.mrb[0].mxu0
    %v868 = vadd.f32 0.0, %v867
    %v869 = vpop.f32.mrb[0].mxu0
    %v870 = vadd.f32 0.0, %v869
    %871 = vdwg.mxu0
    %872 = vmatprep.subr.mxu0 %v716
    %873 = vmatpush1.msra.mxu0 %v714
    %874 = vmatprep.subr.mxu0 0.0
    %875 = vmatpush1.msra.mxu0 0.0
    %876 = vmatprep.subr.mxu0 0.0
    %877 = vmatpush1.msra.mxu0 0.0
    %878 = vmatprep.subr.mxu0 0.0
    %879 = vmatpush1.msra.mxu0 0.0
    %880 = vmatprep.subr.mxu0 0.0
    %881 = vmatpush1.msra.mxu0 0.0
    %882 = vmatprep.subr.mxu0 0.0
    %883 = vmatpush1.msra.mxu0 0.0
    %884 = vmatprep.subr.mxu0 0.0
    %885 = vmatpush1.msra.mxu0 0.0
    %886 = vmatprep.subr.mxu0 0.0
    %887 = vmatpush1.msra.mxu0 0.0
    %888 = vmatprep.subr.mxu0 0.0
    %889 = vmatpush1.msra.mxu0 0.0
    %890 = vmatprep.subr.mxu0 0.0
    %891 = vmatpush1.msra.mxu0 0.0
    %892 = vmatprep.subr.mxu0 0.0
    %893 = vmatpush1.msra.mxu0 0.0
    %894 = vmatprep.subr.mxu0 0.0
    %895 = vmatpush1.msra.mxu0 0.0
    %896 = vmatprep.subr.mxu0 0.0
    %897 = vmatpush1.msra.mxu0 0.0
    %898 = vmatprep.subr.mxu0 0.0
    %899 = vmatpush1.msra.mxu0 0.0
    %900 = vmatprep.subr.mxu0 0.0
    %901 = vmatpush1.msra.mxu0 0.0
    %902 = vmatprep.subr.mxu0 0.0
    %903 = vmatpush1.msra.mxu0 0.0
    %904 = vmatprep.subr.mxu0 0.0
    %905 = vmatpush1.msra.mxu0 0.0
    %906 = vmatprep.subr.mxu0 0.0
    %907 = vmatpush1.msra.mxu0 0.0
    %908 = vmatprep.subr.mxu0 0.0
    %909 = vmatpush1.msra.mxu0 0.0
    %910 = vmatprep.subr.mxu0 0.0
    %911 = vmatpush1.msra.mxu0 0.0
    %912 = vmatprep.subr.mxu0 0.0
    %913 = vmatpush1.msra.mxu0 0.0
    %914 = vmatprep.subr.mxu0 0.0
    %915 = vmatpush1.msra.mxu0 0.0
    %916 = vmatprep.subr.mxu0 0.0
    %917 = vmatpush1.msra.mxu0 0.0
    %918 = vmatprep.subr.mxu0 0.0
    %919 = vmatpush1.msra.mxu0 0.0
    %920 = vmatprep.subr.mxu0 0.0
    %921 = vmatpush1.msra.mxu0 0.0
    %922 = vmatprep.subr.mxu0 0.0
    %923 = vmatpush1.msra.mxu0 0.0
    %924 = vmatprep.subr.mxu0 0.0
    %925 = vmatpush1.msra.mxu0 0.0
    %926 = vmatprep.subr.mxu0 0.0
    %927 = vmatpush1.msra.mxu0 0.0
    %928 = vmatprep.subr.mxu0 0.0
    %929 = vmatpush1.msra.mxu0 0.0
    %930 = vmatprep.subr.mxu0 0.0
    %931 = vmatpush1.msra.mxu0 0.0
    %932 = vmatprep.subr.mxu0 0.0
    %933 = vmatpush1.msra.mxu0 0.0
    %934 = vmatprep.subr.mxu0 0.0
    %935 = vmatpush1.msra.mxu0 0.0
    %936 = vmatprep.mubr.f32.mxu0 0.0
    %937 = vmatmul.mubr.f32.gmra.mrb[0].mxu0 %v703
    %v938 = vpop.f32.mrb[0].mxu0
    %v939 = vadd.f32 0.0, %v938
    %v940 = vpop.f32.mrb[0].mxu0
    %v941 = vadd.f32 0.0, %v940
    %942 = vdwg.mxu0
    %943 = vmatprep.subr.mxu0 %v720
    %944 = vmatpush1.msra.mxu0 %v718
    %945 = vmatprep.subr.mxu0 0.0
    %946 = vmatpush1.msra.mxu0 0.0
    %947 = vmatprep.subr.mxu0 0.0
    %948 = vmatpush1.msra.mxu0 0.0
    %949 = vmatprep.subr.mxu0 0.0
    %950 = vmatpush1.msra.mxu0 0.0
    %951 = vmatprep.subr.mxu0 0.0
    %952 = vmatpush1.msra.mxu0 0.0
    %953 = vmatprep.subr.mxu0 0.0
    %954 = vmatpush1.msra.mxu0 0.0
    %955 = vmatprep.subr.mxu0 0.0
    %956 = vmatpush1.msra.mxu0 0.0
    %957 = vmatprep.subr.mxu0 0.0
    %958 = vmatpush1.msra.mxu0 0.0
    %959 = vmatprep.subr.mxu0 0.0
    %960 = vmatpush1.msra.mxu0 0.0
    %961 = vmatprep.subr.mxu0 0.0
    %962 = vmatpush1.msra.mxu0 0.0
    %963 = vmatprep.subr.mxu0 0.0
    %964 = vmatpush1.msra.mxu0 0.0
    %965 = vmatprep.subr.mxu0 0.0
    %966 = vmatpush1.msra.mxu0 0.0
    %967 = vmatprep.subr.mxu0 0.0
    %968 = vmatpush1.msra.mxu0 0.0
    %969 = vmatprep.subr.mxu0 0.0
    %970 = vmatpush1.msra.mxu0 0.0
    %971 = vmatprep.subr.mxu0 0.0
    %972 = vmatpush1.msra.mxu0 0.0
    %973 = vmatprep.subr.mxu0 0.0
    %974 = vmatpush1.msra.mxu0 0.0
    %975 = vmatprep.subr.mxu0 0.0
    %976 = vmatpush1.msra.mxu0 0.0
    %977 = vmatprep.subr.mxu0 0.0
    %978 = vmatpush1.msra.mxu0 0.0
    %979 = vmatprep.subr.mxu0 0.0
    %980 = vmatpush1.msra.mxu0 0.0
    %981 = vmatprep.subr.mxu0 0.0
    %982 = vmatpush1.msra.mxu0 0.0
    %983 = vmatprep.subr.mxu0 0.0
    %984 = vmatpush1.msra.mxu0 0.0
    %985 = vmatprep.subr.mxu0 0.0
    %986 = vmatpush1.msra.mxu0 0.0
    %987 = vmatprep.subr.mxu0 0.0
    %988 = vmatpush1.msra.mxu0 0.0
    %989 = vmatprep.subr.mxu0 0.0
    %990 = vmatpush1.msra.mxu0 0.0
    %991 = vmatprep.subr.mxu0 0.0
    %992 = vmatpush1.msra.mxu0 0.0
    %993 = vmatprep.subr.mxu0 0.0
    %994 = vmatpush1.msra.mxu0 0.0
    %995 = vmatprep.subr.mxu0 0.0
    %996 = vmatpush1.msra.mxu0 0.0
    %997 = vmatprep.subr.mxu0 0.0
    %998 = vmatpush1.msra.mxu0 0.0
    %999 = vmatprep.subr.mxu0 0.0
    %1000 = vmatpush1.msra.mxu0 0.0
    %1001 = vmatprep.subr.mxu0 0.0
    %1002 = vmatpush1.msra.mxu0 0.0
    %1003 = vmatprep.subr.mxu0 0.0
    %1004 = vmatpush1.msra.mxu0 0.0
    %1005 = vmatprep.subr.mxu0 0.0
    %1006 = vmatpush1.msra.mxu0 0.0
    %1007 = vmatprep.mubr.f32.mxu0 0.0
    %1008 = vmatmul.mubr.f32.gmra.mrb[0].mxu0 %v703
    %v1009 = vpop.f32.mrb[0].mxu0
    %v1010 = vadd.f32 0.0, %v1009
    %v1011 = vpop.f32.mrb[0].mxu0
    %v1012 = vadd.f32 0.0, %v1011
    %1013 = vdwg.mxu0
    %1014 = vmatprep.subr.mxu0 %v724
    %1015 = vmatpush1.msra.mxu0 %v722
    %1016 = vmatprep.subr.mxu0 0.0
    %1017 = vmatpush1.msra.mxu0 0.0
    %1018 = vmatprep.subr.mxu0 0.0
    %1019 = vmatpush1.msra.mxu0 0.0
    %1020 = vmatprep.subr.mxu0 0.0
    %1021 = vmatpush1.msra.mxu0 0.0
    %1022 = vmatprep.subr.mxu0 0.0
    %1023 = vmatpush1.msra.mxu0 0.0
    %1024 = vmatprep.subr.mxu0 0.0
    %1025 = vmatpush1.msra.mxu0 0.0
    %1026 = vmatprep.subr.mxu0 0.0
    %1027 = vmatpush1.msra.mxu0 0.0
    %1028 = vmatprep.subr.mxu0 0.0
    %1029 = vmatpush1.msra.mxu0 0.0
    %1030 = vmatprep.subr.mxu0 0.0
    %1031 = vmatpush1.msra.mxu0 0.0
    %1032 = vmatprep.subr.mxu0 0.0
    %1033 = vmatpush1.msra.mxu0 0.0
    %1034 = vmatprep.subr.mxu0 0.0
    %1035 = vmatpush1.msra.mxu0 0.0
    %1036 = vmatprep.subr.mxu0 0.0
    %1037 = vmatpush1.msra.mxu0 0.0
    %1038 = vmatprep.subr.mxu0 0.0
    %1039 = vmatpush1.msra.mxu0 0.0
    %1040 = vmatprep.subr.mxu0 0.0
    %1041 = vmatpush1.msra.mxu0 0.0
    %1042 = vmatprep.subr.mxu0 0.0
    %1043 = vmatpush1.msra.mxu0 0.0
    %1044 = vmatprep.subr.mxu0 0.0
    %1045 = vmatpush1.msra.mxu0 0.0
    %1046 = vmatprep.subr.mxu0 0.0
    %1047 = vmatpush1.msra.mxu0 0.0
    %1048 = vmatprep.subr.mxu0 0.0
    %1049 = vmatpush1.msra.mxu0 0.0
    %1050 = vmatprep.subr.mxu0 0.0
    %1051 = vmatpush1.msra.mxu0 0.0
    %1052 = vmatprep.subr.mxu0 0.0
    %1053 = vmatpush1.msra.mxu0 0.0
    %1054 = vmatprep.subr.mxu0 0.0
    %1055 = vmatpush1.msra.mxu0 0.0
    %1056 = vmatprep.subr.mxu0 0.0
    %1057 = vmatpush1.msra.mxu0 0.0
    %1058 = vmatprep.subr.mxu0 0.0
    %1059 = vmatpush1.msra.mxu0 0.0
    %1060 = vmatprep.subr.mxu0 0.0
    %1061 = vmatpush1.msra.mxu0 0.0
    %1062 = vmatprep.subr.mxu0 0.0
    %1063 = vmatpush1.msra.mxu0 0.0
    %1064 = vmatprep.subr.mxu0 0.0
    %1065 = vmatpush1.msra.mxu0 0.0
    %1066 = vmatprep.subr.mxu0 0.0
    %1067 = vmatpush1.msra.mxu0 0.0
    %1068 = vmatprep.subr.mxu0 0.0
    %1069 = vmatpush1.msra.mxu0 0.0
    %1070 = vmatprep.subr.mxu0 0.0
    %1071 = vmatpush1.msra.mxu0 0.0
    %1072 = vmatprep.subr.mxu0 0.0
    %1073 = vmatpush1.msra.mxu0 0.0
    %1074 = vmatprep.subr.mxu0 0.0
    %1075 = vmatpush1.msra.mxu0 0.0
    %1076 = vmatprep.subr.mxu0 0.0
    %1077 = vmatpush1.msra.mxu0 0.0
    %1078 = vmatprep.mubr.f32.mxu0 0.0
    %1079 = vmatmul.mubr.f32.gmra.mrb[0].mxu0 %v703
    %v1080 = vpop.f32.mrb[0].mxu0
    %v1081 = vadd.f32 0.0, %v1080
    %v1082 = vpop.f32.mrb[0].mxu0
    %v1083 = vadd.f32 0.0, %v1082
    %1084 = vdwg.mxu0
    %1085 = vmatprep.subr.mxu0 %v728
    %1086 = vmatpush1.msra.mxu0 %v726
    %1087 = vmatprep.subr.mxu0 0.0
    %1088 = vmatpush1.msra.mxu0 0.0
    %1089 = vmatprep.subr.mxu0 0.0
    %1090 = vmatpush1.msra.mxu0 0.0
    %1091 = vmatprep.subr.mxu0 0.0
    %1092 = vmatpush1.msra.mxu0 0.0
    %1093 = vmatprep.subr.mxu0 0.0
    %1094 = vmatpush1.msra.mxu0 0.0
    %1095 = vmatprep.subr.mxu0 0.0
    %1096 = vmatpush1.msra.mxu0 0.0
    %1097 = vmatprep.subr.mxu0 0.0
    %1098 = vmatpush1.msra.mxu0 0.0
    %1099 = vmatprep.subr.mxu0 0.0
    %1100 = vmatpush1.msra.mxu0 0.0
    %1101 = vmatprep.subr.mxu0 0.0
    %1102 = vmatpush1.msra.mxu0 0.0
    %1103 = vmatprep.subr.mxu0 0.0
    %1104 = vmatpush1.msra.mxu0 0.0
    %1105 = vmatprep.subr.mxu0 0.0
    %1106 = vmatpush1.msra.mxu0 0.0
    %1107 = vmatprep.subr.mxu0 0.0
    %1108 = vmatpush1.msra.mxu0 0.0
    %1109 = vmatprep.subr.mxu0 0.0
    %1110 = vmatpush1.msra.mxu0 0.0
    %1111 = vmatprep.subr.mxu0 0.0
    %1112 = vmatpush1.msra.mxu0 0.0
    %1113 = vmatprep.subr.mxu0 0.0
    %1114 = vmatpush1.msra.mxu0 0.0
    %1115 = vmatprep.subr.mxu0 0.0
    %1116 = vmatpush1.msra.mxu0 0.0
    %1117 = vmatprep.subr.mxu0 0.0
    %1118 = vmatpush1.msra.mxu0 0.0
    %1119 = vmatprep.subr.mxu0 0.0
    %1120 = vmatpush1.msra.mxu0 0.0
    %1121 = vmatprep.subr.mxu0 0.0
    %1122 = vmatpush1.msra.mxu0 0.0
    %1123 = vmatprep.subr.mxu0 0.0
    %1124 = vmatpush1.msra.mxu0 0.0
    %1125 = vmatprep.subr.mxu0 0.0
    %1126 = vmatpush1.msra.mxu0 0.0
    %1127 = vmatprep.subr.mxu0 0.0
    %1128 = vmatpush1.msra.mxu0 0.0
    %1129 = vmatprep.subr.mxu0 0.0
    %1130 = vmatpush1.msra.mxu0 0.0
    %1131 = vmatprep.subr.mxu0 0.0
    %1132 = vmatpush1.msra.mxu0 0.0
    %1133 = vmatprep.subr.mxu0 0.0
    %1134 = vmatpush1.msra.mxu0 0.0
    %1135 = vmatprep.subr.mxu0 0.0
    %1136 = vmatpush1.msra.mxu0 0.0
    %1137 = vmatprep.subr.mxu0 0.0
    %1138 = vmatpush1.msra.mxu0 0.0
    %1139 = vmatprep.subr.mxu0 0.0
    %1140 = vmatpush1.msra.mxu0 0.0
    %1141 = vmatprep.subr.mxu0 0.0
    %1142 = vmatpush1.msra.mxu0 0.0
    %1143 = vmatprep.subr.mxu0 0.0
    %1144 = vmatpush1.msra.mxu0 0.0
    %1145 = vmatprep.subr.mxu0 0.0
    %1146 = vmatpush1.msra.mxu0 0.0
    %1147 = vmatprep.subr.mxu0 0.0
    %1148 = vmatpush1.msra.mxu0 0.0
    %1149 = vmatprep.mubr.f32.mxu0 0.0
    %1150 = vmatmul.mubr.f32.gmra.mrb[0].mxu0 %v703
    %v1151 = vpop.f32.mrb[0].mxu0
    %v1152 = vadd.f32 0.0, %v1151
    %v1153 = vpop.f32.mrb[0].mxu0
    %v1154 = vadd.f32 0.0, %v1153
    %1155 = vdwg.mxu0
    %v1156 = vmul.f32 %v672, %v797
    %v1157 = vmul.f32 %v673, %v799
    %v1158 = vmul.f32 %v674, %v868
    %v1159 = vmul.f32 %v675, %v870
    %v1160 = vmul.f32 %v676, %v939
    %v1161 = vmul.f32 %v677, %v941
    %v1162 = vmul.f32 %v678, %v1010
    %v1163 = vmul.f32 %v679, %v1012
    %v1164 = vmul.f32 %v680, %v1081
    %v1165 = vmul.f32 %v681, %v1083
    %v1166 = vmul.f32 %v682, %v1152
    %v1167 = vmul.f32 %v683, %v1154
    %v1168 = vpack.c.bf16 %v1156, %v1156
    %v1169 = vpack.c.bf16 %v1157, %v1157
    %v1170 = vpack.c.bf16 %v1158, %v1158
    %v1171 = vpack.c.bf16 %v1159, %v1159
    %v1172 = vpack.c.bf16 %v1160, %v1160
    %v1173 = vpack.c.bf16 %v1161, %v1161
    %v1174 = vpack.c.bf16 %v1162, %v1162
    %v1175 = vpack.c.bf16 %v1163, %v1163
    %v1176 = vpack.c.bf16 %v1164, %v1164
    %v1177 = vpack.c.bf16 %v1165, %v1165
    %v1178 = vpack.c.bf16 %v1166, %v1166
    %v1179 = vpack.c.bf16 %v1167, %v1167
    %v1180 = vld [vmem:[#allocation11] sm:$0xff]
    %v1181 = vld [vmem:[#allocation11 + $0x8] sm:$0xff]
    %v1182 = vld [vmem:[#allocation11 + $0x10] sm:$0xff]
    %v1183 = vld [vmem:[#allocation11 + $0x18] sm:$0xff]
    %v1184 = vld [vmem:[#allocation11 + $0x20] sm:$0xff]
    %v1185 = vld [vmem:[#allocation11 + $0x28] sm:$0xff]
    %v1186 = vld [vmem:[#allocation11 + $0x30] sm:$0xff]
    %v1187 = vld [vmem:[#allocation11 + $0x38] sm:$0xff]
    %v1188 = vld [vmem:[#allocation11 + $0x40] sm:$0xff]
    %v1189 = vld [vmem:[#allocation11 + $0x48] sm:$0xff]
    %v1190 = vld [vmem:[#allocation11 + $0x50] sm:$0xff]
    %v1191 = vld [vmem:[#allocation11 + $0x58] sm:$0xff]
    %v1192 = vld [vmem:[#allocation11 + $0x60] sm:$0xff]
    %v1193 = vld [vmem:[#allocation11 + $0x68] sm:$0xff]
    %v1194 = vld [vmem:[#allocation11 + $0x70] sm:$0xff]
    %v1195 = vld [vmem:[#allocation11 + $0x78] sm:$0xff]
    %v1196 = vld [vmem:[#allocation11 + $0x80] sm:$0xff]
    %v1197 = vld [vmem:[#allocation11 + $0x88] sm:$0xff]
    %v1198 = vld [vmem:[#allocation11 + $0x90] sm:$0xff]
    %v1199 = vld [vmem:[#allocation11 + $0x98] sm:$0xff]
    %v1200 = vld [vmem:[#allocation11 + $0xa0] sm:$0xff]
    %v1201 = vld [vmem:[#allocation11 + $0xa8] sm:$0xff]
    %v1202 = vld [vmem:[#allocation11 + $0xb0] sm:$0xff]
    %v1203 = vld [vmem:[#allocation11 + $0xb8] sm:$0xff]
    %v1204 = vld [vmem:[#allocation11 + $0xc0] sm:$0xff]
    %v1205 = vld [vmem:[#allocation11 + $0xc8] sm:$0xff]
    %v1206 = vld [vmem:[#allocation11 + $0xd0] sm:$0xff]
    %v1207 = vld [vmem:[#allocation11 + $0xd8] sm:$0xff]
    %v1208 = vld [vmem:[#allocation11 + $0xe0] sm:$0xff]
    %v1209 = vld [vmem:[#allocation11 + $0xe8] sm:$0xff]
    %v1210 = vld [vmem:[#allocation11 + $0xf0] sm:$0xff]
    %v1211 = vld [vmem:[#allocation11 + $0xf8] sm:$0xff]
    %v1212 = vld [vmem:[#allocation11 + $0x100] sm:$0xff]
    %v1213 = vld [vmem:[#allocation11 + $0x108] sm:$0xff]
    %v1214 = vld [vmem:[#allocation11 + $0x110] sm:$0xff]
    %v1215 = vld [vmem:[#allocation11 + $0x118] sm:$0xff]
    %v1216 = vld [vmem:[#allocation11 + $0x120] sm:$0xff]
    %v1217 = vld [vmem:[#allocation11 + $0x128] sm:$0xff]
    %v1218 = vld [vmem:[#allocation11 + $0x130] sm:$0xff]
    %v1219 = vld [vmem:[#allocation11 + $0x138] sm:$0xff]
    %v1220 = vld [vmem:[#allocation11 + $0x140] sm:$0xff]
    %v1221 = vld [vmem:[#allocation11 + $0x148] sm:$0xff]
    %v1222 = vld [vmem:[#allocation11 + $0x150] sm:$0xff]
    %v1223 = vld [vmem:[#allocation11 + $0x158] sm:$0xff]
    %v1224 = vld [vmem:[#allocation11 + $0x160] sm:$0xff]
    %v1225 = vld [vmem:[#allocation11 + $0x168] sm:$0xff]
    %v1226 = vld [vmem:[#allocation11 + $0x170] sm:$0xff]
    %v1227 = vld [vmem:[#allocation11 + $0x178] sm:$0xff]
    %v1228 = vld [vmem:[#allocation11 + $0x180] sm:$0xff]
    %v1229 = vld [vmem:[#allocation11 + $0x188] sm:$0xff]
    %v1230 = vld [vmem:[#allocation11 + $0x190] sm:$0xff]
    %v1231 = vld [vmem:[#allocation11 + $0x198] sm:$0xff]
    %v1232 = vld [vmem:[#allocation11 + $0x1a0] sm:$0xff]
    %v1233 = vld [vmem:[#allocation11 + $0x1a8] sm:$0xff]
    %v1234 = vld [vmem:[#allocation11 + $0x1b0] sm:$0xff]
    %v1235 = vld [vmem:[#allocation11 + $0x1b8] sm:$0xff]
    %v1236 = vld [vmem:[#allocation11 + $0x1c0] sm:$0xff]
    %v1237 = vld [vmem:[#allocation11 + $0x1c8] sm:$0xff]
    %v1238 = vld [vmem:[#allocation11 + $0x1d0] sm:$0xff]
    %v1239 = vld [vmem:[#allocation11 + $0x1d8] sm:$0xff]
    %v1240 = vld [vmem:[#allocation11 + $0x1e0] sm:$0xff]
    %v1241 = vld [vmem:[#allocation11 + $0x1e8] sm:$0xff]
    %v1242 = vld [vmem:[#allocation11 + $0x1f0] sm:$0xff]
    %v1243 = vld [vmem:[#allocation11 + $0x1f8] sm:$0xff]
    %v1244 = vld [vmem:[#allocation11 + $0x200] sm:$0xff]
    %v1245 = vld [vmem:[#allocation11 + $0x208] sm:$0xff]
    %v1246 = vld [vmem:[#allocation11 + $0x210] sm:$0xff]
    %v1247 = vld [vmem:[#allocation11 + $0x218] sm:$0xff]
    %v1248 = vld [vmem:[#allocation11 + $0x220] sm:$0xff]
    %v1249 = vld [vmem:[#allocation11 + $0x228] sm:$0xff]
    %v1250 = vld [vmem:[#allocation11 + $0x230] sm:$0xff]
    %v1251 = vld [vmem:[#allocation11 + $0x238] sm:$0xff]
    %v1252 = vld [vmem:[#allocation11 + $0x240] sm:$0xff]
    %v1253 = vld [vmem:[#allocation11 + $0x248] sm:$0xff]
    %v1254 = vld [vmem:[#allocation11 + $0x250] sm:$0xff]
    %v1255 = vld [vmem:[#allocation11 + $0x258] sm:$0xff]
    %v1256 = vld [vmem:[#allocation11 + $0x260] sm:$0xff]
    %v1257 = vld [vmem:[#allocation11 + $0x268] sm:$0xff]
    %v1258 = vld [vmem:[#allocation11 + $0x270] sm:$0xff]
    %v1259 = vld [vmem:[#allocation11 + $0x278] sm:$0xff]
    %v1260 = vld [vmem:[#allocation11 + $0x280] sm:$0xff]
    %v1261 = vld [vmem:[#allocation11 + $0x288] sm:$0xff]
    %v1262 = vld [vmem:[#allocation11 + $0x290] sm:$0xff]
    %v1263 = vld [vmem:[#allocation11 + $0x298] sm:$0xff]
    %v1264 = vld [vmem:[#allocation11 + $0x2a0] sm:$0xff]
    %v1265 = vld [vmem:[#allocation11 + $0x2a8] sm:$0xff]
    %v1266 = vld [vmem:[#allocation11 + $0x2b0] sm:$0xff]
    %v1267 = vld [vmem:[#allocation11 + $0x2b8] sm:$0xff]
    %v1268 = vld [vmem:[#allocation11 + $0x2c0] sm:$0xff]
    %v1269 = vld [vmem:[#allocation11 + $0x2c8] sm:$0xff]
    %v1270 = vld [vmem:[#allocation11 + $0x2d0] sm:$0xff]
    %v1271 = vld [vmem:[#allocation11 + $0x2d8] sm:$0xff]
    %v1272 = vld [vmem:[#allocation11 + $0x2e0] sm:$0xff]
    %v1273 = vld [vmem:[#allocation11 + $0x2e8] sm:$0xff]
    %v1274 = vld [vmem:[#allocation11 + $0x2f0] sm:$0xff]
    %v1275 = vld [vmem:[#allocation11 + $0x2f8] sm:$0xff]
    %v1276 = vld [vmem:[#allocation11 + $0x300] sm:$0xff]
    %v1277 = vld [vmem:[#allocation11 + $0x308] sm:$0xff]
    %v1278 = vld [vmem:[#allocation11 + $0x310] sm:$0xff]
    %v1279 = vld [vmem:[#allocation11 + $0x318] sm:$0xff]
    %v1280 = vld [vmem:[#allocation11 + $0x320] sm:$0xff]
    %v1281 = vld [vmem:[#allocation11 + $0x328] sm:$0xff]
    %v1282 = vld [vmem:[#allocation11 + $0x330] sm:$0xff]
    %v1283 = vld [vmem:[#allocation11 + $0x338] sm:$0xff]
    %v1284 = vld [vmem:[#allocation11 + $0x340] sm:$0xff]
    %v1285 = vld [vmem:[#allocation11 + $0x348] sm:$0xff]
    %v1286 = vld [vmem:[#allocation11 + $0x350] sm:$0xff]
    %v1287 = vld [vmem:[#allocation11 + $0x358] sm:$0xff]
    %v1288 = vld [vmem:[#allocation11 + $0x360] sm:$0xff]
    %v1289 = vld [vmem:[#allocation11 + $0x368] sm:$0xff]
    %v1290 = vld [vmem:[#allocation11 + $0x370] sm:$0xff]
    %v1291 = vld [vmem:[#allocation11 + $0x378] sm:$0xff]
    %v1292 = vld [vmem:[#allocation11 + $0x380] sm:$0xff]
    %v1293 = vld [vmem:[#allocation11 + $0x388] sm:$0xff]
    %v1294 = vld [vmem:[#allocation11 + $0x390] sm:$0xff]
    %v1295 = vld [vmem:[#allocation11 + $0x398] sm:$0xff]
    %v1296 = vld [vmem:[#allocation11 + $0x3a0] sm:$0xff]
    %v1297 = vld [vmem:[#allocation11 + $0x3a8] sm:$0xff]
    %v1298 = vld [vmem:[#allocation11 + $0x3b0] sm:$0xff]
    %v1299 = vld [vmem:[#allocation11 + $0x3b8] sm:$0xff]
    %v1300 = vld [vmem:[#allocation11 + $0x3c0] sm:$0xff]
    %v1301 = vld [vmem:[#allocation11 + $0x3c8] sm:$0xff]
    %v1302 = vld [vmem:[#allocation11 + $0x3d0] sm:$0xff]
    %v1303 = vld [vmem:[#allocation11 + $0x3d8] sm:$0xff]
    %v1304 = vld [vmem:[#allocation11 + $0x3e0] sm:$0xff]
    %v1305 = vld [vmem:[#allocation11 + $0x3e8] sm:$0xff]
    %v1306 = vld [vmem:[#allocation11 + $0x3f0] sm:$0xff]
    %v1307 = vld [vmem:[#allocation11 + $0x3f8] sm:$0xff]
    %v1308 = vld [vmem:[#allocation11 + $0x400] sm:$0xff]
    %v1309 = vld [vmem:[#allocation11 + $0x408] sm:$0xff]
    %v1310 = vld [vmem:[#allocation11 + $0x410] sm:$0xff]
    %v1311 = vld [vmem:[#allocation11 + $0x418] sm:$0xff]
    %v1312 = vld [vmem:[#allocation11 + $0x420] sm:$0xff]
    %v1313 = vld [vmem:[#allocation11 + $0x428] sm:$0xff]
    %v1314 = vld [vmem:[#allocation11 + $0x430] sm:$0xff]
    %v1315 = vld [vmem:[#allocation11 + $0x438] sm:$0xff]
    %v1316 = vld [vmem:[#allocation11 + $0x440] sm:$0xff]
    %v1317 = vld [vmem:[#allocation11 + $0x448] sm:$0xff]
    %v1318 = vld [vmem:[#allocation11 + $0x450] sm:$0xff]
    %v1319 = vld [vmem:[#allocation11 + $0x458] sm:$0xff]
    %v1320 = vld [vmem:[#allocation11 + $0x460] sm:$0xff]
    %v1321 = vld [vmem:[#allocation11 + $0x468] sm:$0xff]
    %v1322 = vld [vmem:[#allocation11 + $0x470] sm:$0xff]
    %v1323 = vld [vmem:[#allocation11 + $0x478] sm:$0xff]
    %v1324 = vld [vmem:[#allocation11 + $0x480] sm:$0xff]
    %v1325 = vld [vmem:[#allocation11 + $0x488] sm:$0xff]
    %v1326 = vld [vmem:[#allocation11 + $0x490] sm:$0xff]
    %v1327 = vld [vmem:[#allocation11 + $0x498] sm:$0xff]
    %v1328 = vld [vmem:[#allocation11 + $0x4a0] sm:$0xff]
    %v1329 = vld [vmem:[#allocation11 + $0x4a8] sm:$0xff]
    %v1330 = vld [vmem:[#allocation11 + $0x4b0] sm:$0xff]
    %v1331 = vld [vmem:[#allocation11 + $0x4b8] sm:$0xff]
    %v1332 = vld [vmem:[#allocation11 + $0x4c0] sm:$0xff]
    %v1333 = vld [vmem:[#allocation11 + $0x4c8] sm:$0xff]
    %v1334 = vld [vmem:[#allocation11 + $0x4d0] sm:$0xff]
    %v1335 = vld [vmem:[#allocation11 + $0x4d8] sm:$0xff]
    %v1336 = vld [vmem:[#allocation11 + $0x4e0] sm:$0xff]
    %v1337 = vld [vmem:[#allocation11 + $0x4e8] sm:$0xff]
    %v1338 = vld [vmem:[#allocation11 + $0x4f0] sm:$0xff]
    %v1339 = vld [vmem:[#allocation11 + $0x4f8] sm:$0xff]
    %v1340 = vld [vmem:[#allocation11 + $0x500] sm:$0xff]
    %v1341 = vld [vmem:[#allocation11 + $0x508] sm:$0xff]
    %v1342 = vld [vmem:[#allocation11 + $0x510] sm:$0xff]
    %v1343 = vld [vmem:[#allocation11 + $0x518] sm:$0xff]
    %v1344 = vld [vmem:[#allocation11 + $0x520] sm:$0xff]
    %v1345 = vld [vmem:[#allocation11 + $0x528] sm:$0xff]
    %v1346 = vld [vmem:[#allocation11 + $0x530] sm:$0xff]
    %v1347 = vld [vmem:[#allocation11 + $0x538] sm:$0xff]
    %v1348 = vld [vmem:[#allocation11 + $0x540] sm:$0xff]
    %v1349 = vld [vmem:[#allocation11 + $0x548] sm:$0xff]
    %v1350 = vld [vmem:[#allocation11 + $0x550] sm:$0xff]
    %v1351 = vld [vmem:[#allocation11 + $0x558] sm:$0xff]
    %v1352 = vld [vmem:[#allocation11 + $0x560] sm:$0xff]
    %v1353 = vld [vmem:[#allocation11 + $0x568] sm:$0xff]
    %v1354 = vld [vmem:[#allocation11 + $0x570] sm:$0xff]
    %v1355 = vld [vmem:[#allocation11 + $0x578] sm:$0xff]
    %v1356 = vld [vmem:[#allocation11 + $0x580] sm:$0xff]
    %v1357 = vld [vmem:[#allocation11 + $0x588] sm:$0xff]
    %v1358 = vld [vmem:[#allocation11 + $0x590] sm:$0xff]
    %v1359 = vld [vmem:[#allocation11 + $0x598] sm:$0xff]
    %v1360 = vld [vmem:[#allocation11 + $0x5a0] sm:$0xff]
    %v1361 = vld [vmem:[#allocation11 + $0x5a8] sm:$0xff]
    %v1362 = vld [vmem:[#allocation11 + $0x5b0] sm:$0xff]
    %v1363 = vld [vmem:[#allocation11 + $0x5b8] sm:$0xff]
    %v1364 = vld [vmem:[#allocation11 + $0x5c0] sm:$0xff]
    %v1365 = vld [vmem:[#allocation11 + $0x5c8] sm:$0xff]
    %v1366 = vld [vmem:[#allocation11 + $0x5d0] sm:$0xff]
    %v1367 = vld [vmem:[#allocation11 + $0x5d8] sm:$0xff]
    %v1368 = vld [vmem:[#allocation11 + $0x5e0] sm:$0xff]
    %v1369 = vld [vmem:[#allocation11 + $0x5e8] sm:$0xff]
    %v1370 = vld [vmem:[#allocation11 + $0x5f0] sm:$0xff]
    %v1371 = vld [vmem:[#allocation11 + $0x5f8] sm:$0xff]
    %v1372 = vld [vmem:[#allocation11 + $0x600] sm:$0xff]
    %v1373 = vld [vmem:[#allocation11 + $0x608] sm:$0xff]
    %v1374 = vld [vmem:[#allocation11 + $0x610] sm:$0xff]
    %v1375 = vld [vmem:[#allocation11 + $0x618] sm:$0xff]
    %v1376 = vld [vmem:[#allocation11 + $0x620] sm:$0xff]
    %v1377 = vld [vmem:[#allocation11 + $0x628] sm:$0xff]
    %v1378 = vld [vmem:[#allocation11 + $0x630] sm:$0xff]
    %v1379 = vld [vmem:[#allocation11 + $0x638] sm:$0xff]
    %v1380 = vld [vmem:[#allocation11 + $0x640] sm:$0xff]
    %v1381 = vld [vmem:[#allocation11 + $0x648] sm:$0xff]
    %v1382 = vld [vmem:[#allocation11 + $0x650] sm:$0xff]
    %v1383 = vld [vmem:[#allocation11 + $0x658] sm:$0xff]
    %v1384 = vld [vmem:[#allocation11 + $0x660] sm:$0xff]
    %v1385 = vld [vmem:[#allocation11 + $0x668] sm:$0xff]
    %v1386 = vld [vmem:[#allocation11 + $0x670] sm:$0xff]
    %v1387 = vld [vmem:[#allocation11 + $0x678] sm:$0xff]
    %v1388 = vld [vmem:[#allocation11 + $0x680] sm:$0xff]
    %v1389 = vld [vmem:[#allocation11 + $0x688] sm:$0xff]
    %v1390 = vld [vmem:[#allocation11 + $0x690] sm:$0xff]
    %v1391 = vld [vmem:[#allocation11 + $0x698] sm:$0xff]
    %v1392 = vld [vmem:[#allocation11 + $0x6a0] sm:$0xff]
    %v1393 = vld [vmem:[#allocation11 + $0x6a8] sm:$0xff]
    %v1394 = vld [vmem:[#allocation11 + $0x6b0] sm:$0xff]
    %v1395 = vld [vmem:[#allocation11 + $0x6b8] sm:$0xff]
    %v1396 = vld [vmem:[#allocation11 + $0x6c0] sm:$0xff]
    %v1397 = vld [vmem:[#allocation11 + $0x6c8] sm:$0xff]
    %v1398 = vld [vmem:[#allocation11 + $0x6d0] sm:$0xff]
    %v1399 = vld [vmem:[#allocation11 + $0x6d8] sm:$0xff]
    %v1400 = vld [vmem:[#allocation11 + $0x6e0] sm:$0xff]
    %v1401 = vld [vmem:[#allocation11 + $0x6e8] sm:$0xff]
    %v1402 = vld [vmem:[#allocation11 + $0x6f0] sm:$0xff]
    %v1403 = vld [vmem:[#allocation11 + $0x6f8] sm:$0xff]
    %v1404 = vld [vmem:[#allocation11 + $0x700] sm:$0xff]
    %v1405 = vld [vmem:[#allocation11 + $0x708] sm:$0xff]
    %v1406 = vld [vmem:[#allocation11 + $0x710] sm:$0xff]
    %v1407 = vld [vmem:[#allocation11 + $0x718] sm:$0xff]
    %v1408 = vld [vmem:[#allocation11 + $0x720] sm:$0xff]
    %v1409 = vld [vmem:[#allocation11 + $0x728] sm:$0xff]
    %v1410 = vld [vmem:[#allocation11 + $0x730] sm:$0xff]
    %v1411 = vld [vmem:[#allocation11 + $0x738] sm:$0xff]
    %v1412 = vld [vmem:[#allocation11 + $0x740] sm:$0xff]
    %v1413 = vld [vmem:[#allocation11 + $0x748] sm:$0xff]
    %v1414 = vld [vmem:[#allocation11 + $0x750] sm:$0xff]
    %v1415 = vld [vmem:[#allocation11 + $0x758] sm:$0xff]
    %v1416 = vld [vmem:[#allocation11 + $0x760] sm:$0xff]
    %v1417 = vld [vmem:[#allocation11 + $0x768] sm:$0xff]
    %v1418 = vld [vmem:[#allocation11 + $0x770] sm:$0xff]
    %v1419 = vld [vmem:[#allocation11 + $0x778] sm:$0xff]
    %v1420 = vld [vmem:[#allocation11 + $0x780] sm:$0xff]
    %v1421 = vld [vmem:[#allocation11 + $0x788] sm:$0xff]
    %v1422 = vld [vmem:[#allocation11 + $0x790] sm:$0xff]
    %v1423 = vld [vmem:[#allocation11 + $0x798] sm:$0xff]
    %v1424 = vld [vmem:[#allocation11 + $0x7a0] sm:$0xff]
    %v1425 = vld [vmem:[#allocation11 + $0x7a8] sm:$0xff]
    %v1426 = vld [vmem:[#allocation11 + $0x7b0] sm:$0xff]
    %v1427 = vld [vmem:[#allocation11 + $0x7b8] sm:$0xff]
    %v1428 = vld [vmem:[#allocation11 + $0x7c0] sm:$0xff]
    %v1429 = vld [vmem:[#allocation11 + $0x7c8] sm:$0xff]
    %v1430 = vld [vmem:[#allocation11 + $0x7d0] sm:$0xff]
    %v1431 = vld [vmem:[#allocation11 + $0x7d8] sm:$0xff]
    %v1432 = vld [vmem:[#allocation11 + $0x7e0] sm:$0xff]
    %v1433 = vld [vmem:[#allocation11 + $0x7e8] sm:$0xff]
    %v1434 = vld [vmem:[#allocation11 + $0x7f0] sm:$0xff]
    %v1435 = vld [vmem:[#allocation11 + $0x7f8] sm:$0xff]
    %v1436 = vld [vmem:[#allocation11 + $0x800] sm:$0xff]
    %v1437 = vld [vmem:[#allocation11 + $0x808] sm:$0xff]
    %v1438 = vld [vmem:[#allocation11 + $0x810] sm:$0xff]
    %v1439 = vld [vmem:[#allocation11 + $0x818] sm:$0xff]
    %v1440 = vld [vmem:[#allocation11 + $0x820] sm:$0xff]
    %v1441 = vld [vmem:[#allocation11 + $0x828] sm:$0xff]
    %v1442 = vld [vmem:[#allocation11 + $0x830] sm:$0xff]
    %v1443 = vld [vmem:[#allocation11 + $0x838] sm:$0xff]
    %v1444 = vld [vmem:[#allocation11 + $0x840] sm:$0xff]
    %v1445 = vld [vmem:[#allocation11 + $0x848] sm:$0xff]
    %v1446 = vld [vmem:[#allocation11 + $0x850] sm:$0xff]
    %v1447 = vld [vmem:[#allocation11 + $0x858] sm:$0xff]
    %v1448 = vld [vmem:[#allocation11 + $0x860] sm:$0xff]
    %v1449 = vld [vmem:[#allocation11 + $0x868] sm:$0xff]
    %v1450 = vld [vmem:[#allocation11 + $0x870] sm:$0xff]
    %v1451 = vld [vmem:[#allocation11 + $0x878] sm:$0xff]
    %v1452 = vld [vmem:[#allocation11 + $0x880] sm:$0xff]
    %v1453 = vld [vmem:[#allocation11 + $0x888] sm:$0xff]
    %v1454 = vld [vmem:[#allocation11 + $0x890] sm:$0xff]
    %v1455 = vld [vmem:[#allocation11 + $0x898] sm:$0xff]
    %v1456 = vld [vmem:[#allocation11 + $0x8a0] sm:$0xff]
    %v1457 = vld [vmem:[#allocation11 + $0x8a8] sm:$0xff]
    %v1458 = vld [vmem:[#allocation11 + $0x8b0] sm:$0xff]
    %v1459 = vld [vmem:[#allocation11 + $0x8b8] sm:$0xff]
    %v1460 = vld [vmem:[#allocation11 + $0x8c0] sm:$0xff]
    %v1461 = vld [vmem:[#allocation11 + $0x8c8] sm:$0xff]
    %v1462 = vld [vmem:[#allocation11 + $0x8d0] sm:$0xff]
    %v1463 = vld [vmem:[#allocation11 + $0x8d8] sm:$0xff]
    %v1464 = vld [vmem:[#allocation11 + $0x8e0] sm:$0xff]
    %v1465 = vld [vmem:[#allocation11 + $0x8e8] sm:$0xff]
    %v1466 = vld [vmem:[#allocation11 + $0x8f0] sm:$0xff]
    %v1467 = vld [vmem:[#allocation11 + $0x8f8] sm:$0xff]
    %v1468 = vld [vmem:[#allocation11 + $0x900] sm:$0xff]
    %v1469 = vld [vmem:[#allocation11 + $0x908] sm:$0xff]
    %v1470 = vld [vmem:[#allocation11 + $0x910] sm:$0xff]
    %v1471 = vld [vmem:[#allocation11 + $0x918] sm:$0xff]
    %v1472 = vld [vmem:[#allocation11 + $0x920] sm:$0xff]
    %v1473 = vld [vmem:[#allocation11 + $0x928] sm:$0xff]
    %v1474 = vld [vmem:[#allocation11 + $0x930] sm:$0xff]
    %v1475 = vld [vmem:[#allocation11 + $0x938] sm:$0xff]
    %v1476 = vld [vmem:[#allocation11 + $0x940] sm:$0xff]
    %v1477 = vld [vmem:[#allocation11 + $0x948] sm:$0xff]
    %v1478 = vld [vmem:[#allocation11 + $0x950] sm:$0xff]
    %v1479 = vld [vmem:[#allocation11 + $0x958] sm:$0xff]
    %v1480 = vld [vmem:[#allocation11 + $0x960] sm:$0xff]
    %v1481 = vld [vmem:[#allocation11 + $0x968] sm:$0xff]
    %v1482 = vld [vmem:[#allocation11 + $0x970] sm:$0xff]
    %v1483 = vld [vmem:[#allocation11 + $0x978] sm:$0xff]
    %v1484 = vld [vmem:[#allocation11 + $0x980] sm:$0xff]
    %v1485 = vld [vmem:[#allocation11 + $0x988] sm:$0xff]
    %v1486 = vld [vmem:[#allocation11 + $0x990] sm:$0xff]
    %v1487 = vld [vmem:[#allocation11 + $0x998] sm:$0xff]
    %v1488 = vld [vmem:[#allocation11 + $0x9a0] sm:$0xff]
    %v1489 = vld [vmem:[#allocation11 + $0x9a8] sm:$0xff]
    %v1490 = vld [vmem:[#allocation11 + $0x9b0] sm:$0xff]
    %v1491 = vld [vmem:[#allocation11 + $0x9b8] sm:$0xff]
    %v1492 = vld [vmem:[#allocation11 + $0x9c0] sm:$0xff]
    %v1493 = vld [vmem:[#allocation11 + $0x9c8] sm:$0xff]
    %v1494 = vld [vmem:[#allocation11 + $0x9d0] sm:$0xff]
    %v1495 = vld [vmem:[#allocation11 + $0x9d8] sm:$0xff]
    %v1496 = vld [vmem:[#allocation11 + $0x9e0] sm:$0xff]
    %v1497 = vld [vmem:[#allocation11 + $0x9e8] sm:$0xff]
    %v1498 = vld [vmem:[#allocation11 + $0x9f0] sm:$0xff]
    %v1499 = vld [vmem:[#allocation11 + $0x9f8] sm:$0xff]
    %v1500 = vld [vmem:[#allocation11 + $0xa00] sm:$0xff]
    %v1501 = vld [vmem:[#allocation11 + $0xa08] sm:$0xff]
    %v1502 = vld [vmem:[#allocation11 + $0xa10] sm:$0xff]
    %v1503 = vld [vmem:[#allocation11 + $0xa18] sm:$0xff]
    %v1504 = vld [vmem:[#allocation11 + $0xa20] sm:$0xff]
    %v1505 = vld [vmem:[#allocation11 + $0xa28] sm:$0xff]
    %v1506 = vld [vmem:[#allocation11 + $0xa30] sm:$0xff]
    %v1507 = vld [vmem:[#allocation11 + $0xa38] sm:$0xff]
    %v1508 = vld [vmem:[#allocation11 + $0xa40] sm:$0xff]
    %v1509 = vld [vmem:[#allocation11 + $0xa48] sm:$0xff]
    %v1510 = vld [vmem:[#allocation11 + $0xa50] sm:$0xff]
    %v1511 = vld [vmem:[#allocation11 + $0xa58] sm:$0xff]
    %v1512 = vld [vmem:[#allocation11 + $0xa60] sm:$0xff]
    %v1513 = vld [vmem:[#allocation11 + $0xa68] sm:$0xff]
    %v1514 = vld [vmem:[#allocation11 + $0xa70] sm:$0xff]
    %v1515 = vld [vmem:[#allocation11 + $0xa78] sm:$0xff]
    %v1516 = vld [vmem:[#allocation11 + $0xa80] sm:$0xff]
    %v1517 = vld [vmem:[#allocation11 + $0xa88] sm:$0xff]
    %v1518 = vld [vmem:[#allocation11 + $0xa90] sm:$0xff]
    %v1519 = vld [vmem:[#allocation11 + $0xa98] sm:$0xff]
    %v1520 = vld [vmem:[#allocation11 + $0xaa0] sm:$0xff]
    %v1521 = vld [vmem:[#allocation11 + $0xaa8] sm:$0xff]
    %v1522 = vld [vmem:[#allocation11 + $0xab0] sm:$0xff]
    %v1523 = vld [vmem:[#allocation11 + $0xab8] sm:$0xff]
    %v1524 = vld [vmem:[#allocation11 + $0xac0] sm:$0xff]
    %v1525 = vld [vmem:[#allocation11 + $0xac8] sm:$0xff]
    %v1526 = vld [vmem:[#allocation11 + $0xad0] sm:$0xff]
    %v1527 = vld [vmem:[#allocation11 + $0xad8] sm:$0xff]
    %v1528 = vld [vmem:[#allocation11 + $0xae0] sm:$0xff]
    %v1529 = vld [vmem:[#allocation11 + $0xae8] sm:$0xff]
    %v1530 = vld [vmem:[#allocation11 + $0xaf0] sm:$0xff]
    %v1531 = vld [vmem:[#allocation11 + $0xaf8] sm:$0xff]
    %v1532 = vld [vmem:[#allocation11 + $0xb00] sm:$0xff]
    %v1533 = vld [vmem:[#allocation11 + $0xb08] sm:$0xff]
    %v1534 = vld [vmem:[#allocation11 + $0xb10] sm:$0xff]
    %v1535 = vld [vmem:[#allocation11 + $0xb18] sm:$0xff]
    %v1536 = vld [vmem:[#allocation11 + $0xb20] sm:$0xff]
    %v1537 = vld [vmem:[#allocation11 + $0xb28] sm:$0xff]
    %v1538 = vld [vmem:[#allocation11 + $0xb30] sm:$0xff]
    %v1539 = vld [vmem:[#allocation11 + $0xb38] sm:$0xff]
    %v1540 = vld [vmem:[#allocation11 + $0xb40] sm:$0xff]
    %v1541 = vld [vmem:[#allocation11 + $0xb48] sm:$0xff]
    %v1542 = vld [vmem:[#allocation11 + $0xb50] sm:$0xff]
    %v1543 = vld [vmem:[#allocation11 + $0xb58] sm:$0xff]
    %v1544 = vld [vmem:[#allocation11 + $0xb60] sm:$0xff]
    %v1545 = vld [vmem:[#allocation11 + $0xb68] sm:$0xff]
    %v1546 = vld [vmem:[#allocation11 + $0xb70] sm:$0xff]
    %v1547 = vld [vmem:[#allocation11 + $0xb78] sm:$0xff]
    %v1548 = vld [vmem:[#allocation11 + $0xb80] sm:$0xff]
    %v1549 = vld [vmem:[#allocation11 + $0xb88] sm:$0xff]
    %v1550 = vld [vmem:[#allocation11 + $0xb90] sm:$0xff]
    %v1551 = vld [vmem:[#allocation11 + $0xb98] sm:$0xff]
    %v1552 = vld [vmem:[#allocation11 + $0xba0] sm:$0xff]
    %v1553 = vld [vmem:[#allocation11 + $0xba8] sm:$0xff]
    %v1554 = vld [vmem:[#allocation11 + $0xbb0] sm:$0xff]
    %v1555 = vld [vmem:[#allocation11 + $0xbb8] sm:$0xff]
    %v1556 = vld [vmem:[#allocation11 + $0xbc0] sm:$0xff]
    %v1557 = vld [vmem:[#allocation11 + $0xbc8] sm:$0xff]
    %v1558 = vld [vmem:[#allocation11 + $0xbd0] sm:$0xff]
    %v1559 = vld [vmem:[#allocation11 + $0xbd8] sm:$0xff]
    %v1560 = vld [vmem:[#allocation11 + $0xbe0] sm:$0xff]
    %v1561 = vld [vmem:[#allocation11 + $0xbe8] sm:$0xff]
    %v1562 = vld [vmem:[#allocation11 + $0xbf0] sm:$0xff]
    %v1563 = vld [vmem:[#allocation11 + $0xbf8] sm:$0xff]
    %v1564 = vld [vmem:[#allocation13] sm:$0x77]
    %v1565 = vld [vmem:[#allocation13 + $0x8] sm:$0x77]
    %v1568 = vcombine.high %v1564, %v1564
    %v1569 = vcombine.high %v1565, %v1565
    %v1570 = vsel %vm705, %v1564, 0
    %v1572 = vsel %vm705, %v1568, 0
    %v1574 = vsel %vm705, %v1565, 0
    %v1576 = vsel %vm705, %v1569, 0
    %1578 = vmatprep.subr.mxu0 %v1572
    %1579 = vmatpush1.msra.mxu0 %v1570
    %1580 = vmatprep.subr.mxu0 0.0
    %1581 = vmatpush1.msra.mxu0 0.0
    %1582 = vmatprep.subr.mxu0 0.0
    %1583 = vmatpush1.msra.mxu0 0.0
    %1584 = vmatprep.subr.mxu0 0.0
    %1585 = vmatpush1.msra.mxu0 0.0
    %1586 = vmatprep.subr.mxu0 0.0
    %1587 = vmatpush1.msra.mxu0 0.0
    %1588 = vmatprep.subr.mxu0 0.0
    %1589 = vmatpush1.msra.mxu0 0.0
    %1590 = vmatprep.subr.mxu0 0.0
    %1591 = vmatpush1.msra.mxu0 0.0
    %1592 = vmatprep.subr.mxu0 0.0
    %1593 = vmatpush1.msra.mxu0 0.0
    %1594 = vmatprep.subr.mxu0 0.0
    %1595 = vmatpush1.msra.mxu0 0.0
    %1596 = vmatprep.subr.mxu0 0.0
    %1597 = vmatpush1.msra.mxu0 0.0
    %1598 = vmatprep.subr.mxu0 0.0
    %1599 = vmatpush1.msra.mxu0 0.0
    %1600 = vmatprep.subr.mxu0 0.0
    %1601 = vmatpush1.msra.mxu0 0.0
    %1602 = vmatprep.subr.mxu0 0.0
    %1603 = vmatpush1.msra.mxu0 0.0
    %1604 = vmatprep.subr.mxu0 0.0
    %1605 = vmatpush1.msra.mxu0 0.0
    %1606 = vmatprep.subr.mxu0 0.0
    %1607 = vmatpush1.msra.mxu0 0.0
    %1608 = vmatprep.subr.mxu0 0.0
    %1609 = vmatpush1.msra.mxu0 0.0
    %1610 = vmatprep.subr.mxu0 0.0
    %1611 = vmatpush1.msra.mxu0 0.0
    %1612 = vmatprep.subr.mxu0 0.0
    %1613 = vmatpush1.msra.mxu0 0.0
    %1614 = vmatprep.subr.mxu0 0.0
    %1615 = vmatpush1.msra.mxu0 0.0
    %1616 = vmatprep.subr.mxu0 0.0
    %1617 = vmatpush1.msra.mxu0 0.0
    %1618 = vmatprep.subr.mxu0 0.0
    %1619 = vmatpush1.msra.mxu0 0.0
    %1620 = vmatprep.subr.mxu0 0.0
    %1621 = vmatpush1.msra.mxu0 0.0
    %1622 = vmatprep.subr.mxu0 0.0
    %1623 = vmatpush1.msra.mxu0 0.0
    %1624 = vmatprep.subr.mxu0 0.0
    %1625 = vmatpush1.msra.mxu0 0.0
    %1626 = vmatprep.subr.mxu0 0.0
    %1627 = vmatpush1.msra.mxu0 0.0
    %1628 = vmatprep.subr.mxu0 0.0
    %1629 = vmatpush1.msra.mxu0 0.0
    %1630 = vmatprep.subr.mxu0 0.0
    %1631 = vmatpush1.msra.mxu0 0.0
    %1632 = vmatprep.subr.mxu0 0.0
    %1633 = vmatpush1.msra.mxu0 0.0
    %1634 = vmatprep.subr.mxu0 0.0
    %1635 = vmatpush1.msra.mxu0 0.0
    %1636 = vmatprep.subr.mxu0 0.0
    %1637 = vmatpush1.msra.mxu0 0.0
    %1638 = vmatprep.subr.mxu0 0.0
    %1639 = vmatpush1.msra.mxu0 0.0
    %1640 = vmatprep.subr.mxu0 0.0
    %1641 = vmatpush1.msra.mxu0 0.0
    %1642 = vmatprep.mubr.f32.mxu0 0.0
    %1643 = vmatmul.mubr.f32.gmra.mrb[0].mxu0 %v703
    %v1644 = vpop.f32.mrb[0].mxu0
    %v1645 = vadd.f32 0.0, %v1644
    %v1646 = vpop.f32.mrb[0].mxu0
    %v1647 = vadd.f32 0.0, %v1646
    %1648 = vdwg.mxu0
    %1649 = vmatprep.subr.mxu0 %v1576
    %1650 = vmatpush1.msra.mxu0 %v1574
    %1651 = vmatprep.subr.mxu0 0.0
    %1652 = vmatpush1.msra.mxu0 0.0
    %1653 = vmatprep.subr.mxu0 0.0
    %1654 = vmatpush1.msra.mxu0 0.0
    %1655 = vmatprep.subr.mxu0 0.0
    %1656 = vmatpush1.msra.mxu0 0.0
    %1657 = vmatprep.subr.mxu0 0.0
    %1658 = vmatpush1.msra.mxu0 0.0
    %1659 = vmatprep.subr.mxu0 0.0
    %1660 = vmatpush1.msra.mxu0 0.0
    %1661 = vmatprep.subr.mxu0 0.0
    %1662 = vmatpush1.msra.mxu0 0.0
    %1663 = vmatprep.subr.mxu0 0.0
    %1664 = vmatpush1.msra.mxu0 0.0
    %1665 = vmatprep.subr.mxu0 0.0
    %1666 = vmatpush1.msra.mxu0 0.0
    %1667 = vmatprep.subr.mxu0 0.0
    %1668 = vmatpush1.msra.mxu0 0.0
    %1669 = vmatprep.subr.mxu0 0.0
    %1670 = vmatpush1.msra.mxu0 0.0
    %1671 = vmatprep.subr.mxu0 0.0
    %1672 = vmatpush1.msra.mxu0 0.0
    %1673 = vmatprep.subr.mxu0 0.0
    %1674 = vmatpush1.msra.mxu0 0.0
    %1675 = vmatprep.subr.mxu0 0.0
    %1676 = vmatpush1.msra.mxu0 0.0
    %1677 = vmatprep.subr.mxu0 0.0
    %1678 = vmatpush1.msra.mxu0 0.0
    %1679 = vmatprep.subr.mxu0 0.0
    %1680 = vmatpush1.msra.mxu0 0.0
    %1681 = vmatprep.subr.mxu0 0.0
    %1682 = vmatpush1.msra.mxu0 0.0
    %1683 = vmatprep.subr.mxu0 0.0
    %1684 = vmatpush1.msra.mxu0 0.0
    %1685 = vmatprep.subr.mxu0 0.0
    %1686 = vmatpush1.msra.mxu0 0.0
    %1687 = vmatprep.subr.mxu0 0.0
    %1688 = vmatpush1.msra.mxu0 0.0
    %1689 = vmatprep.subr.mxu0 0.0
    %1690 = vmatpush1.msra.mxu0 0.0
    %1691 = vmatprep.subr.mxu0 0.0
    %1692 = vmatpush1.msra.mxu0 0.0
    %1693 = vmatprep.subr.mxu0 0.0
    %1694 = vmatpush1.msra.mxu0 0.0
    %1695 = vmatprep.subr.mxu0 0.0
    %1696 = vmatpush1.msra.mxu0 0.0
    %1697 = vmatprep.subr.mxu0 0.0
    %1698 = vmatpush1.msra.mxu0 0.0
    %1699 = vmatprep.subr.mxu0 0.0
    %1700 = vmatpush1.msra.mxu0 0.0
    %1701 = vmatprep.subr.mxu0 0.0
    %1702 = vmatpush1.msra.mxu0 0.0
    %1703 = vmatprep.subr.mxu0 0.0
    %1704 = vmatpush1.msra.mxu0 0.0
    %1705 = vmatprep.subr.mxu0 0.0
    %1706 = vmatpush1.msra.mxu0 0.0
    %1707 = vmatprep.subr.mxu0 0.0
    %1708 = vmatpush1.msra.mxu0 0.0
    %1709 = vmatprep.subr.mxu0 0.0
    %1710 = vmatpush1.msra.mxu0 0.0
    %1711 = vmatprep.subr.mxu0 0.0
    %1712 = vmatpush1.msra.mxu0 0.0
    %1713 = vmatprep.mubr.f32.mxu0 0.0
    %1714 = vmatmul.mubr.f32.gmra.mrb[0].mxu0 %v703
    %v1715 = vpop.f32.mrb[0].mxu0
    %v1716 = vadd.f32 0.0, %v1715
    %v1717 = vpop.f32.mrb[0].mxu0
    %v1718 = vadd.f32 0.0, %v1717
    %1719 = vdwg.mxu0
    %v2104 = vunpack.c.l.b16 %v1180
    %v2105 = vunpack.c.h.b16 %v1180
    %v2106 = vunpack.c.l.b16 %v1181
    %v2107 = vunpack.c.h.b16 %v1181
    %v2108 = vunpack.c.l.b16 %v1182
    %v2109 = vunpack.c.h.b16 %v1182
    %v2110 = vunpack.c.l.b16 %v1183
    %v2111 = vunpack.c.h.b16 %v1183
    %v2112 = vunpack.c.l.b16 %v1184
    %v2113 = vunpack.c.h.b16 %v1184
    %v2114 = vunpack.c.l.b16 %v1185
    %v2115 = vunpack.c.h.b16 %v1185
    %v2116 = vunpack.c.l.b16 %v1186
    %v2117 = vunpack.c.h.b16 %v1186
    %v2118 = vunpack.c.l.b16 %v1187
    %v2119 = vunpack.c.h.b16 %v1187
    %v2120 = vunpack.c.l.b16 %v1188
    %v2121 = vunpack.c.h.b16 %v1188
    %v2122 = vunpack.c.l.b16 %v1189
    %v2123 = vunpack.c.h.b16 %v1189
    %v2124 = vunpack.c.l.b16 %v1190
    %v2125 = vunpack.c.h.b16 %v1190
    %v2126 = vunpack.c.l.b16 %v1191
    %v2127 = vunpack.c.h.b16 %v1191
    %v2128 = vunpack.c.l.b16 %v1192
    %v2129 = vunpack.c.h.b16 %v1192
    %v2130 = vunpack.c.l.b16 %v1193
    %v2131 = vunpack.c.h.b16 %v1193
    %v2132 = vunpack.c.l.b16 %v1194
    %v2133 = vunpack.c.h.b16 %v1194
    %v2134 = vunpack.c.l.b16 %v1195
    %v2135 = vunpack.c.h.b16 %v1195
    %v2136 = vunpack.c.l.b16 %v1196
    %v2137 = vunpack.c.h.b16 %v1196
    %v2138 = vunpack.c.l.b16 %v1197
    %v2139 = vunpack.c.h.b16 %v1197
    %v2140 = vunpack.c.l.b16 %v1198
    %v2141 = vunpack.c.h.b16 %v1198
    %v2142 = vunpack.c.l.b16 %v1199
    %v2143 = vunpack.c.h.b16 %v1199
    %v2144 = vunpack.c.l.b16 %v1200
    %v2145 = vunpack.c.h.b16 %v1200
    %v2146 = vunpack.c.l.b16 %v1201
    %v2147 = vunpack.c.h.b16 %v1201
    %v2148 = vunpack.c.l.b16 %v1202
    %v2149 = vunpack.c.h.b16 %v1202
    %v2150 = vunpack.c.l.b16 %v1203
    %v2151 = vunpack.c.h.b16 %v1203
    %v2152 = vunpack.c.l.b16 %v1204
    %v2153 = vunpack.c.h.b16 %v1204
    %v2154 = vunpack.c.l.b16 %v1205
    %v2155 = vunpack.c.h.b16 %v1205
    %v2156 = vunpack.c.l.b16 %v1206
    %v2157 = vunpack.c.h.b16 %v1206
    %v2158 = vunpack.c.l.b16 %v1207
    %v2159 = vunpack.c.h.b16 %v1207
    %v2160 = vunpack.c.l.b16 %v1208
    %v2161 = vunpack.c.h.b16 %v1208
    %v2162 = vunpack.c.l.b16 %v1209
    %v2163 = vunpack.c.h.b16 %v1209
    %v2164 = vunpack.c.l.b16 %v1210
    %v2165 = vunpack.c.h.b16 %v1210
    %v2166 = vunpack.c.l.b16 %v1211
    %v2167 = vunpack.c.h.b16 %v1211
    %v2168 = vunpack.c.l.b16 %v1212
    %v2169 = vunpack.c.h.b16 %v1212
    %v2170 = vunpack.c.l.b16 %v1213
    %v2171 = vunpack.c.h.b16 %v1213
    %v2172 = vunpack.c.l.b16 %v1214
    %v2173 = vunpack.c.h.b16 %v1214
    %v2174 = vunpack.c.l.b16 %v1215
    %v2175 = vunpack.c.h.b16 %v1215
    %v2176 = vunpack.c.l.b16 %v1216
    %v2177 = vunpack.c.h.b16 %v1216
    %v2178 = vunpack.c.l.b16 %v1217
    %v2179 = vunpack.c.h.b16 %v1217
    %v2180 = vunpack.c.l.b16 %v1218
    %v2181 = vunpack.c.h.b16 %v1218
    %v2182 = vunpack.c.l.b16 %v1219
    %v2183 = vunpack.c.h.b16 %v1219
    %v2184 = vunpack.c.l.b16 %v1220
    %v2185 = vunpack.c.h.b16 %v1220
    %v2186 = vunpack.c.l.b16 %v1221
    %v2187 = vunpack.c.h.b16 %v1221
    %v2188 = vunpack.c.l.b16 %v1222
    %v2189 = vunpack.c.h.b16 %v1222
    %v2190 = vunpack.c.l.b16 %v1223
    %v2191 = vunpack.c.h.b16 %v1223
    %v2192 = vunpack.c.l.b16 %v1224
    %v2193 = vunpack.c.h.b16 %v1224
    %v2194 = vunpack.c.l.b16 %v1225
    %v2195 = vunpack.c.h.b16 %v1225
    %v2196 = vunpack.c.l.b16 %v1226
    %v2197 = vunpack.c.h.b16 %v1226
    %v2198 = vunpack.c.l.b16 %v1227
    %v2199 = vunpack.c.h.b16 %v1227
    %v2200 = vunpack.c.l.b16 %v1228
    %v2201 = vunpack.c.h.b16 %v1228
    %v2202 = vunpack.c.l.b16 %v1229
    %v2203 = vunpack.c.h.b16 %v1229
    %v2204 = vunpack.c.l.b16 %v1230
    %v2205 = vunpack.c.h.b16 %v1230
    %v2206 = vunpack.c.l.b16 %v1231
    %v2207 = vunpack.c.h.b16 %v1231
    %v2208 = vunpack.c.l.b16 %v1232
    %v2209 = vunpack.c.h.b16 %v1232
    %v2210 = vunpack.c.l.b16 %v1233
    %v2211 = vunpack.c.h.b16 %v1233
    %v2212 = vunpack.c.l.b16 %v1234
    %v2213 = vunpack.c.h.b16 %v1234
    %v2214 = vunpack.c.l.b16 %v1235
    %v2215 = vunpack.c.h.b16 %v1235
    %v2216 = vunpack.c.l.b16 %v1236
    %v2217 = vunpack.c.h.b16 %v1236
    %v2218 = vunpack.c.l.b16 %v1237
    %v2219 = vunpack.c.h.b16 %v1237
    %v2220 = vunpack.c.l.b16 %v1238
    %v2221 = vunpack.c.h.b16 %v1238
    %v2222 = vunpack.c.l.b16 %v1239
    %v2223 = vunpack.c.h.b16 %v1239
    %v2224 = vunpack.c.l.b16 %v1240
    %v2225 = vunpack.c.h.b16 %v1240
    %v2226 = vunpack.c.l.b16 %v1241
    %v2227 = vunpack.c.h.b16 %v1241
    %v2228 = vunpack.c.l.b16 %v1242
    %v2229 = vunpack.c.h.b16 %v1242
    %v2230 = vunpack.c.l.b16 %v1243
    %v2231 = vunpack.c.h.b16 %v1243
    %v2232 = vunpack.c.l.b16 %v1244
    %v2233 = vunpack.c.h.b16 %v1244
    %v2234 = vunpack.c.l.b16 %v1245
    %v2235 = vunpack.c.h.b16 %v1245
    %v2236 = vunpack.c.l.b16 %v1246
    %v2237 = vunpack.c.h.b16 %v1246
    %v2238 = vunpack.c.l.b16 %v1247
    %v2239 = vunpack.c.h.b16 %v1247
    %v2240 = vunpack.c.l.b16 %v1248
    %v2241 = vunpack.c.h.b16 %v1248
    %v2242 = vunpack.c.l.b16 %v1249
    %v2243 = vunpack.c.h.b16 %v1249
    %v2244 = vunpack.c.l.b16 %v1250
    %v2245 = vunpack.c.h.b16 %v1250
    %v2246 = vunpack.c.l.b16 %v1251
    %v2247 = vunpack.c.h.b16 %v1251
    %v2248 = vunpack.c.l.b16 %v1252
    %v2249 = vunpack.c.h.b16 %v1252
    %v2250 = vunpack.c.l.b16 %v1253
    %v2251 = vunpack.c.h.b16 %v1253
    %v2252 = vunpack.c.l.b16 %v1254
    %v2253 = vunpack.c.h.b16 %v1254
    %v2254 = vunpack.c.l.b16 %v1255
    %v2255 = vunpack.c.h.b16 %v1255
    %v2256 = vunpack.c.l.b16 %v1256
    %v2257 = vunpack.c.h.b16 %v1256
    %v2258 = vunpack.c.l.b16 %v1257
    %v2259 = vunpack.c.h.b16 %v1257
    %v2260 = vunpack.c.l.b16 %v1258
    %v2261 = vunpack.c.h.b16 %v1258
    %v2262 = vunpack.c.l.b16 %v1259
    %v2263 = vunpack.c.h.b16 %v1259
    %v2264 = vunpack.c.l.b16 %v1260
    %v2265 = vunpack.c.h.b16 %v1260
    %v2266 = vunpack.c.l.b16 %v1261
    %v2267 = vunpack.c.h.b16 %v1261
    %v2268 = vunpack.c.l.b16 %v1262
    %v2269 = vunpack.c.h.b16 %v1262
    %v2270 = vunpack.c.l.b16 %v1263
    %v2271 = vunpack.c.h.b16 %v1263
    %v2272 = vunpack.c.l.b16 %v1264
    %v2273 = vunpack.c.h.b16 %v1264
    %v2274 = vunpack.c.l.b16 %v1265
    %v2275 = vunpack.c.h.b16 %v1265
    %v2276 = vunpack.c.l.b16 %v1266
    %v2277 = vunpack.c.h.b16 %v1266
    %v2278 = vunpack.c.l.b16 %v1267
    %v2279 = vunpack.c.h.b16 %v1267
    %v2280 = vunpack.c.l.b16 %v1268
    %v2281 = vunpack.c.h.b16 %v1268
    %v2282 = vunpack.c.l.b16 %v1269
    %v2283 = vunpack.c.h.b16 %v1269
    %v2284 = vunpack.c.l.b16 %v1270
    %v2285 = vunpack.c.h.b16 %v1270
    %v2286 = vunpack.c.l.b16 %v1271
    %v2287 = vunpack.c.h.b16 %v1271
    %v2288 = vunpack.c.l.b16 %v1272
    %v2289 = vunpack.c.h.b16 %v1272
    %v2290 = vunpack.c.l.b16 %v1273
    %v2291 = vunpack.c.h.b16 %v1273
    %v2292 = vunpack.c.l.b16 %v1274
    %v2293 = vunpack.c.h.b16 %v1274
    %v2294 = vunpack.c.l.b16 %v1275
    %v2295 = vunpack.c.h.b16 %v1275
    %v2296 = vunpack.c.l.b16 %v1276
    %v2297 = vunpack.c.h.b16 %v1276
    %v2298 = vunpack.c.l.b16 %v1277
    %v2299 = vunpack.c.h.b16 %v1277
    %v2300 = vunpack.c.l.b16 %v1278
    %v2301 = vunpack.c.h.b16 %v1278
    %v2302 = vunpack.c.l.b16 %v1279
    %v2303 = vunpack.c.h.b16 %v1279
    %v2304 = vunpack.c.l.b16 %v1280
    %v2305 = vunpack.c.h.b16 %v1280
    %v2306 = vunpack.c.l.b16 %v1281
    %v2307 = vunpack.c.h.b16 %v1281
    %v2308 = vunpack.c.l.b16 %v1282
    %v2309 = vunpack.c.h.b16 %v1282
    %v2310 = vunpack.c.l.b16 %v1283
    %v2311 = vunpack.c.h.b16 %v1283
    %v2312 = vunpack.c.l.b16 %v1284
    %v2313 = vunpack.c.h.b16 %v1284
    %v2314 = vunpack.c.l.b16 %v1285
    %v2315 = vunpack.c.h.b16 %v1285
    %v2316 = vunpack.c.l.b16 %v1286
    %v2317 = vunpack.c.h.b16 %v1286
    %v2318 = vunpack.c.l.b16 %v1287
    %v2319 = vunpack.c.h.b16 %v1287
    %v2320 = vunpack.c.l.b16 %v1288
    %v2321 = vunpack.c.h.b16 %v1288
    %v2322 = vunpack.c.l.b16 %v1289
    %v2323 = vunpack.c.h.b16 %v1289
    %v2324 = vunpack.c.l.b16 %v1290
    %v2325 = vunpack.c.h.b16 %v1290
    %v2326 = vunpack.c.l.b16 %v1291
    %v2327 = vunpack.c.h.b16 %v1291
    %v2328 = vunpack.c.l.b16 %v1292
    %v2329 = vunpack.c.h.b16 %v1292
    %v2330 = vunpack.c.l.b16 %v1293
    %v2331 = vunpack.c.h.b16 %v1293
    %v2332 = vunpack.c.l.b16 %v1294
    %v2333 = vunpack.c.h.b16 %v1294
    %v2334 = vunpack.c.l.b16 %v1295
    %v2335 = vunpack.c.h.b16 %v1295
    %v2336 = vunpack.c.l.b16 %v1296
    %v2337 = vunpack.c.h.b16 %v1296
    %v2338 = vunpack.c.l.b16 %v1297
    %v2339 = vunpack.c.h.b16 %v1297
    %v2340 = vunpack.c.l.b16 %v1298
    %v2341 = vunpack.c.h.b16 %v1298
    %v2342 = vunpack.c.l.b16 %v1299
    %v2343 = vunpack.c.h.b16 %v1299
    %v2344 = vunpack.c.l.b16 %v1300
    %v2345 = vunpack.c.h.b16 %v1300
    %v2346 = vunpack.c.l.b16 %v1301
    %v2347 = vunpack.c.h.b16 %v1301
    %v2348 = vunpack.c.l.b16 %v1302
    %v2349 = vunpack.c.h.b16 %v1302
    %v2350 = vunpack.c.l.b16 %v1303
    %v2351 = vunpack.c.h.b16 %v1303
    %v2352 = vunpack.c.l.b16 %v1304
    %v2353 = vunpack.c.h.b16 %v1304
    %v2354 = vunpack.c.l.b16 %v1305
    %v2355 = vunpack.c.h.b16 %v1305
    %v2356 = vunpack.c.l.b16 %v1306
    %v2357 = vunpack.c.h.b16 %v1306
    %v2358 = vunpack.c.l.b16 %v1307
    %v2359 = vunpack.c.h.b16 %v1307
    %v2360 = vunpack.c.l.b16 %v1308
    %v2361 = vunpack.c.h.b16 %v1308
    %v2362 = vunpack.c.l.b16 %v1309
    %v2363 = vunpack.c.h.b16 %v1309
    %v2364 = vunpack.c.l.b16 %v1310
    %v2365 = vunpack.c.h.b16 %v1310
    %v2366 = vunpack.c.l.b16 %v1311
    %v2367 = vunpack.c.h.b16 %v1311
    %v2368 = vunpack.c.l.b16 %v1312
    %v2369 = vunpack.c.h.b16 %v1312
    %v2370 = vunpack.c.l.b16 %v1313
    %v2371 = vunpack.c.h.b16 %v1313
    %v2372 = vunpack.c.l.b16 %v1314
    %v2373 = vunpack.c.h.b16 %v1314
    %v2374 = vunpack.c.l.b16 %v1315
    %v2375 = vunpack.c.h.b16 %v1315
    %v2376 = vunpack.c.l.b16 %v1316
    %v2377 = vunpack.c.h.b16 %v1316
    %v2378 = vunpack.c.l.b16 %v1317
    %v2379 = vunpack.c.h.b16 %v1317
    %v2380 = vunpack.c.l.b16 %v1318
    %v2381 = vunpack.c.h.b16 %v1318
    %v2382 = vunpack.c.l.b16 %v1319
    %v2383 = vunpack.c.h.b16 %v1319
    %v2384 = vunpack.c.l.b16 %v1320
    %v2385 = vunpack.c.h.b16 %v1320
    %v2386 = vunpack.c.l.b16 %v1321
    %v2387 = vunpack.c.h.b16 %v1321
    %v2388 = vunpack.c.l.b16 %v1322
    %v2389 = vunpack.c.h.b16 %v1322
    %v2390 = vunpack.c.l.b16 %v1323
    %v2391 = vunpack.c.h.b16 %v1323
    %v2392 = vunpack.c.l.b16 %v1324
    %v2393 = vunpack.c.h.b16 %v1324
    %v2394 = vunpack.c.l.b16 %v1325
    %v2395 = vunpack.c.h.b16 %v1325
    %v2396 = vunpack.c.l.b16 %v1326
    %v2397 = vunpack.c.h.b16 %v1326
    %v2398 = vunpack.c.l.b16 %v1327
    %v2399 = vunpack.c.h.b16 %v1327
    %v2400 = vunpack.c.l.b16 %v1328
    %v2401 = vunpack.c.h.b16 %v1328
    %v2402 = vunpack.c.l.b16 %v1329
    %v2403 = vunpack.c.h.b16 %v1329
    %v2404 = vunpack.c.l.b16 %v1330
    %v2405 = vunpack.c.h.b16 %v1330
    %v2406 = vunpack.c.l.b16 %v1331
    %v2407 = vunpack.c.h.b16 %v1331
    %v2408 = vunpack.c.l.b16 %v1332
    %v2409 = vunpack.c.h.b16 %v1332
    %v2410 = vunpack.c.l.b16 %v1333
    %v2411 = vunpack.c.h.b16 %v1333
    %v2412 = vunpack.c.l.b16 %v1334
    %v2413 = vunpack.c.h.b16 %v1334
    %v2414 = vunpack.c.l.b16 %v1335
    %v2415 = vunpack.c.h.b16 %v1335
    %v2416 = vunpack.c.l.b16 %v1336
    %v2417 = vunpack.c.h.b16 %v1336
    %v2418 = vunpack.c.l.b16 %v1337
    %v2419 = vunpack.c.h.b16 %v1337
    %v2420 = vunpack.c.l.b16 %v1338
    %v2421 = vunpack.c.h.b16 %v1338
    %v2422 = vunpack.c.l.b16 %v1339
    %v2423 = vunpack.c.h.b16 %v1339
    %v2424 = vunpack.c.l.b16 %v1340
    %v2425 = vunpack.c.h.b16 %v1340
    %v2426 = vunpack.c.l.b16 %v1341
    %v2427 = vunpack.c.h.b16 %v1341
    %v2428 = vunpack.c.l.b16 %v1342
    %v2429 = vunpack.c.h.b16 %v1342
    %v2430 = vunpack.c.l.b16 %v1343
    %v2431 = vunpack.c.h.b16 %v1343
    %v2432 = vunpack.c.l.b16 %v1344
    %v2433 = vunpack.c.h.b16 %v1344
    %v2434 = vunpack.c.l.b16 %v1345
    %v2435 = vunpack.c.h.b16 %v1345
    %v2436 = vunpack.c.l.b16 %v1346
    %v2437 = vunpack.c.h.b16 %v1346
    %v2438 = vunpack.c.l.b16 %v1347
    %v2439 = vunpack.c.h.b16 %v1347
    %v2440 = vunpack.c.l.b16 %v1348
    %v2441 = vunpack.c.h.b16 %v1348
    %v2442 = vunpack.c.l.b16 %v1349
    %v2443 = vunpack.c.h.b16 %v1349
    %v2444 = vunpack.c.l.b16 %v1350
    %v2445 = vunpack.c.h.b16 %v1350
    %v2446 = vunpack.c.l.b16 %v1351
    %v2447 = vunpack.c.h.b16 %v1351
    %v2448 = vunpack.c.l.b16 %v1352
    %v2449 = vunpack.c.h.b16 %v1352
    %v2450 = vunpack.c.l.b16 %v1353
    %v2451 = vunpack.c.h.b16 %v1353
    %v2452 = vunpack.c.l.b16 %v1354
    %v2453 = vunpack.c.h.b16 %v1354
    %v2454 = vunpack.c.l.b16 %v1355
    %v2455 = vunpack.c.h.b16 %v1355
    %v2456 = vunpack.c.l.b16 %v1356
    %v2457 = vunpack.c.h.b16 %v1356
    %v2458 = vunpack.c.l.b16 %v1357
    %v2459 = vunpack.c.h.b16 %v1357
    %v2460 = vunpack.c.l.b16 %v1358
    %v2461 = vunpack.c.h.b16 %v1358
    %v2462 = vunpack.c.l.b16 %v1359
    %v2463 = vunpack.c.h.b16 %v1359
    %v2464 = vunpack.c.l.b16 %v1360
    %v2465 = vunpack.c.h.b16 %v1360
    %v2466 = vunpack.c.l.b16 %v1361
    %v2467 = vunpack.c.h.b16 %v1361
    %v2468 = vunpack.c.l.b16 %v1362
    %v2469 = vunpack.c.h.b16 %v1362
    %v2470 = vunpack.c.l.b16 %v1363
    %v2471 = vunpack.c.h.b16 %v1363
    %v2472 = vunpack.c.l.b16 %v1364
    %v2473 = vunpack.c.h.b16 %v1364
    %v2474 = vunpack.c.l.b16 %v1365
    %v2475 = vunpack.c.h.b16 %v1365
    %v2476 = vunpack.c.l.b16 %v1366
    %v2477 = vunpack.c.h.b16 %v1366
    %v2478 = vunpack.c.l.b16 %v1367
    %v2479 = vunpack.c.h.b16 %v1367
    %v2480 = vunpack.c.l.b16 %v1368
    %v2481 = vunpack.c.h.b16 %v1368
    %v2482 = vunpack.c.l.b16 %v1369
    %v2483 = vunpack.c.h.b16 %v1369
    %v2484 = vunpack.c.l.b16 %v1370
    %v2485 = vunpack.c.h.b16 %v1370
    %v2486 = vunpack.c.l.b16 %v1371
    %v2487 = vunpack.c.h.b16 %v1371
    %v2488 = vunpack.c.l.b16 %v1372
    %v2489 = vunpack.c.h.b16 %v1372
    %v2490 = vunpack.c.l.b16 %v1373
    %v2491 = vunpack.c.h.b16 %v1373
    %v2492 = vunpack.c.l.b16 %v1374
    %v2493 = vunpack.c.h.b16 %v1374
    %v2494 = vunpack.c.l.b16 %v1375
    %v2495 = vunpack.c.h.b16 %v1375
    %v2496 = vunpack.c.l.b16 %v1376
    %v2497 = vunpack.c.h.b16 %v1376
    %v2498 = vunpack.c.l.b16 %v1377
    %v2499 = vunpack.c.h.b16 %v1377
    %v2500 = vunpack.c.l.b16 %v1378
    %v2501 = vunpack.c.h.b16 %v1378
    %v2502 = vunpack.c.l.b16 %v1379
    %v2503 = vunpack.c.h.b16 %v1379
    %v2504 = vunpack.c.l.b16 %v1380
    %v2505 = vunpack.c.h.b16 %v1380
    %v2506 = vunpack.c.l.b16 %v1381
    %v2507 = vunpack.c.h.b16 %v1381
    %v2508 = vunpack.c.l.b16 %v1382
    %v2509 = vunpack.c.h.b16 %v1382
    %v2510 = vunpack.c.l.b16 %v1383
    %v2511 = vunpack.c.h.b16 %v1383
    %v2512 = vunpack.c.l.b16 %v1384
    %v2513 = vunpack.c.h.b16 %v1384
    %v2514 = vunpack.c.l.b16 %v1385
    %v2515 = vunpack.c.h.b16 %v1385
    %v2516 = vunpack.c.l.b16 %v1386
    %v2517 = vunpack.c.h.b16 %v1386
    %v2518 = vunpack.c.l.b16 %v1387
    %v2519 = vunpack.c.h.b16 %v1387
    %v2520 = vunpack.c.l.b16 %v1388
    %v2521 = vunpack.c.h.b16 %v1388
    %v2522 = vunpack.c.l.b16 %v1389
    %v2523 = vunpack.c.h.b16 %v1389
    %v2524 = vunpack.c.l.b16 %v1390
    %v2525 = vunpack.c.h.b16 %v1390
    %v2526 = vunpack.c.l.b16 %v1391
    %v2527 = vunpack.c.h.b16 %v1391
    %v2528 = vunpack.c.l.b16 %v1392
    %v2529 = vunpack.c.h.b16 %v1392
    %v2530 = vunpack.c.l.b16 %v1393
    %v2531 = vunpack.c.h.b16 %v1393
    %v2532 = vunpack.c.l.b16 %v1394
    %v2533 = vunpack.c.h.b16 %v1394
    %v2534 = vunpack.c.l.b16 %v1395
    %v2535 = vunpack.c.h.b16 %v1395
    %v2536 = vunpack.c.l.b16 %v1396
    %v2537 = vunpack.c.h.b16 %v1396
    %v2538 = vunpack.c.l.b16 %v1397
    %v2539 = vunpack.c.h.b16 %v1397
    %v2540 = vunpack.c.l.b16 %v1398
    %v2541 = vunpack.c.h.b16 %v1398
    %v2542 = vunpack.c.l.b16 %v1399
    %v2543 = vunpack.c.h.b16 %v1399
    %v2544 = vunpack.c.l.b16 %v1400
    %v2545 = vunpack.c.h.b16 %v1400
    %v2546 = vunpack.c.l.b16 %v1401
    %v2547 = vunpack.c.h.b16 %v1401
    %v2548 = vunpack.c.l.b16 %v1402
    %v2549 = vunpack.c.h.b16 %v1402
    %v2550 = vunpack.c.l.b16 %v1403
    %v2551 = vunpack.c.h.b16 %v1403
    %v2552 = vunpack.c.l.b16 %v1404
    %v2553 = vunpack.c.h.b16 %v1404
    %v2554 = vunpack.c.l.b16 %v1405
    %v2555 = vunpack.c.h.b16 %v1405
    %v2556 = vunpack.c.l.b16 %v1406
    %v2557 = vunpack.c.h.b16 %v1406
    %v2558 = vunpack.c.l.b16 %v1407
    %v2559 = vunpack.c.h.b16 %v1407
    %v2560 = vunpack.c.l.b16 %v1408
    %v2561 = vunpack.c.h.b16 %v1408
    %v2562 = vunpack.c.l.b16 %v1409
    %v2563 = vunpack.c.h.b16 %v1409
    %v2564 = vunpack.c.l.b16 %v1410
    %v2565 = vunpack.c.h.b16 %v1410
    %v2566 = vunpack.c.l.b16 %v1411
    %v2567 = vunpack.c.h.b16 %v1411
    %v2568 = vunpack.c.l.b16 %v1412
    %v2569 = vunpack.c.h.b16 %v1412
    %v2570 = vunpack.c.l.b16 %v1413
    %v2571 = vunpack.c.h.b16 %v1413
    %v2572 = vunpack.c.l.b16 %v1414
    %v2573 = vunpack.c.h.b16 %v1414
    %v2574 = vunpack.c.l.b16 %v1415
    %v2575 = vunpack.c.h.b16 %v1415
    %v2576 = vunpack.c.l.b16 %v1416
    %v2577 = vunpack.c.h.b16 %v1416
    %v2578 = vunpack.c.l.b16 %v1417
    %v2579 = vunpack.c.h.b16 %v1417
    %v2580 = vunpack.c.l.b16 %v1418
    %v2581 = vunpack.c.h.b16 %v1418
    %v2582 = vunpack.c.l.b16 %v1419
    %v2583 = vunpack.c.h.b16 %v1419
    %v2584 = vunpack.c.l.b16 %v1420
    %v2585 = vunpack.c.h.b16 %v1420
    %v2586 = vunpack.c.l.b16 %v1421
    %v2587 = vunpack.c.h.b16 %v1421
    %v2588 = vunpack.c.l.b16 %v1422
    %v2589 = vunpack.c.h.b16 %v1422
    %v2590 = vunpack.c.l.b16 %v1423
    %v2591 = vunpack.c.h.b16 %v1423
    %v2592 = vunpack.c.l.b16 %v1424
    %v2593 = vunpack.c.h.b16 %v1424
    %v2594 = vunpack.c.l.b16 %v1425
    %v2595 = vunpack.c.h.b16 %v1425
    %v2596 = vunpack.c.l.b16 %v1426
    %v2597 = vunpack.c.h.b16 %v1426
    %v2598 = vunpack.c.l.b16 %v1427
    %v2599 = vunpack.c.h.b16 %v1427
    %v2600 = vunpack.c.l.b16 %v1428
    %v2601 = vunpack.c.h.b16 %v1428
    %v2602 = vunpack.c.l.b16 %v1429
    %v2603 = vunpack.c.h.b16 %v1429
    %v2604 = vunpack.c.l.b16 %v1430
    %v2605 = vunpack.c.h.b16 %v1430
    %v2606 = vunpack.c.l.b16 %v1431
    %v2607 = vunpack.c.h.b16 %v1431
    %v2608 = vunpack.c.l.b16 %v1432
    %v2609 = vunpack.c.h.b16 %v1432
    %v2610 = vunpack.c.l.b16 %v1433
    %v2611 = vunpack.c.h.b16 %v1433
    %v2612 = vunpack.c.l.b16 %v1434
    %v2613 = vunpack.c.h.b16 %v1434
    %v2614 = vunpack.c.l.b16 %v1435
    %v2615 = vunpack.c.h.b16 %v1435
    %v2616 = vunpack.c.l.b16 %v1436
    %v2617 = vunpack.c.h.b16 %v1436
    %v2618 = vunpack.c.l.b16 %v1437
    %v2619 = vunpack.c.h.b16 %v1437
    %v2620 = vunpack.c.l.b16 %v1438
    %v2621 = vunpack.c.h.b16 %v1438
    %v2622 = vunpack.c.l.b16 %v1439
    %v2623 = vunpack.c.h.b16 %v1439
    %v2624 = vunpack.c.l.b16 %v1440
    %v2625 = vunpack.c.h.b16 %v1440
    %v2626 = vunpack.c.l.b16 %v1441
    %v2627 = vunpack.c.h.b16 %v1441
    %v2628 = vunpack.c.l.b16 %v1442
    %v2629 = vunpack.c.h.b16 %v1442
    %v2630 = vunpack.c.l.b16 %v1443
    %v2631 = vunpack.c.h.b16 %v1443
    %v2632 = vunpack.c.l.b16 %v1444
    %v2633 = vunpack.c.h.b16 %v1444
    %v2634 = vunpack.c.l.b16 %v1445
    %v2635 = vunpack.c.h.b16 %v1445
    %v2636 = vunpack.c.l.b16 %v1446
    %v2637 = vunpack.c.h.b16 %v1446
    %v2638 = vunpack.c.l.b16 %v1447
    %v2639 = vunpack.c.h.b16 %v1447
    %v2640 = vunpack.c.l.b16 %v1448
    %v2641 = vunpack.c.h.b16 %v1448
    %v2642 = vunpack.c.l.b16 %v1449
    %v2643 = vunpack.c.h.b16 %v1449
    %v2644 = vunpack.c.l.b16 %v1450
    %v2645 = vunpack.c.h.b16 %v1450
    %v2646 = vunpack.c.l.b16 %v1451
    %v2647 = vunpack.c.h.b16 %v1451
    %v2648 = vunpack.c.l.b16 %v1452
    %v2649 = vunpack.c.h.b16 %v1452
    %v2650 = vunpack.c.l.b16 %v1453
    %v2651 = vunpack.c.h.b16 %v1453
    %v2652 = vunpack.c.l.b16 %v1454
    %v2653 = vunpack.c.h.b16 %v1454
    %v2654 = vunpack.c.l.b16 %v1455
    %v2655 = vunpack.c.h.b16 %v1455
    %v2656 = vunpack.c.l.b16 %v1456
    %v2657 = vunpack.c.h.b16 %v1456
    %v2658 = vunpack.c.l.b16 %v1457
    %v2659 = vunpack.c.h.b16 %v1457
    %v2660 = vunpack.c.l.b16 %v1458
    %v2661 = vunpack.c.h.b16 %v1458
    %v2662 = vunpack.c.l.b16 %v1459
    %v2663 = vunpack.c.h.b16 %v1459
    %v2664 = vunpack.c.l.b16 %v1460
    %v2665 = vunpack.c.h.b16 %v1460
    %v2666 = vunpack.c.l.b16 %v1461
    %v2667 = vunpack.c.h.b16 %v1461
    %v2668 = vunpack.c.l.b16 %v1462
    %v2669 = vunpack.c.h.b16 %v1462
    %v2670 = vunpack.c.l.b16 %v1463
    %v2671 = vunpack.c.h.b16 %v1463
    %v2672 = vunpack.c.l.b16 %v1464
    %v2673 = vunpack.c.h.b16 %v1464
    %v2674 = vunpack.c.l.b16 %v1465
    %v2675 = vunpack.c.h.b16 %v1465
    %v2676 = vunpack.c.l.b16 %v1466
    %v2677 = vunpack.c.h.b16 %v1466
    %v2678 = vunpack.c.l.b16 %v1467
    %v2679 = vunpack.c.h.b16 %v1467
    %v2680 = vunpack.c.l.b16 %v1468
    %v2681 = vunpack.c.h.b16 %v1468
    %v2682 = vunpack.c.l.b16 %v1469
    %v2683 = vunpack.c.h.b16 %v1469
    %v2684 = vunpack.c.l.b16 %v1470
    %v2685 = vunpack.c.h.b16 %v1470
    %v2686 = vunpack.c.l.b16 %v1471
    %v2687 = vunpack.c.h.b16 %v1471
    %v2688 = vunpack.c.l.b16 %v1472
    %v2689 = vunpack.c.h.b16 %v1472
    %v2690 = vunpack.c.l.b16 %v1473
    %v2691 = vunpack.c.h.b16 %v1473
    %v2692 = vunpack.c.l.b16 %v1474
    %v2693 = vunpack.c.h.b16 %v1474
    %v2694 = vunpack.c.l.b16 %v1475
    %v2695 = vunpack.c.h.b16 %v1475
    %v2696 = vunpack.c.l.b16 %v1476
    %v2697 = vunpack.c.h.b16 %v1476
    %v2698 = vunpack.c.l.b16 %v1477
    %v2699 = vunpack.c.h.b16 %v1477
    %v2700 = vunpack.c.l.b16 %v1478
    %v2701 = vunpack.c.h.b16 %v1478
    %v2702 = vunpack.c.l.b16 %v1479
    %v2703 = vunpack.c.h.b16 %v1479
    %v2704 = vunpack.c.l.b16 %v1480
    %v2705 = vunpack.c.h.b16 %v1480
    %v2706 = vunpack.c.l.b16 %v1481
    %v2707 = vunpack.c.h.b16 %v1481
    %v2708 = vunpack.c.l.b16 %v1482
    %v2709 = vunpack.c.h.b16 %v1482
    %v2710 = vunpack.c.l.b16 %v1483
    %v2711 = vunpack.c.h.b16 %v1483
    %v2712 = vunpack.c.l.b16 %v1484
    %v2713 = vunpack.c.h.b16 %v1484
    %v2714 = vunpack.c.l.b16 %v1485
    %v2715 = vunpack.c.h.b16 %v1485
    %v2716 = vunpack.c.l.b16 %v1486
    %v2717 = vunpack.c.h.b16 %v1486
    %v2718 = vunpack.c.l.b16 %v1487
    %v2719 = vunpack.c.h.b16 %v1487
    %v2720 = vunpack.c.l.b16 %v1488
    %v2721 = vunpack.c.h.b16 %v1488
    %v2722 = vunpack.c.l.b16 %v1489
    %v2723 = vunpack.c.h.b16 %v1489
    %v2724 = vunpack.c.l.b16 %v1490
    %v2725 = vunpack.c.h.b16 %v1490
    %v2726 = vunpack.c.l.b16 %v1491
    %v2727 = vunpack.c.h.b16 %v1491
    %v2728 = vunpack.c.l.b16 %v1492
    %v2729 = vunpack.c.h.b16 %v1492
    %v2730 = vunpack.c.l.b16 %v1493
    %v2731 = vunpack.c.h.b16 %v1493
    %v2732 = vunpack.c.l.b16 %v1494
    %v2733 = vunpack.c.h.b16 %v1494
    %v2734 = vunpack.c.l.b16 %v1495
    %v2735 = vunpack.c.h.b16 %v1495
    %v2736 = vunpack.c.l.b16 %v1496
    %v2737 = vunpack.c.h.b16 %v1496
    %v2738 = vunpack.c.l.b16 %v1497
    %v2739 = vunpack.c.h.b16 %v1497
    %v2740 = vunpack.c.l.b16 %v1498
    %v2741 = vunpack.c.h.b16 %v1498
    %v2742 = vunpack.c.l.b16 %v1499
    %v2743 = vunpack.c.h.b16 %v1499
    %v2744 = vunpack.c.l.b16 %v1500
    %v2745 = vunpack.c.h.b16 %v1500
    %v2746 = vunpack.c.l.b16 %v1501
    %v2747 = vunpack.c.h.b16 %v1501
    %v2748 = vunpack.c.l.b16 %v1502
    %v2749 = vunpack.c.h.b16 %v1502
    %v2750 = vunpack.c.l.b16 %v1503
    %v2751 = vunpack.c.h.b16 %v1503
    %v2752 = vunpack.c.l.b16 %v1504
    %v2753 = vunpack.c.h.b16 %v1504
    %v2754 = vunpack.c.l.b16 %v1505
    %v2755 = vunpack.c.h.b16 %v1505
    %v2756 = vunpack.c.l.b16 %v1506
    %v2757 = vunpack.c.h.b16 %v1506
    %v2758 = vunpack.c.l.b16 %v1507
    %v2759 = vunpack.c.h.b16 %v1507
    %v2760 = vunpack.c.l.b16 %v1508
    %v2761 = vunpack.c.h.b16 %v1508
    %v2762 = vunpack.c.l.b16 %v1509
    %v2763 = vunpack.c.h.b16 %v1509
    %v2764 = vunpack.c.l.b16 %v1510
    %v2765 = vunpack.c.h.b16 %v1510
    %v2766 = vunpack.c.l.b16 %v1511
    %v2767 = vunpack.c.h.b16 %v1511
    %v2768 = vunpack.c.l.b16 %v1512
    %v2769 = vunpack.c.h.b16 %v1512
    %v2770 = vunpack.c.l.b16 %v1513
    %v2771 = vunpack.c.h.b16 %v1513
    %v2772 = vunpack.c.l.b16 %v1514
    %v2773 = vunpack.c.h.b16 %v1514
    %v2774 = vunpack.c.l.b16 %v1515
    %v2775 = vunpack.c.h.b16 %v1515
    %v2776 = vunpack.c.l.b16 %v1516
    %v2777 = vunpack.c.h.b16 %v1516
    %v2778 = vunpack.c.l.b16 %v1517
    %v2779 = vunpack.c.h.b16 %v1517
    %v2780 = vunpack.c.l.b16 %v1518
    %v2781 = vunpack.c.h.b16 %v1518
    %v2782 = vunpack.c.l.b16 %v1519
    %v2783 = vunpack.c.h.b16 %v1519
    %v2784 = vunpack.c.l.b16 %v1520
    %v2785 = vunpack.c.h.b16 %v1520
    %v2786 = vunpack.c.l.b16 %v1521
    %v2787 = vunpack.c.h.b16 %v1521
    %v2788 = vunpack.c.l.b16 %v1522
    %v2789 = vunpack.c.h.b16 %v1522
    %v2790 = vunpack.c.l.b16 %v1523
    %v2791 = vunpack.c.h.b16 %v1523
    %v2792 = vunpack.c.l.b16 %v1524
    %v2793 = vunpack.c.h.b16 %v1524
    %v2794 = vunpack.c.l.b16 %v1525
    %v2795 = vunpack.c.h.b16 %v1525
    %v2796 = vunpack.c.l.b16 %v1526
    %v2797 = vunpack.c.h.b16 %v1526
    %v2798 = vunpack.c.l.b16 %v1527
    %v2799 = vunpack.c.h.b16 %v1527
    %v2800 = vunpack.c.l.b16 %v1528
    %v2801 = vunpack.c.h.b16 %v1528
    %v2802 = vunpack.c.l.b16 %v1529
    %v2803 = vunpack.c.h.b16 %v1529
    %v2804 = vunpack.c.l.b16 %v1530
    %v2805 = vunpack.c.h.b16 %v1530
    %v2806 = vunpack.c.l.b16 %v1531
    %v2807 = vunpack.c.h.b16 %v1531
    %v2808 = vunpack.c.l.b16 %v1532
    %v2809 = vunpack.c.h.b16 %v1532
    %v2810 = vunpack.c.l.b16 %v1533
    %v2811 = vunpack.c.h.b16 %v1533
    %v2812 = vunpack.c.l.b16 %v1534
    %v2813 = vunpack.c.h.b16 %v1534
    %v2814 = vunpack.c.l.b16 %v1535
    %v2815 = vunpack.c.h.b16 %v1535
    %v2816 = vunpack.c.l.b16 %v1536
    %v2817 = vunpack.c.h.b16 %v1536
    %v2818 = vunpack.c.l.b16 %v1537
    %v2819 = vunpack.c.h.b16 %v1537
    %v2820 = vunpack.c.l.b16 %v1538
    %v2821 = vunpack.c.h.b16 %v1538
    %v2822 = vunpack.c.l.b16 %v1539
    %v2823 = vunpack.c.h.b16 %v1539
    %v2824 = vunpack.c.l.b16 %v1540
    %v2825 = vunpack.c.h.b16 %v1540
    %v2826 = vunpack.c.l.b16 %v1541
    %v2827 = vunpack.c.h.b16 %v1541
    %v2828 = vunpack.c.l.b16 %v1542
    %v2829 = vunpack.c.h.b16 %v1542
    %v2830 = vunpack.c.l.b16 %v1543
    %v2831 = vunpack.c.h.b16 %v1543
    %v2832 = vunpack.c.l.b16 %v1544
    %v2833 = vunpack.c.h.b16 %v1544
    %v2834 = vunpack.c.l.b16 %v1545
    %v2835 = vunpack.c.h.b16 %v1545
    %v2836 = vunpack.c.l.b16 %v1546
    %v2837 = vunpack.c.h.b16 %v1546
    %v2838 = vunpack.c.l.b16 %v1547
    %v2839 = vunpack.c.h.b16 %v1547
    %v2840 = vunpack.c.l.b16 %v1548
    %v2841 = vunpack.c.h.b16 %v1548
    %v2842 = vunpack.c.l.b16 %v1549
    %v2843 = vunpack.c.h.b16 %v1549
    %v2844 = vunpack.c.l.b16 %v1550
    %v2845 = vunpack.c.h.b16 %v1550
    %v2846 = vunpack.c.l.b16 %v1551
    %v2847 = vunpack.c.h.b16 %v1551
    %v2848 = vunpack.c.l.b16 %v1552
    %v2849 = vunpack.c.h.b16 %v1552
    %v2850 = vunpack.c.l.b16 %v1553
    %v2851 = vunpack.c.h.b16 %v1553
    %v2852 = vunpack.c.l.b16 %v1554
    %v2853 = vunpack.c.h.b16 %v1554
    %v2854 = vunpack.c.l.b16 %v1555
    %v2855 = vunpack.c.h.b16 %v1555
    %v2856 = vunpack.c.l.b16 %v1556
    %v2857 = vunpack.c.h.b16 %v1556
    %v2858 = vunpack.c.l.b16 %v1557
    %v2859 = vunpack.c.h.b16 %v1557
    %v2860 = vunpack.c.l.b16 %v1558
    %v2861 = vunpack.c.h.b16 %v1558
    %v2862 = vunpack.c.l.b16 %v1559
    %v2863 = vunpack.c.h.b16 %v1559
    %v2864 = vunpack.c.l.b16 %v1560
    %v2865 = vunpack.c.h.b16 %v1560
    %v2866 = vunpack.c.l.b16 %v1561
    %v2867 = vunpack.c.h.b16 %v1561
    %v2868 = vunpack.c.l.b16 %v1562
    %v2869 = vunpack.c.h.b16 %v1562
    %v2870 = vunpack.c.l.b16 %v1563
    %v2871 = vunpack.c.h.b16 %v1563
    %v2872 = vpack.c.b16 %v2108, %v2104
    %v2873 = vpack.c.b16 %v2109, %v2105
    %v2874 = vpack.c.b16 %v2110, %v2106
    %v2875 = vpack.c.b16 %v2111, %v2107
    %v2876 = vpack.c.b16 %v2116, %v2112
    %v2877 = vpack.c.b16 %v2117, %v2113
    %v2878 = vpack.c.b16 %v2118, %v2114
    %v2879 = vpack.c.b16 %v2119, %v2115
    %v2880 = vpack.c.b16 %v2124, %v2120
    %v2881 = vpack.c.b16 %v2125, %v2121
    %v2882 = vpack.c.b16 %v2126, %v2122
    %v2883 = vpack.c.b16 %v2127, %v2123
    %v2884 = vpack.c.b16 %v2132, %v2128
    %v2885 = vpack.c.b16 %v2133, %v2129
    %v2886 = vpack.c.b16 %v2134, %v2130
    %v2887 = vpack.c.b16 %v2135, %v2131
    %v2888 = vpack.c.b16 %v2140, %v2136
    %v2889 = vpack.c.b16 %v2141, %v2137
    %v2890 = vpack.c.b16 %v2142, %v2138
    %v2891 = vpack.c.b16 %v2143, %v2139
    %v2892 = vpack.c.b16 %v2148, %v2144
    %v2893 = vpack.c.b16 %v2149, %v2145
    %v2894 = vpack.c.b16 %v2150, %v2146
    %v2895 = vpack.c.b16 %v2151, %v2147
    %v2896 = vpack.c.b16 %v2156, %v2152
    %v2897 = vpack.c.b16 %v2157, %v2153
    %v2898 = vpack.c.b16 %v2158, %v2154
    %v2899 = vpack.c.b16 %v2159, %v2155
    %v2900 = vpack.c.b16 %v2164, %v2160
    %v2901 = vpack.c.b16 %v2165, %v2161
    %v2902 = vpack.c.b16 %v2166, %v2162
    %v2903 = vpack.c.b16 %v2167, %v2163
    %v2904 = vpack.c.b16 %v2172, %v2168
    %v2905 = vpack.c.b16 %v2173, %v2169
    %v2906 = vpack.c.b16 %v2174, %v2170
    %v2907 = vpack.c.b16 %v2175, %v2171
    %v2908 = vpack.c.b16 %v2180, %v2176
    %v2909 = vpack.c.b16 %v2181, %v2177
    %v2910 = vpack.c.b16 %v2182, %v2178
    %v2911 = vpack.c.b16 %v2183, %v2179
    %v2912 = vpack.c.b16 %v2188, %v2184
    %v2913 = vpack.c.b16 %v2189, %v2185
    %v2914 = vpack.c.b16 %v2190, %v2186
    %v2915 = vpack.c.b16 %v2191, %v2187
    %v2916 = vpack.c.b16 %v2196, %v2192
    %v2917 = vpack.c.b16 %v2197, %v2193
    %v2918 = vpack.c.b16 %v2198, %v2194
    %v2919 = vpack.c.b16 %v2199, %v2195
    %v2920 = vpack.c.b16 %v2204, %v2200
    %v2921 = vpack.c.b16 %v2205, %v2201
    %v2922 = vpack.c.b16 %v2206, %v2202
    %v2923 = vpack.c.b16 %v2207, %v2203
    %v2924 = vpack.c.b16 %v2212, %v2208
    %v2925 = vpack.c.b16 %v2213, %v2209
    %v2926 = vpack.c.b16 %v2214, %v2210
    %v2927 = vpack.c.b16 %v2215, %v2211
    %v2928 = vpack.c.b16 %v2220, %v2216
    %v2929 = vpack.c.b16 %v2221, %v2217
    %v2930 = vpack.c.b16 %v2222, %v2218
    %v2931 = vpack.c.b16 %v2223, %v2219
    %v2932 = vpack.c.b16 %v2228, %v2224
    %v2933 = vpack.c.b16 %v2229, %v2225
    %v2934 = vpack.c.b16 %v2230, %v2226
    %v2935 = vpack.c.b16 %v2231, %v2227
    %v2936 = vpack.c.b16 %v2236, %v2232
    %v2937 = vpack.c.b16 %v2237, %v2233
    %v2938 = vpack.c.b16 %v2238, %v2234
    %v2939 = vpack.c.b16 %v2239, %v2235
    %v2940 = vpack.c.b16 %v2244, %v2240
    %v2941 = vpack.c.b16 %v2245, %v2241
    %v2942 = vpack.c.b16 %v2246, %v2242
    %v2943 = vpack.c.b16 %v2247, %v2243
    %v2944 = vpack.c.b16 %v2252, %v2248
    %v2945 = vpack.c.b16 %v2253, %v2249
    %v2946 = vpack.c.b16 %v2254, %v2250
    %v2947 = vpack.c.b16 %v2255, %v2251
    %v2948 = vpack.c.b16 %v2260, %v2256
    %v2949 = vpack.c.b16 %v2261, %v2257
    %v2950 = vpack.c.b16 %v2262, %v2258
    %v2951 = vpack.c.b16 %v2263, %v2259
    %v2952 = vpack.c.b16 %v2268, %v2264
    %v2953 = vpack.c.b16 %v2269, %v2265
    %v2954 = vpack.c.b16 %v2270, %v2266
    %v2955 = vpack.c.b16 %v2271, %v2267
    %v2956 = vpack.c.b16 %v2276, %v2272
    %v2957 = vpack.c.b16 %v2277, %v2273
    %v2958 = vpack.c.b16 %v2278, %v2274
    %v2959 = vpack.c.b16 %v2279, %v2275
    %v2960 = vpack.c.b16 %v2284, %v2280
    %v2961 = vpack.c.b16 %v2285, %v2281
    %v2962 = vpack.c.b16 %v2286, %v2282
    %v2963 = vpack.c.b16 %v2287, %v2283
    %v2964 = vpack.c.b16 %v2292, %v2288
    %v2965 = vpack.c.b16 %v2293, %v2289
    %v2966 = vpack.c.b16 %v2294, %v2290
    %v2967 = vpack.c.b16 %v2295, %v2291
    %v2968 = vpack.c.b16 %v2300, %v2296
    %v2969 = vpack.c.b16 %v2301, %v2297
    %v2970 = vpack.c.b16 %v2302, %v2298
    %v2971 = vpack.c.b16 %v2303, %v2299
    %v2972 = vpack.c.b16 %v2308, %v2304
    %v2973 = vpack.c.b16 %v2309, %v2305
    %v2974 = vpack.c.b16 %v2310, %v2306
    %v2975 = vpack.c.b16 %v2311, %v2307
    %v2976 = vpack.c.b16 %v2316, %v2312
    %v2977 = vpack.c.b16 %v2317, %v2313
    %v2978 = vpack.c.b16 %v2318, %v2314
    %v2979 = vpack.c.b16 %v2319, %v2315
    %v2980 = vpack.c.b16 %v2324, %v2320
    %v2981 = vpack.c.b16 %v2325, %v2321
    %v2982 = vpack.c.b16 %v2326, %v2322
    %v2983 = vpack.c.b16 %v2327, %v2323
    %v2984 = vpack.c.b16 %v2332, %v2328
    %v2985 = vpack.c.b16 %v2333, %v2329
    %v2986 = vpack.c.b16 %v2334, %v2330
    %v2987 = vpack.c.b16 %v2335, %v2331
    %v2988 = vpack.c.b16 %v2340, %v2336
    %v2989 = vpack.c.b16 %v2341, %v2337
    %v2990 = vpack.c.b16 %v2342, %v2338
    %v2991 = vpack.c.b16 %v2343, %v2339
    %v2992 = vpack.c.b16 %v2348, %v2344
    %v2993 = vpack.c.b16 %v2349, %v2345
    %v2994 = vpack.c.b16 %v2350, %v2346
    %v2995 = vpack.c.b16 %v2351, %v2347
    %v2996 = vpack.c.b16 %v2356, %v2352
    %v2997 = vpack.c.b16 %v2357, %v2353
    %v2998 = vpack.c.b16 %v2358, %v2354
    %v2999 = vpack.c.b16 %v2359, %v2355
    %v3000 = vpack.c.b16 %v2364, %v2360
    %v3001 = vpack.c.b16 %v2365, %v2361
    %v3002 = vpack.c.b16 %v2366, %v2362
    %v3003 = vpack.c.b16 %v2367, %v2363
    %v3004 = vpack.c.b16 %v2372, %v2368
    %v3005 = vpack.c.b16 %v2373, %v2369
    %v3006 = vpack.c.b16 %v2374, %v2370
    %v3007 = vpack.c.b16 %v2375, %v2371
    %v3008 = vpack.c.b16 %v2380, %v2376
    %v3009 = vpack.c.b16 %v2381, %v2377
    %v3010 = vpack.c.b16 %v2382, %v2378
    %v3011 = vpack.c.b16 %v2383, %v2379
    %v3012 = vpack.c.b16 %v2388, %v2384
    %v3013 = vpack.c.b16 %v2389, %v2385
    %v3014 = vpack.c.b16 %v2390, %v2386
    %v3015 = vpack.c.b16 %v2391, %v2387
    %v3016 = vpack.c.b16 %v2396, %v2392
    %v3017 = vpack.c.b16 %v2397, %v2393
    %v3018 = vpack.c.b16 %v2398, %v2394
    %v3019 = vpack.c.b16 %v2399, %v2395
    %v3020 = vpack.c.b16 %v2404, %v2400
    %v3021 = vpack.c.b16 %v2405, %v2401
    %v3022 = vpack.c.b16 %v2406, %v2402
    %v3023 = vpack.c.b16 %v2407, %v2403
    %v3024 = vpack.c.b16 %v2412, %v2408
    %v3025 = vpack.c.b16 %v2413, %v2409
    %v3026 = vpack.c.b16 %v2414, %v2410
    %v3027 = vpack.c.b16 %v2415, %v2411
    %v3028 = vpack.c.b16 %v2420, %v2416
    %v3029 = vpack.c.b16 %v2421, %v2417
    %v3030 = vpack.c.b16 %v2422, %v2418
    %v3031 = vpack.c.b16 %v2423, %v2419
    %v3032 = vpack.c.b16 %v2428, %v2424
    %v3033 = vpack.c.b16 %v2429, %v2425
    %v3034 = vpack.c.b16 %v2430, %v2426
    %v3035 = vpack.c.b16 %v2431, %v2427
    %v3036 = vpack.c.b16 %v2436, %v2432
    %v3037 = vpack.c.b16 %v2437, %v2433
    %v3038 = vpack.c.b16 %v2438, %v2434
    %v3039 = vpack.c.b16 %v2439, %v2435
    %v3040 = vpack.c.b16 %v2444, %v2440
    %v3041 = vpack.c.b16 %v2445, %v2441
    %v3042 = vpack.c.b16 %v2446, %v2442
    %v3043 = vpack.c.b16 %v2447, %v2443
    %v3044 = vpack.c.b16 %v2452, %v2448
    %v3045 = vpack.c.b16 %v2453, %v2449
    %v3046 = vpack.c.b16 %v2454, %v2450
    %v3047 = vpack.c.b16 %v2455, %v2451
    %v3048 = vpack.c.b16 %v2460, %v2456
    %v3049 = vpack.c.b16 %v2461, %v2457
    %v3050 = vpack.c.b16 %v2462, %v2458
    %v3051 = vpack.c.b16 %v2463, %v2459
    %v3052 = vpack.c.b16 %v2468, %v2464
    %v3053 = vpack.c.b16 %v2469, %v2465
    %v3054 = vpack.c.b16 %v2470, %v2466
    %v3055 = vpack.c.b16 %v2471, %v2467
    %v3056 = vpack.c.b16 %v2476, %v2472
    %v3057 = vpack.c.b16 %v2477, %v2473
    %v3058 = vpack.c.b16 %v2478, %v2474
    %v3059 = vpack.c.b16 %v2479, %v2475
    %v3060 = vpack.c.b16 %v2484, %v2480
    %v3061 = vpack.c.b16 %v2485, %v2481
    %v3062 = vpack.c.b16 %v2486, %v2482
    %v3063 = vpack.c.b16 %v2487, %v2483
    %v3064 = vpack.c.b16 %v2492, %v2488
    %v3065 = vpack.c.b16 %v2493, %v2489
    %v3066 = vpack.c.b16 %v2494, %v2490
    %v3067 = vpack.c.b16 %v2495, %v2491
    %v3068 = vpack.c.b16 %v2500, %v2496
    %v3069 = vpack.c.b16 %v2501, %v2497
    %v3070 = vpack.c.b16 %v2502, %v2498
    %v3071 = vpack.c.b16 %v2503, %v2499
    %v3072 = vpack.c.b16 %v2508, %v2504
    %v3073 = vpack.c.b16 %v2509, %v2505
    %v3074 = vpack.c.b16 %v2510, %v2506
    %v3075 = vpack.c.b16 %v2511, %v2507
    %v3076 = vpack.c.b16 %v2516, %v2512
    %v3077 = vpack.c.b16 %v2517, %v2513
    %v3078 = vpack.c.b16 %v2518, %v2514
    %v3079 = vpack.c.b16 %v2519, %v2515
    %v3080 = vpack.c.b16 %v2524, %v2520
    %v3081 = vpack.c.b16 %v2525, %v2521
    %v3082 = vpack.c.b16 %v2526, %v2522
    %v3083 = vpack.c.b16 %v2527, %v2523
    %v3084 = vpack.c.b16 %v2532, %v2528
    %v3085 = vpack.c.b16 %v2533, %v2529
    %v3086 = vpack.c.b16 %v2534, %v2530
    %v3087 = vpack.c.b16 %v2535, %v2531
    %v3088 = vpack.c.b16 %v2540, %v2536
    %v3089 = vpack.c.b16 %v2541, %v2537
    %v3090 = vpack.c.b16 %v2542, %v2538
    %v3091 = vpack.c.b16 %v2543, %v2539
    %v3092 = vpack.c.b16 %v2548, %v2544
    %v3093 = vpack.c.b16 %v2549, %v2545
    %v3094 = vpack.c.b16 %v2550, %v2546
    %v3095 = vpack.c.b16 %v2551, %v2547
    %v3096 = vpack.c.b16 %v2556, %v2552
    %v3097 = vpack.c.b16 %v2557, %v2553
    %v3098 = vpack.c.b16 %v2558, %v2554
    %v3099 = vpack.c.b16 %v2559, %v2555
    %v3100 = vpack.c.b16 %v2564, %v2560
    %v3101 = vpack.c.b16 %v2565, %v2561
    %v3102 = vpack.c.b16 %v2566, %v2562
    %v3103 = vpack.c.b16 %v2567, %v2563
    %v3104 = vpack.c.b16 %v2572, %v2568
    %v3105 = vpack.c.b16 %v2573, %v2569
    %v3106 = vpack.c.b16 %v2574, %v2570
    %v3107 = vpack.c.b16 %v2575, %v2571
    %v3108 = vpack.c.b16 %v2580, %v2576
    %v3109 = vpack.c.b16 %v2581, %v2577
    %v3110 = vpack.c.b16 %v2582, %v2578
    %v3111 = vpack.c.b16 %v2583, %v2579
    %v3112 = vpack.c.b16 %v2588, %v2584
    %v3113 = vpack.c.b16 %v2589, %v2585
    %v3114 = vpack.c.b16 %v2590, %v2586
    %v3115 = vpack.c.b16 %v2591, %v2587
    %v3116 = vpack.c.b16 %v2596, %v2592
    %v3117 = vpack.c.b16 %v2597, %v2593
    %v3118 = vpack.c.b16 %v2598, %v2594
    %v3119 = vpack.c.b16 %v2599, %v2595
    %v3120 = vpack.c.b16 %v2604, %v2600
    %v3121 = vpack.c.b16 %v2605, %v2601
    %v3122 = vpack.c.b16 %v2606, %v2602
    %v3123 = vpack.c.b16 %v2607, %v2603
    %v3124 = vpack.c.b16 %v2612, %v2608
    %v3125 = vpack.c.b16 %v2613, %v2609
    %v3126 = vpack.c.b16 %v2614, %v2610
    %v3127 = vpack.c.b16 %v2615, %v2611
    %v3128 = vpack.c.b16 %v2620, %v2616
    %v3129 = vpack.c.b16 %v2621, %v2617
    %v3130 = vpack.c.b16 %v2622, %v2618
    %v3131 = vpack.c.b16 %v2623, %v2619
    %v3132 = vpack.c.b16 %v2628, %v2624
    %v3133 = vpack.c.b16 %v2629, %v2625
    %v3134 = vpack.c.b16 %v2630, %v2626
    %v3135 = vpack.c.b16 %v2631, %v2627
    %v3136 = vpack.c.b16 %v2636, %v2632
    %v3137 = vpack.c.b16 %v2637, %v2633
    %v3138 = vpack.c.b16 %v2638, %v2634
    %v3139 = vpack.c.b16 %v2639, %v2635
    %v3140 = vpack.c.b16 %v2644, %v2640
    %v3141 = vpack.c.b16 %v2645, %v2641
    %v3142 = vpack.c.b16 %v2646, %v2642
    %v3143 = vpack.c.b16 %v2647, %v2643
    %v3144 = vpack.c.b16 %v2652, %v2648
    %v3145 = vpack.c.b16 %v2653, %v2649
    %v3146 = vpack.c.b16 %v2654, %v2650
    %v3147 = vpack.c.b16 %v2655, %v2651
    %v3148 = vpack.c.b16 %v2660, %v2656
    %v3149 = vpack.c.b16 %v2661, %v2657
    %v3150 = vpack.c.b16 %v2662, %v2658
    %v3151 = vpack.c.b16 %v2663, %v2659
    %v3152 = vpack.c.b16 %v2668, %v2664
    %v3153 = vpack.c.b16 %v2669, %v2665
    %v3154 = vpack.c.b16 %v2670, %v2666
    %v3155 = vpack.c.b16 %v2671, %v2667
    %v3156 = vpack.c.b16 %v2676, %v2672
    %v3157 = vpack.c.b16 %v2677, %v2673
    %v3158 = vpack.c.b16 %v2678, %v2674
    %v3159 = vpack.c.b16 %v2679, %v2675
    %v3160 = vpack.c.b16 %v2684, %v2680
    %v3161 = vpack.c.b16 %v2685, %v2681
    %v3162 = vpack.c.b16 %v2686, %v2682
    %v3163 = vpack.c.b16 %v2687, %v2683
    %v3164 = vpack.c.b16 %v2692, %v2688
    %v3165 = vpack.c.b16 %v2693, %v2689
    %v3166 = vpack.c.b16 %v2694, %v2690
    %v3167 = vpack.c.b16 %v2695, %v2691
    %v3168 = vpack.c.b16 %v2700, %v2696
    %v3169 = vpack.c.b16 %v2701, %v2697
    %v3170 = vpack.c.b16 %v2702, %v2698
    %v3171 = vpack.c.b16 %v2703, %v2699
    %v3172 = vpack.c.b16 %v2708, %v2704
    %v3173 = vpack.c.b16 %v2709, %v2705
    %v3174 = vpack.c.b16 %v2710, %v2706
    %v3175 = vpack.c.b16 %v2711, %v2707
    %v3176 = vpack.c.b16 %v2716, %v2712
    %v3177 = vpack.c.b16 %v2717, %v2713
    %v3178 = vpack.c.b16 %v2718, %v2714
    %v3179 = vpack.c.b16 %v2719, %v2715
    %v3180 = vpack.c.b16 %v2724, %v2720
    %v3181 = vpack.c.b16 %v2725, %v2721
    %v3182 = vpack.c.b16 %v2726, %v2722
    %v3183 = vpack.c.b16 %v2727, %v2723
    %v3184 = vpack.c.b16 %v2732, %v2728
    %v3185 = vpack.c.b16 %v2733, %v2729
    %v3186 = vpack.c.b16 %v2734, %v2730
    %v3187 = vpack.c.b16 %v2735, %v2731
    %v3188 = vpack.c.b16 %v2740, %v2736
    %v3189 = vpack.c.b16 %v2741, %v2737
    %v3190 = vpack.c.b16 %v2742, %v2738
    %v3191 = vpack.c.b16 %v2743, %v2739
    %v3192 = vpack.c.b16 %v2748, %v2744
    %v3193 = vpack.c.b16 %v2749, %v2745
    %v3194 = vpack.c.b16 %v2750, %v2746
    %v3195 = vpack.c.b16 %v2751, %v2747
    %v3196 = vpack.c.b16 %v2756, %v2752
    %v3197 = vpack.c.b16 %v2757, %v2753
    %v3198 = vpack.c.b16 %v2758, %v2754
    %v3199 = vpack.c.b16 %v2759, %v2755
    %v3200 = vpack.c.b16 %v2764, %v2760
    %v3201 = vpack.c.b16 %v2765, %v2761
    %v3202 = vpack.c.b16 %v2766, %v2762
    %v3203 = vpack.c.b16 %v2767, %v2763
    %v3204 = vpack.c.b16 %v2772, %v2768
    %v3205 = vpack.c.b16 %v2773, %v2769
    %v3206 = vpack.c.b16 %v2774, %v2770
    %v3207 = vpack.c.b16 %v2775, %v2771
    %v3208 = vpack.c.b16 %v2780, %v2776
    %v3209 = vpack.c.b16 %v2781, %v2777
    %v3210 = vpack.c.b16 %v2782, %v2778
    %v3211 = vpack.c.b16 %v2783, %v2779
    %v3212 = vpack.c.b16 %v2788, %v2784
    %v3213 = vpack.c.b16 %v2789, %v2785
    %v3214 = vpack.c.b16 %v2790, %v2786
    %v3215 = vpack.c.b16 %v2791, %v2787
    %v3216 = vpack.c.b16 %v2796, %v2792
    %v3217 = vpack.c.b16 %v2797, %v2793
    %v3218 = vpack.c.b16 %v2798, %v2794
    %v3219 = vpack.c.b16 %v2799, %v2795
    %v3220 = vpack.c.b16 %v2804, %v2800
    %v3221 = vpack.c.b16 %v2805, %v2801
    %v3222 = vpack.c.b16 %v2806, %v2802
    %v3223 = vpack.c.b16 %v2807, %v2803
    %v3224 = vpack.c.b16 %v2812, %v2808
    %v3225 = vpack.c.b16 %v2813, %v2809
    %v3226 = vpack.c.b16 %v2814, %v2810
    %v3227 = vpack.c.b16 %v2815, %v2811
    %v3228 = vpack.c.b16 %v2820, %v2816
    %v3229 = vpack.c.b16 %v2821, %v2817
    %v3230 = vpack.c.b16 %v2822, %v2818
    %v3231 = vpack.c.b16 %v2823, %v2819
    %v3232 = vpack.c.b16 %v2828, %v2824
    %v3233 = vpack.c.b16 %v2829, %v2825
    %v3234 = vpack.c.b16 %v2830, %v2826
    %v3235 = vpack.c.b16 %v2831, %v2827
    %v3236 = vpack.c.b16 %v2836, %v2832
    %v3237 = vpack.c.b16 %v2837, %v2833
    %v3238 = vpack.c.b16 %v2838, %v2834
    %v3239 = vpack.c.b16 %v2839, %v2835
    %v3240 = vpack.c.b16 %v2844, %v2840
    %v3241 = vpack.c.b16 %v2845, %v2841
    %v3242 = vpack.c.b16 %v2846, %v2842
    %v3243 = vpack.c.b16 %v2847, %v2843
    %v3244 = vpack.c.b16 %v2852, %v2848
    %v3245 = vpack.c.b16 %v2853, %v2849
    %v3246 = vpack.c.b16 %v2854, %v2850
    %v3247 = vpack.c.b16 %v2855, %v2851
    %v3248 = vpack.c.b16 %v2860, %v2856
    %v3249 = vpack.c.b16 %v2861, %v2857
    %v3250 = vpack.c.b16 %v2862, %v2858
    %v3251 = vpack.c.b16 %v2863, %v2859
    %v3252 = vpack.c.b16 %v2868, %v2864
    %v3253 = vpack.c.b16 %v2869, %v2865
    %v3254 = vpack.c.b16 %v2870, %v2866
    %v3255 = vpack.c.b16 %v2871, %v2867
    %3640 = vmatprep.subr.bf16.mxu0 %v2873
    %3641 = vmatpush1.bf16.msra.mxu0 %v2872
    %3642 = vmatprep.subr.bf16.mxu0 %v2877
    %3643 = vmatpush1.bf16.msra.mxu0 %v2876
    %3644 = vmatprep.subr.bf16.mxu0 %v2881
    %3645 = vmatpush1.bf16.msra.mxu0 %v2880
    %3646 = vmatprep.subr.bf16.mxu0 %v2885
    %3647 = vmatpush1.bf16.msra.mxu0 %v2884
    %3648 = vmatprep.subr.bf16.mxu0 %v2889
    %3649 = vmatpush1.bf16.msra.mxu0 %v2888
    %3650 = vmatprep.subr.bf16.mxu0 %v2893
    %3651 = vmatpush1.bf16.msra.mxu0 %v2892
    %3652 = vmatprep.subr.bf16.mxu0 %v2897
    %3653 = vmatpush1.bf16.msra.mxu0 %v2896
    %3654 = vmatprep.subr.bf16.mxu0 %v2901
    %3655 = vmatpush1.bf16.msra.mxu0 %v2900
    %3656 = vmatprep.subr.bf16.mxu0 %v2905
    %3657 = vmatpush1.bf16.msra.mxu0 %v2904
    %3658 = vmatprep.subr.bf16.mxu0 %v2909
    %3659 = vmatpush1.bf16.msra.mxu0 %v2908
    %3660 = vmatprep.subr.bf16.mxu0 %v2913
    %3661 = vmatpush1.bf16.msra.mxu0 %v2912
    %3662 = vmatprep.subr.bf16.mxu0 %v2917
    %3663 = vmatpush1.bf16.msra.mxu0 %v2916
    %3664 = vmatprep.subr.bf16.mxu0 %v2921
    %3665 = vmatpush1.bf16.msra.mxu0 %v2920
    %3666 = vmatprep.subr.bf16.mxu0 %v2925
    %3667 = vmatpush1.bf16.msra.mxu0 %v2924
    %3668 = vmatprep.subr.bf16.mxu0 %v2929
    %3669 = vmatpush1.bf16.msra.mxu0 %v2928
    %3670 = vmatprep.subr.bf16.mxu0 %v2933
    %3671 = vmatpush1.bf16.msra.mxu0 %v2932
    %3672 = vmatprep.mubr.bf16.mxu0 %v1169
    %3673 = vmatmul.mubr.bf16.gmra.mrb[0].mxu0 %v1168
    %v3674 = vpop.f32.mrb[0].mxu0
    %v3675 = vadd.f32 %v1645, %v3674
    %v3676 = vpop.f32.mrb[0].mxu0
    %v3677 = vadd.f32 %v1647, %v3676
    %v3678 = vpop.f32.mrb[0].mxu0
    %v3679 = vpop.f32.mrb[0].mxu0
    %3680 = vdwg.mxu0
    %3681 = vmatprep.subr.bf16.mxu0 %v2937
    %3682 = vmatpush1.bf16.msra.mxu0 %v2936
    %3683 = vmatprep.subr.bf16.mxu0 %v2941
    %3684 = vmatpush1.bf16.msra.mxu0 %v2940
    %3685 = vmatprep.subr.bf16.mxu0 %v2945
    %3686 = vmatpush1.bf16.msra.mxu0 %v2944
    %3687 = vmatprep.subr.bf16.mxu0 %v2949
    %3688 = vmatpush1.bf16.msra.mxu0 %v2948
    %3689 = vmatprep.subr.bf16.mxu0 %v2953
    %3690 = vmatpush1.bf16.msra.mxu0 %v2952
    %3691 = vmatprep.subr.bf16.mxu0 %v2957
    %3692 = vmatpush1.bf16.msra.mxu0 %v2956
    %3693 = vmatprep.subr.bf16.mxu0 %v2961
    %3694 = vmatpush1.bf16.msra.mxu0 %v2960
    %3695 = vmatprep.subr.bf16.mxu0 %v2965
    %3696 = vmatpush1.bf16.msra.mxu0 %v2964
    %3697 = vmatprep.subr.bf16.mxu0 %v2969
    %3698 = vmatpush1.bf16.msra.mxu0 %v2968
    %3699 = vmatprep.subr.bf16.mxu0 %v2973
    %3700 = vmatpush1.bf16.msra.mxu0 %v2972
    %3701 = vmatprep.subr.bf16.mxu0 %v2977
    %3702 = vmatpush1.bf16.msra.mxu0 %v2976
    %3703 = vmatprep.subr.bf16.mxu0 %v2981
    %3704 = vmatpush1.bf16.msra.mxu0 %v2980
    %3705 = vmatprep.subr.bf16.mxu0 %v2985
    %3706 = vmatpush1.bf16.msra.mxu0 %v2984
    %3707 = vmatprep.subr.bf16.mxu0 %v2989
    %3708 = vmatpush1.bf16.msra.mxu0 %v2988
    %3709 = vmatprep.subr.bf16.mxu0 %v2993
    %3710 = vmatpush1.bf16.msra.mxu0 %v2992
    %3711 = vmatprep.subr.bf16.mxu0 %v2997
    %3712 = vmatpush1.bf16.msra.mxu0 %v2996
    %3713 = vmatprep.mubr.bf16.mxu0 %v1171
    %3714 = vmatmul.mubr.bf16.gmra.mrb[0].mxu0 %v1170
    %v3715 = vpop.f32.mrb[0].mxu0
    %v3716 = vadd.f32 %v3675, %v3715
    %v3717 = vpop.f32.mrb[0].mxu0
    %v3718 = vadd.f32 %v3677, %v3717
    %v3719 = vpop.f32.mrb[0].mxu0
    %v3720 = vpop.f32.mrb[0].mxu0
    %3721 = vdwg.mxu0
    %3722 = vmatprep.subr.bf16.mxu0 %v3001
    %3723 = vmatpush1.bf16.msra.mxu0 %v3000
    %3724 = vmatprep.subr.bf16.mxu0 %v3005
    %3725 = vmatpush1.bf16.msra.mxu0 %v3004
    %3726 = vmatprep.subr.bf16.mxu0 %v3009
    %3727 = vmatpush1.bf16.msra.mxu0 %v3008
    %3728 = vmatprep.subr.bf16.mxu0 %v3013
    %3729 = vmatpush1.bf16.msra.mxu0 %v3012
    %3730 = vmatprep.subr.bf16.mxu0 %v3017
    %3731 = vmatpush1.bf16.msra.mxu0 %v3016
    %3732 = vmatprep.subr.bf16.mxu0 %v3021
    %3733 = vmatpush1.bf16.msra.mxu0 %v3020
    %3734 = vmatprep.subr.bf16.mxu0 %v3025
    %3735 = vmatpush1.bf16.msra.mxu0 %v3024
    %3736 = vmatprep.subr.bf16.mxu0 %v3029
    %3737 = vmatpush1.bf16.msra.mxu0 %v3028
    %3738 = vmatprep.subr.bf16.mxu0 %v3033
    %3739 = vmatpush1.bf16.msra.mxu0 %v3032
    %3740 = vmatprep.subr.bf16.mxu0 %v3037
    %3741 = vmatpush1.bf16.msra.mxu0 %v3036
    %3742 = vmatprep.subr.bf16.mxu0 %v3041
    %3743 = vmatpush1.bf16.msra.mxu0 %v3040
    %3744 = vmatprep.subr.bf16.mxu0 %v3045
    %3745 = vmatpush1.bf16.msra.mxu0 %v3044
    %3746 = vmatprep.subr.bf16.mxu0 %v3049
    %3747 = vmatpush1.bf16.msra.mxu0 %v3048
    %3748 = vmatprep.subr.bf16.mxu0 %v3053
    %3749 = vmatpush1.bf16.msra.mxu0 %v3052
    %3750 = vmatprep.subr.bf16.mxu0 %v3057
    %3751 = vmatpush1.bf16.msra.mxu0 %v3056
    %3752 = vmatprep.subr.bf16.mxu0 %v3061
    %3753 = vmatpush1.bf16.msra.mxu0 %v3060
    %3754 = vmatprep.mubr.bf16.mxu0 %v1173
    %3755 = vmatmul.mubr.bf16.gmra.mrb[0].mxu0 %v1172
    %v3756 = vpop.f32.mrb[0].mxu0
    %v3757 = vadd.f32 %v3716, %v3756
    %v3758 = vpop.f32.mrb[0].mxu0
    %v3759 = vadd.f32 %v3718, %v3758
    %v3760 = vpop.f32.mrb[0].mxu0
    %v3761 = vpop.f32.mrb[0].mxu0
    %3762 = vdwg.mxu0
    %3763 = vmatprep.subr.bf16.mxu0 %v3065
    %3764 = vmatpush1.bf16.msra.mxu0 %v3064
    %3765 = vmatprep.subr.bf16.mxu0 %v3069
    %3766 = vmatpush1.bf16.msra.mxu0 %v3068
    %3767 = vmatprep.subr.bf16.mxu0 %v3073
    %3768 = vmatpush1.bf16.msra.mxu0 %v3072
    %3769 = vmatprep.subr.bf16.mxu0 %v3077
    %3770 = vmatpush1.bf16.msra.mxu0 %v3076
    %3771 = vmatprep.subr.bf16.mxu0 %v3081
    %3772 = vmatpush1.bf16.msra.mxu0 %v3080
    %3773 = vmatprep.subr.bf16.mxu0 %v3085
    %3774 = vmatpush1.bf16.msra.mxu0 %v3084
    %3775 = vmatprep.subr.bf16.mxu0 %v3089
    %3776 = vmatpush1.bf16.msra.mxu0 %v3088
    %3777 = vmatprep.subr.bf16.mxu0 %v3093
    %3778 = vmatpush1.bf16.msra.mxu0 %v3092
    %3779 = vmatprep.subr.bf16.mxu0 %v3097
    %3780 = vmatpush1.bf16.msra.mxu0 %v3096
    %3781 = vmatprep.subr.bf16.mxu0 %v3101
    %3782 = vmatpush1.bf16.msra.mxu0 %v3100
    %3783 = vmatprep.subr.bf16.mxu0 %v3105
    %3784 = vmatpush1.bf16.msra.mxu0 %v3104
    %3785 = vmatprep.subr.bf16.mxu0 %v3109
    %3786 = vmatpush1.bf16.msra.mxu0 %v3108
    %3787 = vmatprep.subr.bf16.mxu0 %v3113
    %3788 = vmatpush1.bf16.msra.mxu0 %v3112
    %3789 = vmatprep.subr.bf16.mxu0 %v3117
    %3790 = vmatpush1.bf16.msra.mxu0 %v3116
    %3791 = vmatprep.subr.bf16.mxu0 %v3121
    %3792 = vmatpush1.bf16.msra.mxu0 %v3120
    %3793 = vmatprep.subr.bf16.mxu0 %v3125
    %3794 = vmatpush1.bf16.msra.mxu0 %v3124
    %3795 = vmatprep.mubr.bf16.mxu0 %v1175
    %3796 = vmatmul.mubr.bf16.gmra.mrb[0].mxu0 %v1174
    %v3797 = vpop.f32.mrb[0].mxu0
    %v3798 = vadd.f32 %v3757, %v3797
    %v3799 = vpop.f32.mrb[0].mxu0
    %v3800 = vadd.f32 %v3759, %v3799
    %v3801 = vpop.f32.mrb[0].mxu0
    %v3802 = vpop.f32.mrb[0].mxu0
    %3803 = vdwg.mxu0
    %3804 = vmatprep.subr.bf16.mxu0 %v3129
    %3805 = vmatpush1.bf16.msra.mxu0 %v3128
    %3806 = vmatprep.subr.bf16.mxu0 %v3133
    %3807 = vmatpush1.bf16.msra.mxu0 %v3132
    %3808 = vmatprep.subr.bf16.mxu0 %v3137
    %3809 = vmatpush1.bf16.msra.mxu0 %v3136
    %3810 = vmatprep.subr.bf16.mxu0 %v3141
    %3811 = vmatpush1.bf16.msra.mxu0 %v3140
    %3812 = vmatprep.subr.bf16.mxu0 %v3145
    %3813 = vmatpush1.bf16.msra.mxu0 %v3144
    %3814 = vmatprep.subr.bf16.mxu0 %v3149
    %3815 = vmatpush1.bf16.msra.mxu0 %v3148
    %3816 = vmatprep.subr.bf16.mxu0 %v3153
    %3817 = vmatpush1.bf16.msra.mxu0 %v3152
    %3818 = vmatprep.subr.bf16.mxu0 %v3157
    %3819 = vmatpush1.bf16.msra.mxu0 %v3156
    %3820 = vmatprep.subr.bf16.mxu0 %v3161
    %3821 = vmatpush1.bf16.msra.mxu0 %v3160
    %3822 = vmatprep.subr.bf16.mxu0 %v3165
    %3823 = vmatpush1.bf16.msra.mxu0 %v3164
    %3824 = vmatprep.subr.bf16.mxu0 %v3169
    %3825 = vmatpush1.bf16.msra.mxu0 %v3168
    %3826 = vmatprep.subr.bf16.mxu0 %v3173
    %3827 = vmatpush1.bf16.msra.mxu0 %v3172
    %3828 = vmatprep.subr.bf16.mxu0 %v3177
    %3829 = vmatpush1.bf16.msra.mxu0 %v3176
    %3830 = vmatprep.subr.bf16.mxu0 %v3181
    %3831 = vmatpush1.bf16.msra.mxu0 %v3180
    %3832 = vmatprep.subr.bf16.mxu0 %v3185
    %3833 = vmatpush1.bf16.msra.mxu0 %v3184
    %3834 = vmatprep.subr.bf16.mxu0 %v3189
    %3835 = vmatpush1.bf16.msra.mxu0 %v3188
    %3836 = vmatprep.mubr.bf16.mxu0 %v1177
    %3837 = vmatmul.mubr.bf16.gmra.mrb[0].mxu0 %v1176
    %v3838 = vpop.f32.mrb[0].mxu0
    %v3839 = vadd.f32 %v3798, %v3838
    %v3840 = vpop.f32.mrb[0].mxu0
    %v3841 = vadd.f32 %v3800, %v3840
    %v3842 = vpop.f32.mrb[0].mxu0
    %v3843 = vpop.f32.mrb[0].mxu0
    %3844 = vdwg.mxu0
    %3845 = vmatprep.subr.bf16.mxu0 %v3193
    %3846 = vmatpush1.bf16.msra.mxu0 %v3192
    %3847 = vmatprep.subr.bf16.mxu0 %v3197
    %3848 = vmatpush1.bf16.msra.mxu0 %v3196
    %3849 = vmatprep.subr.bf16.mxu0 %v3201
    %3850 = vmatpush1.bf16.msra.mxu0 %v3200
    %3851 = vmatprep.subr.bf16.mxu0 %v3205
    %3852 = vmatpush1.bf16.msra.mxu0 %v3204
    %3853 = vmatprep.subr.bf16.mxu0 %v3209
    %3854 = vmatpush1.bf16.msra.mxu0 %v3208
    %3855 = vmatprep.subr.bf16.mxu0 %v3213
    %3856 = vmatpush1.bf16.msra.mxu0 %v3212
    %3857 = vmatprep.subr.bf16.mxu0 %v3217
    %3858 = vmatpush1.bf16.msra.mxu0 %v3216
    %3859 = vmatprep.subr.bf16.mxu0 %v3221
    %3860 = vmatpush1.bf16.msra.mxu0 %v3220
    %3861 = vmatprep.subr.bf16.mxu0 %v3225
    %3862 = vmatpush1.bf16.msra.mxu0 %v3224
    %3863 = vmatprep.subr.bf16.mxu0 %v3229
    %3864 = vmatpush1.bf16.msra.mxu0 %v3228
    %3865 = vmatprep.subr.bf16.mxu0 %v3233
    %3866 = vmatpush1.bf16.msra.mxu0 %v3232
    %3867 = vmatprep.subr.bf16.mxu0 %v3237
    %3868 = vmatpush1.bf16.msra.mxu0 %v3236
    %3869 = vmatprep.subr.bf16.mxu0 %v3241
    %3870 = vmatpush1.bf16.msra.mxu0 %v3240
    %3871 = vmatprep.subr.bf16.mxu0 %v3245
    %3872 = vmatpush1.bf16.msra.mxu0 %v3244
    %3873 = vmatprep.subr.bf16.mxu0 %v3249
    %3874 = vmatpush1.bf16.msra.mxu0 %v3248
    %3875 = vmatprep.subr.bf16.mxu0 %v3253
    %3876 = vmatpush1.bf16.msra.mxu0 %v3252
    %3877 = vmatprep.mubr.bf16.mxu0 %v1179
    %3878 = vmatmul.mubr.bf16.gmra.mrb[0].mxu0 %v1178
    %v3879 = vpop.f32.mrb[0].mxu0
    %v3880 = vadd.f32 %v3839, %v3879
    %v3881 = vpop.f32.mrb[0].mxu0
    %v3882 = vadd.f32 %v3841, %v3881
    %v3883 = vpop.f32.mrb[0].mxu0
    %v3884 = vpop.f32.mrb[0].mxu0
    %3885 = vdwg.mxu0
    %3886 = vmatprep.subr.bf16.mxu0 %v2875
    %3887 = vmatpush1.bf16.msra.mxu0 %v2874
    %3888 = vmatprep.subr.bf16.mxu0 %v2879
    %3889 = vmatpush1.bf16.msra.mxu0 %v2878
    %3890 = vmatprep.subr.bf16.mxu0 %v2883
    %3891 = vmatpush1.bf16.msra.mxu0 %v2882
    %3892 = vmatprep.subr.bf16.mxu0 %v2887
    %3893 = vmatpush1.bf16.msra.mxu0 %v2886
    %3894 = vmatprep.subr.bf16.mxu0 %v2891
    %3895 = vmatpush1.bf16.msra.mxu0 %v2890
    %3896 = vmatprep.subr.bf16.mxu0 %v2895
    %3897 = vmatpush1.bf16.msra.mxu0 %v2894
    %3898 = vmatprep.subr.bf16.mxu0 %v2899
    %3899 = vmatpush1.bf16.msra.mxu0 %v2898
    %3900 = vmatprep.subr.bf16.mxu0 %v2903
    %3901 = vmatpush1.bf16.msra.mxu0 %v2902
    %3902 = vmatprep.subr.bf16.mxu0 %v2907
    %3903 = vmatpush1.bf16.msra.mxu0 %v2906
    %3904 = vmatprep.subr.bf16.mxu0 %v2911
    %3905 = vmatpush1.bf16.msra.mxu0 %v2910
    %3906 = vmatprep.subr.bf16.mxu0 %v2915
    %3907 = vmatpush1.bf16.msra.mxu0 %v2914
    %3908 = vmatprep.subr.bf16.mxu0 %v2919
    %3909 = vmatpush1.bf16.msra.mxu0 %v2918
    %3910 = vmatprep.subr.bf16.mxu0 %v2923
    %3911 = vmatpush1.bf16.msra.mxu0 %v2922
    %3912 = vmatprep.subr.bf16.mxu0 %v2927
    %3913 = vmatpush1.bf16.msra.mxu0 %v2926
    %3914 = vmatprep.subr.bf16.mxu0 %v2931
    %3915 = vmatpush1.bf16.msra.mxu0 %v2930
    %3916 = vmatprep.subr.bf16.mxu0 %v2935
    %3917 = vmatpush1.bf16.msra.mxu0 %v2934
    %3918 = vmatprep.mubr.bf16.mxu0 %v1169
    %3919 = vmatmul.mubr.bf16.gmra.mrb[0].mxu0 %v1168
    %v3920 = vpop.f32.mrb[0].mxu0
    %v3921 = vadd.f32 %v1716, %v3920
    %v3922 = vpop.f32.mrb[0].mxu0
    %v3923 = vadd.f32 %v1718, %v3922
    %v3924 = vpop.f32.mrb[0].mxu0
    %v3925 = vpop.f32.mrb[0].mxu0
    %3926 = vdwg.mxu0
    %3927 = vmatprep.subr.bf16.mxu0 %v2939
    %3928 = vmatpush1.bf16.msra.mxu0 %v2938
    %3929 = vmatprep.subr.bf16.mxu0 %v2943
    %3930 = vmatpush1.bf16.msra.mxu0 %v2942
    %3931 = vmatprep.subr.bf16.mxu0 %v2947
    %3932 = vmatpush1.bf16.msra.mxu0 %v2946
    %3933 = vmatprep.subr.bf16.mxu0 %v2951
    %3934 = vmatpush1.bf16.msra.mxu0 %v2950
    %3935 = vmatprep.subr.bf16.mxu0 %v2955
    %3936 = vmatpush1.bf16.msra.mxu0 %v2954
    %3937 = vmatprep.subr.bf16.mxu0 %v2959
    %3938 = vmatpush1.bf16.msra.mxu0 %v2958
    %3939 = vmatprep.subr.bf16.mxu0 %v2963
    %3940 = vmatpush1.bf16.msra.mxu0 %v2962
    %3941 = vmatprep.subr.bf16.mxu0 %v2967
    %3942 = vmatpush1.bf16.msra.mxu0 %v2966
    %3943 = vmatprep.subr.bf16.mxu0 %v2971
    %3944 = vmatpush1.bf16.msra.mxu0 %v2970
    %3945 = vmatprep.subr.bf16.mxu0 %v2975
    %3946 = vmatpush1.bf16.msra.mxu0 %v2974
    %3947 = vmatprep.subr.bf16.mxu0 %v2979
    %3948 = vmatpush1.bf16.msra.mxu0 %v2978
    %3949 = vmatprep.subr.bf16.mxu0 %v2983
    %3950 = vmatpush1.bf16.msra.mxu0 %v2982
    %3951 = vmatprep.subr.bf16.mxu0 %v2987
    %3952 = vmatpush1.bf16.msra.mxu0 %v2986
    %3953 = vmatprep.subr.bf16.mxu0 %v2991
    %3954 = vmatpush1.bf16.msra.mxu0 %v2990
    %3955 = vmatprep.subr.bf16.mxu0 %v2995
    %3956 = vmatpush1.bf16.msra.mxu0 %v2994
    %3957 = vmatprep.subr.bf16.mxu0 %v2999
    %3958 = vmatpush1.bf16.msra.mxu0 %v2998
    %3959 = vmatprep.mubr.bf16.mxu0 %v1171
    %3960 = vmatmul.mubr.bf16.gmra.mrb[0].mxu0 %v1170
    %v3961 = vpop.f32.mrb[0].mxu0
    %v3962 = vadd.f32 %v3921, %v3961
    %v3963 = vpop.f32.mrb[0].mxu0
    %v3964 = vadd.f32 %v3923, %v3963
    %v3965 = vpop.f32.mrb[0].mxu0
    %v3966 = vpop.f32.mrb[0].mxu0
    %3967 = vdwg.mxu0
    %3968 = vmatprep.subr.bf16.mxu0 %v3003
    %3969 = vmatpush1.bf16.msra.mxu0 %v3002
    %3970 = vmatprep.subr.bf16.mxu0 %v3007
    %3971 = vmatpush1.bf16.msra.mxu0 %v3006
    %3972 = vmatprep.subr.bf16.mxu0 %v3011
    %3973 = vmatpush1.bf16.msra.mxu0 %v3010
    %3974 = vmatprep.subr.bf16.mxu0 %v3015
    %3975 = vmatpush1.bf16.msra.mxu0 %v3014
    %3976 = vmatprep.subr.bf16.mxu0 %v3019
    %3977 = vmatpush1.bf16.msra.mxu0 %v3018
    %3978 = vmatprep.subr.bf16.mxu0 %v3023
    %3979 = vmatpush1.bf16.msra.mxu0 %v3022
    %3980 = vmatprep.subr.bf16.mxu0 %v3027
    %3981 = vmatpush1.bf16.msra.mxu0 %v3026
    %3982 = vmatprep.subr.bf16.mxu0 %v3031
    %3983 = vmatpush1.bf16.msra.mxu0 %v3030
    %3984 = vmatprep.subr.bf16.mxu0 %v3035
    %3985 = vmatpush1.bf16.msra.mxu0 %v3034
    %3986 = vmatprep.subr.bf16.mxu0 %v3039
    %3987 = vmatpush1.bf16.msra.mxu0 %v3038
    %3988 = vmatprep.subr.bf16.mxu0 %v3043
    %3989 = vmatpush1.bf16.msra.mxu0 %v3042
    %3990 = vmatprep.subr.bf16.mxu0 %v3047
    %3991 = vmatpush1.bf16.msra.mxu0 %v3046
    %3992 = vmatprep.subr.bf16.mxu0 %v3051
    %3993 = vmatpush1.bf16.msra.mxu0 %v3050
    %3994 = vmatprep.subr.bf16.mxu0 %v3055
    %3995 = vmatpush1.bf16.msra.mxu0 %v3054
    %3996 = vmatprep.subr.bf16.mxu0 %v3059
    %3997 = vmatpush1.bf16.msra.mxu0 %v3058
    %3998 = vmatprep.subr.bf16.mxu0 %v3063
    %3999 = vmatpush1.bf16.msra.mxu0 %v3062
    %4000 = vmatprep.mubr.bf16.mxu0 %v1173
    %4001 = vmatmul.mubr.bf16.gmra.mrb[0].mxu0 %v1172
    %v4002 = vpop.f32.mrb[0].mxu0
    %v4003 = vadd.f32 %v3962, %v4002
    %v4004 = vpop.f32.mrb[0].mxu0
    %v4005 = vadd.f32 %v3964, %v4004
    %v4006 = vpop.f32.mrb[0].mxu0
    %v4007 = vpop.f32.mrb[0].mxu0
    %4008 = vdwg.mxu0
    %4009 = vmatprep.subr.bf16.mxu0 %v3067
    %4010 = vmatpush1.bf16.msra.mxu0 %v3066
    %4011 = vmatprep.subr.bf16.mxu0 %v3071
    %4012 = vmatpush1.bf16.msra.mxu0 %v3070
    %4013 = vmatprep.subr.bf16.mxu0 %v3075
    %4014 = vmatpush1.bf16.msra.mxu0 %v3074
    %4015 = vmatprep.subr.bf16.mxu0 %v3079
    %4016 = vmatpush1.bf16.msra.mxu0 %v3078
    %4017 = vmatprep.subr.bf16.mxu0 %v3083
    %4018 = vmatpush1.bf16.msra.mxu0 %v3082
    %4019 = vmatprep.subr.bf16.mxu0 %v3087
    %4020 = vmatpush1.bf16.msra.mxu0 %v3086
    %4021 = vmatprep.subr.bf16.mxu0 %v3091
    %4022 = vmatpush1.bf16.msra.mxu0 %v3090
    %4023 = vmatprep.subr.bf16.mxu0 %v3095
    %4024 = vmatpush1.bf16.msra.mxu0 %v3094
    %4025 = vmatprep.subr.bf16.mxu0 %v3099
    %4026 = vmatpush1.bf16.msra.mxu0 %v3098
    %4027 = vmatprep.subr.bf16.mxu0 %v3103
    %4028 = vmatpush1.bf16.msra.mxu0 %v3102
    %4029 = vmatprep.subr.bf16.mxu0 %v3107
    %4030 = vmatpush1.bf16.msra.mxu0 %v3106
    %4031 = vmatprep.subr.bf16.mxu0 %v3111
    %4032 = vmatpush1.bf16.msra.mxu0 %v3110
    %4033 = vmatprep.subr.bf16.mxu0 %v3115
    %4034 = vmatpush1.bf16.msra.mxu0 %v3114
    %4035 = vmatprep.subr.bf16.mxu0 %v3119
    %4036 = vmatpush1.bf16.msra.mxu0 %v3118
    %4037 = vmatprep.subr.bf16.mxu0 %v3123
    %4038 = vmatpush1.bf16.msra.mxu0 %v3122
    %4039 = vmatprep.subr.bf16.mxu0 %v3127
    %4040 = vmatpush1.bf16.msra.mxu0 %v3126
    %4041 = vmatprep.mubr.bf16.mxu0 %v1175
    %4042 = vmatmul.mubr.bf16.gmra.mrb[0].mxu0 %v1174
    %v4043 = vpop.f32.mrb[0].mxu0
    %v4044 = vadd.f32 %v4003, %v4043
    %v4045 = vpop.f32.mrb[0].mxu0
    %v4046 = vadd.f32 %v4005, %v4045
    %v4047 = vpop.f32.mrb[0].mxu0
    %v4048 = vpop.f32.mrb[0].mxu0
    %4049 = vdwg.mxu0
    %4050 = vmatprep.subr.bf16.mxu0 %v3131
    %4051 = vmatpush1.bf16.msra.mxu0 %v3130
    %4052 = vmatprep.subr.bf16.mxu0 %v3135
    %4053 = vmatpush1.bf16.msra.mxu0 %v3134
    %4054 = vmatprep.subr.bf16.mxu0 %v3139
    %4055 = vmatpush1.bf16.msra.mxu0 %v3138
    %4056 = vmatprep.subr.bf16.mxu0 %v3143
    %4057 = vmatpush1.bf16.msra.mxu0 %v3142
    %4058 = vmatprep.subr.bf16.mxu0 %v3147
    %4059 = vmatpush1.bf16.msra.mxu0 %v3146
    %4060 = vmatprep.subr.bf16.mxu0 %v3151
    %4061 = vmatpush1.bf16.msra.mxu0 %v3150
    %4062 = vmatprep.subr.bf16.mxu0 %v3155
    %4063 = vmatpush1.bf16.msra.mxu0 %v3154
    %4064 = vmatprep.subr.bf16.mxu0 %v3159
    %4065 = vmatpush1.bf16.msra.mxu0 %v3158
    %4066 = vmatprep.subr.bf16.mxu0 %v3163
    %4067 = vmatpush1.bf16.msra.mxu0 %v3162
    %4068 = vmatprep.subr.bf16.mxu0 %v3167
    %4069 = vmatpush1.bf16.msra.mxu0 %v3166
    %4070 = vmatprep.subr.bf16.mxu0 %v3171
    %4071 = vmatpush1.bf16.msra.mxu0 %v3170
    %4072 = vmatprep.subr.bf16.mxu0 %v3175
    %4073 = vmatpush1.bf16.msra.mxu0 %v3174
    %4074 = vmatprep.subr.bf16.mxu0 %v3179
    %4075 = vmatpush1.bf16.msra.mxu0 %v3178
    %4076 = vmatprep.subr.bf16.mxu0 %v3183
    %4077 = vmatpush1.bf16.msra.mxu0 %v3182
    %4078 = vmatprep.subr.bf16.mxu0 %v3187
    %4079 = vmatpush1.bf16.msra.mxu0 %v3186
    %4080 = vmatprep.subr.bf16.mxu0 %v3191
    %4081 = vmatpush1.bf16.msra.mxu0 %v3190
    %4082 = vmatprep.mubr.bf16.mxu0 %v1177
    %4083 = vmatmul.mubr.bf16.gmra.mrb[0].mxu0 %v1176
    %v4084 = vpop.f32.mrb[0].mxu0
    %v4085 = vadd.f32 %v4044, %v4084
    %v4086 = vpop.f32.mrb[0].mxu0
    %v4087 = vadd.f32 %v4046, %v4086
    %v4088 = vpop.f32.mrb[0].mxu0
    %v4089 = vpop.f32.mrb[0].mxu0
    %4090 = vdwg.mxu0
    %4091 = vmatprep.subr.bf16.mxu0 %v3195
    %4092 = vmatpush1.bf16.msra.mxu0 %v3194
    %4093 = vmatprep.subr.bf16.mxu0 %v3199
    %4094 = vmatpush1.bf16.msra.mxu0 %v3198
    %4095 = vmatprep.subr.bf16.mxu0 %v3203
    %4096 = vmatpush1.bf16.msra.mxu0 %v3202
    %4097 = vmatprep.subr.bf16.mxu0 %v3207
    %4098 = vmatpush1.bf16.msra.mxu0 %v3206
    %4099 = vmatprep.subr.bf16.mxu0 %v3211
    %4100 = vmatpush1.bf16.msra.mxu0 %v3210
    %4101 = vmatprep.subr.bf16.mxu0 %v3215
    %4102 = vmatpush1.bf16.msra.mxu0 %v3214
    %4103 = vmatprep.subr.bf16.mxu0 %v3219
    %4104 = vmatpush1.bf16.msra.mxu0 %v3218
    %4105 = vmatprep.subr.bf16.mxu0 %v3223
    %4106 = vmatpush1.bf16.msra.mxu0 %v3222
    %4107 = vmatprep.subr.bf16.mxu0 %v3227
    %4108 = vmatpush1.bf16.msra.mxu0 %v3226
    %4109 = vmatprep.subr.bf16.mxu0 %v3231
    %4110 = vmatpush1.bf16.msra.mxu0 %v3230
    %4111 = vmatprep.subr.bf16.mxu0 %v3235
    %4112 = vmatpush1.bf16.msra.mxu0 %v3234
    %4113 = vmatprep.subr.bf16.mxu0 %v3239
    %4114 = vmatpush1.bf16.msra.mxu0 %v3238
    %4115 = vmatprep.subr.bf16.mxu0 %v3243
    %4116 = vmatpush1.bf16.msra.mxu0 %v3242
    %4117 = vmatprep.subr.bf16.mxu0 %v3247
    %4118 = vmatpush1.bf16.msra.mxu0 %v3246
    %4119 = vmatprep.subr.bf16.mxu0 %v3251
    %4120 = vmatpush1.bf16.msra.mxu0 %v3250
    %4121 = vmatprep.subr.bf16.mxu0 %v3255
    %4122 = vmatpush1.bf16.msra.mxu0 %v3254
    %4123 = vmatprep.mubr.bf16.mxu0 %v1179
    %4124 = vmatmul.mubr.bf16.gmra.mrb[0].mxu0 %v1178
    %v4125 = vpop.f32.mrb[0].mxu0
    %v4126 = vadd.f32 %v4085, %v4125
    %v4127 = vpop.f32.mrb[0].mxu0
    %v4128 = vadd.f32 %v4087, %v4127
    %v4129 = vpop.f32.mrb[0].mxu0
    %v4130 = vpop.f32.mrb[0].mxu0
    %4131 = vdwg.mxu0
    %4132 = vst [vmem:[#allocation14] sm:$0xff] %v3880
    %4133 = vst [vmem:[#allocation14 + $0x8] sm:$0xff] %v3882
    %4134 = vst [vmem:[#allocation14 + $0x10] sm:$0xff] %v4126
    %4135 = vst [vmem:[#allocation14 + $0x18] sm:$0xff] %v4128
    // Predicated region
    $region62: #{moe_decoder.1} parent=1 // pred_check
      _
    $region63: #{moe_decoder.1} parent=1 // pred_check_branch
      %4137 = sbr.rel (0) target = $region65
    $region64: #{moe_decoder.1} parent=1 // pred_region
      %s4139 = ssub.s32 512, 512
      %4140 = vsyncadd [#allocation4], %s4139
      %s4142 = sshll.u32 [#allocation14], 4
      %s4143 = int_to_ptr.vmem [resolvable:$true] %s4142
      %4145 = dma.vmem_to_hbm [thread:$0]  %s4143, 512, %s8, [#allocation4]
    $region65: #{moe_decoder.1} parent=1 // pred_fallthru
      _
    // Predicated region
    $region66: #{moe_decoder.1} parent=1 // pred_check
      _
    $region67: #{moe_decoder.1} parent=1 // pred_check_branch
      %4147 = sbr.rel (0) target = $region69
    $region68: #{moe_decoder.1} parent=1 // pred_region
      %4148 = dma.done [#allocation4], 512
    $region69: #{moe_decoder.1} parent=1 // pred_fallthru
      _
    %4149 = vsyncpa [#allocation3], 1
    %4150 = vsyncpa [#allocation6], 1
    %4151 = vsyncpa [#allocation9], 1
    %4152 = vsyncpa [#allocation12], 1
    %4153 = vsyncpa [#allocation4], 1

</llo_original>
